<compile_context>
chip_gen: v7x
topology: tpu7x:2x2x1
jax: 0.10.0
libtpu: 0.0.40
codegen_flags: <defaults>
</compile_context>

<pallas_src>
import jax
import jax.numpy as jnp
from jax.experimental import pallas as pl
from jax.experimental.pallas import tpu as pltpu

CP = 128  # lane-padded channel width (all channel dims live on the 128 lanes)


# ---------------------------------------------------------------------------
# Pallas kernels
# ---------------------------------------------------------------------------

def conv1x1_kernel(x_ref, w_ref, b_ref, o_ref):
    """Pointwise (1x1) conv on a block of rows: [RB, CP] @ [CP, CP] + b."""
    o_ref[...] = (jnp.dot(x_ref[...], w_ref[...],
                          preferred_element_type=jnp.float32)
                  + b_ref[...])


def upsample_axis_kernel(m_ref, x_ref, o_ref):
    """Left-multiply one batch element by a small interpolation matrix.

    m: [Do, Di]   x: [Di, L]   o: [Do, L]   (L is a multiple of 128)
    """
    o_ref[...] = jnp.dot(m_ref[...], x_ref[...],
                         preferred_element_type=jnp.float32)


def conv3x3_kernel(x_ref, w_ref, b_ref, o_ref, stat_ref):
    """3x3 'same' conv on one (batch, H-tile) block via a single im2col matmul.

    x: [TH+2, W+2, CP] bf16 (spatially padded tile, channels lane-padded)
    w: [9*CP, CP] bf16 (im2col layout: rows ordered (tap, cin))
    b: [1, CP] f32
    o: [TH*W, CP] f32 (pre-BatchNorm activations, lane-dense)
    stat: [8, CP] f32 (row 0 = per-channel sum, row 1 = per-channel sum of squares)
    """
    th2, wp, cp = x_ref.shape
    th, w = th2 - 2, wp - 2
    cpo = o_ref.shape[-1]

    x = x_ref[...]
    cols = [x[dy:dy + th, dx:dx + w, :] for dy in range(3) for dx in range(3)]
    patches = jnp.concatenate(cols, axis=-1).reshape(th * w, 9 * cp)

    acc = jnp.dot(patches, w_ref[...], preferred_element_type=jnp.float32)
    acc = acc + b_ref[...]
    o_ref[...] = acc

    s = jnp.sum(acc, axis=0, keepdims=True)
    ss = jnp.sum(acc * acc, axis=0, keepdims=True)
    stat_ref[...] = jnp.concatenate(
        [s, ss, jnp.zeros((6, cpo), jnp.float32)], axis=0)


def bn_lrelu_kernel(y_ref, scale_ref, shift_ref, o_ref):
    """Phase-2 BatchNorm (precomputed scale/shift) + LeakyReLU(0.2)."""
    z = y_ref[...] * scale_ref[...] + shift_ref[...]
    o_ref[...] = jnp.where(z > 0, z, 0.2 * z)


# ---------------------------------------------------------------------------
# pallas_call wrappers
# ---------------------------------------------------------------------------

def _pick_rows_block(r):
    for cand in (256, 512, 1024, 128, 64, 32, 16, 8):
        if r % cand == 0:
            return cand
    return r


def _pick_h_tile(h):
    for cand in (8, 16, 32, 64, 128):
        if h % cand == 0:
            return cand
    return h


def conv1x1_rows(x_rows, w, b):
    r = x_rows.shape[0]
    rb = _pick_rows_block(r)
    return pl.pallas_call(
        conv1x1_kernel,
        out_shape=jax.ShapeDtypeStruct((r, CP), jnp.float32),
        grid=(r // rb,),
        in_specs=[pl.BlockSpec((rb, CP), lambda i: (i, 0)),
                  pl.BlockSpec((CP, CP), lambda i: (0, 0)),
                  pl.BlockSpec((1, CP), lambda i: (0, 0))],
        out_specs=pl.BlockSpec((rb, CP), lambda i: (i, 0)),
        compiler_params=pltpu.CompilerParams(
            dimension_semantics=("parallel",)),
    )(x_rows, w, b)


def upsample_axis(m, x):
    n, di, l = x.shape
    do = m.shape[0]
    return pl.pallas_call(
        upsample_axis_kernel,
        out_shape=jax.ShapeDtypeStruct((n, do, l), jnp.float32),
        grid=(n,),
        in_specs=[pl.BlockSpec((do, di), lambda i: (0, 0)),
                  pl.BlockSpec((None, di, l), lambda i: (i, 0, 0))],
        out_specs=pl.BlockSpec((None, do, l), lambda i: (i, 0, 0)),
        compiler_params=pltpu.CompilerParams(
            dimension_semantics=("parallel",)),
    )(m, x)


def conv3x3_tiles(x_tiles, w, b, th, wout):
    g, th2, wp, cp = x_tiles.shape
    return pl.pallas_call(
        conv3x3_kernel,
        out_shape=(jax.ShapeDtypeStruct((g, th * wout, CP), jnp.float32),
                   jax.ShapeDtypeStruct((g, 8, CP), jnp.float32)),
        grid=(g,),
        in_specs=[pl.BlockSpec((None, th2, wp, cp), lambda i: (i, 0, 0, 0)),
                  pl.BlockSpec((9 * CP, CP), lambda i: (0, 0)),
                  pl.BlockSpec((1, CP), lambda i: (0, 0))],
        out_specs=(pl.BlockSpec((None, th * wout, CP), lambda i: (i, 0, 0)),
                   pl.BlockSpec((None, 8, CP), lambda i: (i, 0, 0))),
        compiler_params=pltpu.CompilerParams(
            dimension_semantics=("parallel",),
            vmem_limit_bytes=32 * 1024 * 1024),
    )(x_tiles, w, b)


def bn_lrelu_rows(y, scale, shift):
    r = y.shape[0]
    rb = _pick_rows_block(r)
    return pl.pallas_call(
        bn_lrelu_kernel,
        out_shape=jax.ShapeDtypeStruct((r, CP), jnp.float32),
        grid=(r // rb,),
        in_specs=[pl.BlockSpec((rb, CP), lambda i: (i, 0)),
                  pl.BlockSpec((1, CP), lambda i: (0, 0)),
                  pl.BlockSpec((1, CP), lambda i: (0, 0))],
        out_specs=pl.BlockSpec((rb, CP), lambda i: (i, 0)),
        compiler_params=pltpu.CompilerParams(
            dimension_semantics=("parallel",)),
    )(y, scale, shift)


# ---------------------------------------------------------------------------
# Plain-JAX glue
# ---------------------------------------------------------------------------

def make_bilinear_matrix(out_size, in_size):
    """[out_size, in_size] interpolation matrix, align_corners=True."""
    if in_size == 1:
        return jnp.ones((out_size, 1), jnp.float32)
    o = jnp.arange(out_size, dtype=jnp.float32)
    src = o * (in_size - 1) / (out_size - 1)
    lo = jnp.floor(src).astype(jnp.int32)
    hi = jnp.minimum(lo + 1, in_size - 1)
    frac = src - lo.astype(jnp.float32)
    m = jnp.zeros((out_size, in_size), jnp.float32)
    rows = jnp.arange(out_size)
    m = m.at[rows, lo].add(1.0 - frac)
    m = m.at[rows, hi].add(frac)
    return m


def _pad_lane(v):
    pad = [(0, 0)] * (v.ndim - 1) + [(0, CP - v.shape[-1])]
    return jnp.pad(v, pad)


def _pack_1x1(w, b):  # w: [cin, cout], b: [cout]
    wp = jnp.zeros((CP, CP), jnp.float32).at[:w.shape[0], :w.shape[1]].set(w)
    return wp.astype(jnp.bfloat16), _pad_lane(b)[None, :].astype(jnp.float32)


def _pack_3x3(w, b):  # w: [9, cin, cout] (tap = dy*3+dx), b: [cout]
    wp = jnp.zeros((9, CP, CP), jnp.float32).at[:, :w.shape[1], :w.shape[2]].set(w)
    return (wp.reshape(9 * CP, CP).astype(jnp.bfloat16),
            _pad_lane(b)[None, :].astype(jnp.float32))


def init_params(key, i_ch, o_ch):
    """Deterministic PyTorch-default-style init (kaiming-uniform-ish bounds)."""
    ks = jax.random.split(key, 6)

    def u(k, shape, fan_in):
        bound = 1.0 / jnp.sqrt(jnp.float32(fan_in))
        return jax.random.uniform(k, shape, jnp.float32, -bound, bound)

    return {
        "up_w": u(ks[0], (i_ch, o_ch), i_ch),          # Conv2d(i, o, 1)
        "up_b": u(ks[1], (o_ch,), i_ch),
        "c1_w": u(ks[2], (9, i_ch, o_ch), 9 * i_ch),   # Conv2d(i, o, 3, pad=1)
        "c1_b": u(ks[3], (o_ch,), 9 * i_ch),
        "bn1_g": jnp.ones((o_ch,), jnp.float32),
        "bn1_b": jnp.zeros((o_ch,), jnp.float32),
        "c2_w": u(ks[4], (9, o_ch, o_ch), 9 * o_ch),   # Conv2d(o, o, 3, pad=1)
        "c2_b": u(ks[5], (o_ch,), 9 * o_ch),
        "bn2_g": jnp.ones((o_ch,), jnp.float32),
        "bn2_b": jnp.zeros((o_ch,), jnp.float32),
    }


def _conv_bn_lrelu(x_nhwc_cp, w_bf16, b_f32, gamma, beta):
    """Conv3x3(pad=1) + training-mode BatchNorm + LeakyReLU(0.2), channels lane-padded."""
    n, h, w, cp = x_nhwc_cp.shape
    th = _pick_h_tile(h)
    nh = h // th

    # Spatial zero pad + overlapping H-tiles (tile carries its own 2-row halo).
    # TODO(synk): for very large feature maps stream the halo via manual DMA
    # (memory_space=pl.ANY) instead of the wrapper-side overlapping-row gather.
    xpad = jnp.pad(x_nhwc_cp, ((0, 0), (1, 1), (1, 1), (0, 0)))
    row_idx = (jnp.arange(nh) * th)[:, None] + jnp.arange(th + 2)[None, :]
    x_tiles = xpad[:, row_idx]                       # [n, nh, th+2, w+2, cp]
    x_tiles = x_tiles.reshape(n * nh, th + 2, w + 2, cp).astype(jnp.bfloat16)

    # Phase 1: conv + bias + per-tile partial statistics.
    y_pre, stats = conv3x3_tiles(x_tiles, w_bf16, b_f32, th, w)

    # Reduce statistics (tiny per-channel vectors) -> scale / shift.
    cnt = jnp.float32(n * h * w)
    mean = jnp.sum(stats[:, 0, :], axis=0) / cnt
    var = jnp.maximum(jnp.sum(stats[:, 1, :], axis=0) / cnt - mean * mean, 0.0)
    scale = (_pad_lane(gamma) * jax.lax.rsqrt(var + 1e-5))[None, :]
    shift = _pad_lane(beta)[None, :] - mean[None, :] * scale

    # Phase 2: normalize + LeakyReLU (gridded, lane-dense).
    y = bn_lrelu_rows(y_pre.reshape(n * h * w, CP), scale, shift)
    return y.reshape(n, h, w, CP)


def up_conv_forward(params, x1_nchw, x2_nchw):
    # NCHW (PyTorch convention) -> NHWC so channels sit on the lane dimension.
    x1 = jnp.transpose(x1_nchw, (0, 2, 3, 1)).astype(jnp.float32)
    x2 = jnp.transpose(x2_nchw, (0, 2, 3, 1)).astype(jnp.float32)

    n, hi, wi, _ = x1.shape
    c2 = x2.shape[-1]
    o_ch = params["up_w"].shape[1]
    ho, wo = 2 * hi, 2 * wi

    # ---- up path: 1x1 conv first (commutes exactly with align_corners bilinear
    # upsample since the interpolation weights sum to 1), then separable upsample.
    up_w, up_b = _pack_1x1(params["up_w"], params["up_b"])
    x1_rows = _pad_lane(x1).reshape(n * hi * wi, CP).astype(jnp.bfloat16)
    y = conv1x1_rows(x1_rows, up_w, up_b)                 # [n*hi*wi, CP] f32

    rh = make_bilinear_matrix(ho, hi)                     # [ho, hi]
    rw = make_bilinear_matrix(wo, wi)                     # [wo, wi]
    y = y.reshape(n, hi, wi * CP)
    y = upsample_axis(rh, y)                              # H direction
    y = y.reshape(n, ho, wi, CP).transpose(0, 2, 1, 3).reshape(n, wi, ho * CP)
    y = upsample_axis(rw, y)                              # W direction
    x1_up = y.reshape(n, wo, ho, CP).transpose(0, 2, 1, 3)  # [n, ho, wo, CP]

    # ---- F.pad(x1, [dX//2, dX-dX//2, dY//2, dY-dY//2]) to x2 spatial size.
    dy = x2.shape[1] - ho
    dx = x2.shape[2] - wo
    x1_up = jnp.pad(x1_up, ((0, 0),
                            (dy // 2, dy - dy // 2),
                            (dx // 2, dx - dx // 2),
                            (0, 0)))

    # ---- torch.cat([x2, x1], dim=1): folded into the lane padding we need anyway.
    h, w = x2.shape[1], x2.shape[2]
    xcat = jnp.concatenate(
        [x2, x1_up[..., :o_ch],
         jnp.zeros((n, h, w, CP - c2 - o_ch), jnp.float32)], axis=-1)

    # ---- DoubleConv
    w1, b1 = _pack_3x3(params["c1_w"], params["c1_b"])
    w2, b2 = _pack_3x3(params["c2_w"], params["c2_b"])
    y = _conv_bn_lrelu(xcat, w1, b1, params["bn1_g"], params["bn1_b"])
    y = _conv_bn_lrelu(y, w2, b2, params["bn2_g"], params["bn2_b"])

    # Drop the lane padding and go back to NCHW.
    return jnp.transpose(y[..., :o_ch], (0, 3, 1, 2))


# ---------------------------------------------------------------------------
# Main
# ---------------------------------------------------------------------------

if __name__ == "__main__":
    key = jax.random.PRNGKey(0)
    k1, k2, k3 = jax.random.split(key, 3)

    i_ch, o_ch = 8, 4          # up_conv(i_channels=8, o_channels=4)
    n, h1, w1 = 2, 8, 8        # x1 spatial half of x2 (standard UNet skip)

    x1 = jax.random.normal(k1, (n, i_ch, h1, w1), jnp.float32)                 # NCHW
    x2 = jax.random.normal(k2, (n, i_ch - o_ch, 2 * h1, 2 * w1), jnp.float32)  # NCHW

    params = init_params(k3, i_ch, o_ch)

    out = jax.jit(up_conv_forward)(params, x1, x2)
    out = jax.block_until_ready(out)

    assert out.shape == (n, o_ch, 2 * h1, 2 * w1), out.shape
    assert bool(jnp.all(jnp.isfinite(out)))
    print("KERNEL_OK")
</pallas_src>

<mosaic_0001>
module attributes {stable_mosaic.version = 11 : i64} {
  func.func private @main(%arg0: i32) attributes {dimension_semantics = [#tpu.dimension_semantics<core_parallel>], iteration_bounds = array<i64: 2>, tpu.core_type = #tpu.core_type<sc_scalar_subcore>, window_params = []} {
    return
  }
}

module attributes {stable_mosaic.version = 11 : i64} {
  func.func private @main(%arg0: i32) attributes {dimension_semantics = [#tpu.dimension_semantics<core_parallel>], iteration_bounds = array<i64: 2>, tpu.core_type = #tpu.core_type<sc_scalar_subcore>, window_params = []} {
    return
  }
}

module attributes {stable_mosaic.version = 11 : i64} {
  func.func @conv1x1_kernel(%arg0: i32, %arg1: memref<128x128xbf16, #tpu.memory_space<vmem>>, %arg2: memref<128x128xbf16, #tpu.memory_space<vmem>>, %arg3: memref<1x128xf32, #tpu.memory_space<vmem>>, %arg4: memref<128x128xf32, #tpu.memory_space<vmem>>) attributes {dimension_semantics = [#tpu.dimension_semantics<parallel>], iteration_bounds = array<i64: 1>, scalar_prefetch = 0 : i64, scratch_operands = 0 : i64, tpu.core_type = #tpu.core_type<tc>, window_params = [{transform_indices = @transform_0, window_bounds = array<i64: 128, 128>}, {pipeline_mode = #tpu.pipeline_mode<synchronous>, transform_indices = @transform_1, window_bounds = array<i64: 128, 128>}, {pipeline_mode = #tpu.pipeline_mode<synchronous>, transform_indices = @transform_2, window_bounds = array<i64: 1, 128>}, {transform_indices = @transform_3, window_bounds = array<i64: 128, 128>}]} {
    %c0 = arith.constant 0 : index
    %c0_0 = arith.constant 0 : index
    %0 = vector.load %arg1[%c0, %c0_0] : memref<128x128xbf16, #tpu.memory_space<vmem>>, vector<128x128xbf16>
    %c0_1 = arith.constant 0 : index
    %c0_2 = arith.constant 0 : index
    %1 = vector.load %arg2[%c0_1, %c0_2] : memref<128x128xbf16, #tpu.memory_space<vmem>>, vector<128x128xbf16>
    %cst = arith.constant dense<0.000000e+00> : vector<128x128xf32>
    %2 = tpu.matmul %0, %1, %cst {dimension_numbers = #tpu.dot_dimension_numbers<[1], [0], [0], [1], [0, 0, 1, 1], [], []>} : vector<128x128xbf16>, vector<128x128xbf16>, vector<128x128xf32> -> vector<128x128xf32>
    %c0_3 = arith.constant 0 : index
    %c0_4 = arith.constant 0 : index
    %3 = vector.load %arg3[%c0_3, %c0_4] : memref<1x128xf32, #tpu.memory_space<vmem>>, vector<1x128xf32>
    %4 = vector.broadcast %3 : vector<1x128xf32> to vector<128x128xf32>
    %5 = arith.addf %2, %4 : vector<128x128xf32>
    %c0_5 = arith.constant 0 : index
    %c0_6 = arith.constant 0 : index
    %6 = vector.load %arg4[%c0_5, %c0_6] : memref<128x128xf32, #tpu.memory_space<vmem>>, vector<128x128xf32>
    tpu.vector_store %arg4[%c0_5, %c0_6], %5 {strides = array<i32>} : memref<128x128xf32, #tpu.memory_space<vmem>>, vector<128x128xf32>,
    return
  }
  func.func @transform_0(%arg0: i32) -> (i32, i32) {
    %c0_i32 = arith.constant 0 : i32
    %c0_i32_0 = arith.constant 0 : i32
    return %arg0, %c0_i32 : i32, i32
  }
  func.func @transform_1(%arg0: i32) -> (i32, i32) {
    %c0_i32 = arith.constant 0 : i32
    %c0_i32_0 = arith.constant 0 : i32
    %c0_i32_1 = arith.constant 0 : i32
    return %c0_i32, %c0_i32_0 : i32, i32
  }
  func.func @transform_2(%arg0: i32) -> (i32, i32) {
    %c0_i32 = arith.constant 0 : i32
    %c0_i32_0 = arith.constant 0 : i32
    %c0_i32_1 = arith.constant 0 : i32
    return %c0_i32, %c0_i32_0 : i32, i32
  }
  func.func @transform_3(%arg0: i32) -> (i32, i32) {
    %c0_i32 = arith.constant 0 : i32
    %c0_i32_0 = arith.constant 0 : i32
    return %arg0, %c0_i32 : i32, i32
  }
}

module attributes {stable_mosaic.version = 11 : i64} {
  func.func @upsample_axis_kernel(%arg0: i32, %arg1: memref<16x8xf32, #tpu.memory_space<vmem>>, %arg2: memref<1x8x1024xf32, #tpu.memory_space<vmem>>, %arg3: memref<1x16x1024xf32, #tpu.memory_space<vmem>>) attributes {dimension_semantics = [#tpu.dimension_semantics<parallel>], iteration_bounds = array<i64: 2>, scalar_prefetch = 0 : i64, scratch_operands = 0 : i64, tpu.core_type = #tpu.core_type<tc>, window_params = [{pipeline_mode = #tpu.pipeline_mode<synchronous>, transform_indices = @transform_0, window_bounds = array<i64: 16, 8>}, {transform_indices = @transform_1, window_bounds = array<i64: 1, 8, 1024>}, {transform_indices = @transform_2, window_bounds = array<i64: 1, 16, 1024>}]} {
    %c0 = arith.constant 0 : index
    %c0_0 = arith.constant 0 : index
    %0 = vector.load %arg1[%c0, %c0_0] : memref<16x8xf32, #tpu.memory_space<vmem>>, vector<16x8xf32>
    %c0_1 = arith.constant 0 : index
    %c0_2 = arith.constant 0 : index
    %c0_3 = arith.constant 0 : index
    %1 = vector.load %arg2[%c0_1, %c0_2, %c0_3] : memref<1x8x1024xf32, #tpu.memory_space<vmem>>, vector<1x8x1024xf32>
    %2 = vector.shape_cast %1 : vector<1x8x1024xf32> to vector<8x1024xf32>
    %cst = arith.constant dense<0.000000e+00> : vector<16x1024xf32>
    %3 = tpu.matmul %0, %2, %cst {dimension_numbers = #tpu.dot_dimension_numbers<[1], [0], [0], [1], [0, 0, 1, 1], [], []>} : vector<16x8xf32>, vector<8x1024xf32>, vector<16x1024xf32> -> vector<16x1024xf32>
    %c0_4 = arith.constant 0 : index
    %c0_5 = arith.constant 0 : index
    %c0_6 = arith.constant 0 : index
    %4 = vector.load %arg3[%c0_4, %c0_5, %c0_6] : memref<1x16x1024xf32, #tpu.memory_space<vmem>>, vector<1x16x1024xf32>
    %5 = vector.shape_cast %4 : vector<1x16x1024xf32> to vector<16x1024xf32>
    %6 = vector.shape_cast %3 : vector<16x1024xf32> to vector<1x16x1024xf32>
    tpu.vector_store %arg3[%c0_4, %c0_5, %c0_6], %6 {strides = array<i32>} : memref<1x16x1024xf32, #tpu.memory_space<vmem>>, vector<1x16x1024xf32>,
    return
  }
  func.func @transform_0(%arg0: i32) -> (i32, i32) {
    %c0_i32 = arith.constant 0 : i32
    %c0_i32_0 = arith.constant 0 : i32
    %c0_i32_1 = arith.constant 0 : i32
    return %c0_i32, %c0_i32_0 : i32, i32
  }
  func.func @transform_1(%arg0: i32) -> (i32, i32, i32) {
    %c0_i32 = arith.constant 0 : i32
    %c0_i32_0 = arith.constant 0 : i32
    %c0_i32_1 = arith.constant 0 : i32
    return %arg0, %c0_i32, %c0_i32_0 : i32, i32, i32
  }
  func.func @transform_2(%arg0: i32) -> (i32, i32, i32) {
    %c0_i32 = arith.constant 0 : i32
    %c0_i32_0 = arith.constant 0 : i32
    %c0_i32_1 = arith.constant 0 : i32
    return %arg0, %c0_i32, %c0_i32_0 : i32, i32, i32
  }
}

module attributes {stable_mosaic.version = 11 : i64} {
  func.func @upsample_axis_kernel(%arg0: i32, %arg1: memref<16x8xf32, #tpu.memory_space<vmem>>, %arg2: memref<1x8x2048xf32, #tpu.memory_space<vmem>>, %arg3: memref<1x16x2048xf32, #tpu.memory_space<vmem>>) attributes {dimension_semantics = [#tpu.dimension_semantics<parallel>], iteration_bounds = array<i64: 2>, scalar_prefetch = 0 : i64, scratch_operands = 0 : i64, tpu.core_type = #tpu.core_type<tc>, window_params = [{pipeline_mode = #tpu.pipeline_mode<synchronous>, transform_indices = @transform_0, window_bounds = array<i64: 16, 8>}, {transform_indices = @transform_1, window_bounds = array<i64: 1, 8, 2048>}, {transform_indices = @transform_2, window_bounds = array<i64: 1, 16, 2048>}]} {
    %c0 = arith.constant 0 : index
    %c0_0 = arith.constant 0 : index
    %0 = vector.load %arg1[%c0, %c0_0] : memref<16x8xf32, #tpu.memory_space<vmem>>, vector<16x8xf32>
    %c0_1 = arith.constant 0 : index
    %c0_2 = arith.constant 0 : index
    %c0_3 = arith.constant 0 : index
    %1 = vector.load %arg2[%c0_1, %c0_2, %c0_3] : memref<1x8x2048xf32, #tpu.memory_space<vmem>>, vector<1x8x2048xf32>
    %2 = vector.shape_cast %1 : vector<1x8x2048xf32> to vector<8x2048xf32>
    %cst = arith.constant dense<0.000000e+00> : vector<16x2048xf32>
    %3 = tpu.matmul %0, %2, %cst {dimension_numbers = #tpu.dot_dimension_numbers<[1], [0], [0], [1], [0, 0, 1, 1], [], []>} : vector<16x8xf32>, vector<8x2048xf32>, vector<16x2048xf32> -> vector<16x2048xf32>
    %c0_4 = arith.constant 0 : index
    %c0_5 = arith.constant 0 : index
    %c0_6 = arith.constant 0 : index
    %4 = vector.load %arg3[%c0_4, %c0_5, %c0_6] : memref<1x16x2048xf32, #tpu.memory_space<vmem>>, vector<1x16x2048xf32>
    %5 = vector.shape_cast %4 : vector<1x16x2048xf32> to vector<16x2048xf32>
    %6 = vector.shape_cast %3 : vector<16x2048xf32> to vector<1x16x2048xf32>
    tpu.vector_store %arg3[%c0_4, %c0_5, %c0_6], %6 {strides = array<i32>} : memref<1x16x2048xf32, #tpu.memory_space<vmem>>, vector<1x16x2048xf32>,
    return
  }
  func.func @transform_0(%arg0: i32) -> (i32, i32) {
    %c0_i32 = arith.constant 0 : i32
    %c0_i32_0 = arith.constant 0 : i32
    %c0_i32_1 = arith.constant 0 : i32
    return %c0_i32, %c0_i32_0 : i32, i32
  }
  func.func @transform_1(%arg0: i32) -> (i32, i32, i32) {
    %c0_i32 = arith.constant 0 : i32
    %c0_i32_0 = arith.constant 0 : i32
    %c0_i32_1 = arith.constant 0 : i32
    return %arg0, %c0_i32, %c0_i32_0 : i32, i32, i32
  }
  func.func @transform_2(%arg0: i32) -> (i32, i32, i32) {
    %c0_i32 = arith.constant 0 : i32
    %c0_i32_0 = arith.constant 0 : i32
    %c0_i32_1 = arith.constant 0 : i32
    return %arg0, %c0_i32, %c0_i32_0 : i32, i32, i32
  }
}

module attributes {stable_mosaic.version = 11 : i64} {
  func.func @conv3x3_kernel(%arg0: i32, %arg1: memref<1x10x18x128xbf16, #tpu.memory_space<vmem>>, %arg2: memref<1152x128xbf16, #tpu.memory_space<vmem>>, %arg3: memref<1x128xf32, #tpu.memory_space<vmem>>, %arg4: memref<1x128x128xf32, #tpu.memory_space<vmem>>, %arg5: memref<1x8x128xf32, #tpu.memory_space<vmem>>) attributes {dimension_semantics = [#tpu.dimension_semantics<parallel>], iteration_bounds = array<i64: 4>, scalar_prefetch = 0 : i64, scratch_operands = 0 : i64, tpu.core_type = #tpu.core_type<tc>, window_params = [{transform_indices = @transform_0, window_bounds = array<i64: 1, 10, 18, 128>}, {pipeline_mode = #tpu.pipeline_mode<synchronous>, transform_indices = @transform_1, window_bounds = array<i64: 1152, 128>}, {pipeline_mode = #tpu.pipeline_mode<synchronous>, transform_indices = @transform_2, window_bounds = array<i64: 1, 128>}, {transform_indices = @transform_3, window_bounds = array<i64: 1, 128, 128>}, {transform_indices = @transform_4, window_bounds = array<i64: 1, 8, 128>}]} {
    %c0 = arith.constant 0 : index
    %c0_0 = arith.constant 0 : index
    %c0_1 = arith.constant 0 : index
    %c0_2 = arith.constant 0 : index
    %0 = vector.load %arg1[%c0, %c0_0, %c0_1, %c0_2] : memref<1x10x18x128xbf16, #tpu.memory_space<vmem>>, vector<1x10x18x128xbf16>
    %1 = vector.shape_cast %0 : vector<1x10x18x128xbf16> to vector<10x18x128xbf16>
    %2 = vector.extract_strided_slice %1 {offsets = [0, 0, 0], sizes = [8, 16, 128], strides = [1, 1, 1]} : vector<10x18x128xbf16> to vector<8x16x128xbf16>
    %3 = vector.extract_strided_slice %1 {offsets = [0, 1, 0], sizes = [8, 16, 128], strides = [1, 1, 1]} : vector<10x18x128xbf16> to vector<8x16x128xbf16>
    %4 = vector.extract_strided_slice %1 {offsets = [0, 2, 0], sizes = [8, 16, 128], strides = [1, 1, 1]} : vector<10x18x128xbf16> to vector<8x16x128xbf16>
    %5 = vector.extract_strided_slice %1 {offsets = [1, 0, 0], sizes = [8, 16, 128], strides = [1, 1, 1]} : vector<10x18x128xbf16> to vector<8x16x128xbf16>
    %6 = vector.extract_strided_slice %1 {offsets = [1, 1, 0], sizes = [8, 16, 128], strides = [1, 1, 1]} : vector<10x18x128xbf16> to vector<8x16x128xbf16>
    %7 = vector.extract_strided_slice %1 {offsets = [1, 2, 0], sizes = [8, 16, 128], strides = [1, 1, 1]} : vector<10x18x128xbf16> to vector<8x16x128xbf16>
    %8 = vector.extract_strided_slice %1 {offsets = [2, 0, 0], sizes = [8, 16, 128], strides = [1, 1, 1]} : vector<10x18x128xbf16> to vector<8x16x128xbf16>
    %9 = vector.extract_strided_slice %1 {offsets = [2, 1, 0], sizes = [8, 16, 128], strides = [1, 1, 1]} : vector<10x18x128xbf16> to vector<8x16x128xbf16>
    %10 = vector.extract_strided_slice %1 {offsets = [2, 2, 0], sizes = [8, 16, 128], strides = [1, 1, 1]} : vector<10x18x128xbf16> to vector<8x16x128xbf16>
    %11 = tpu.concatenate %2, %3, %4, %5, %6, %7, %8, %9, %10 in 2 : vector<8x16x128xbf16>, vector<8x16x128xbf16>, vector<8x16x128xbf16>, vector<8x16x128xbf16>, vector<8x16x128xbf16>, vector<8x16x128xbf16>, vector<8x16x128xbf16>, vector<8x16x128xbf16>, vector<8x16x128xbf16> -> vector<8x16x1152xbf16>
    %12 = vector.shape_cast %11 : vector<8x16x1152xbf16> to vector<128x1152xbf16>
    %c0_3 = arith.constant 0 : index
    %c0_4 = arith.constant 0 : index
    %13 = vector.load %arg2[%c0_3, %c0_4] : memref<1152x128xbf16, #tpu.memory_space<vmem>>, vector<1152x128xbf16>
    %cst = arith.constant dense<0.000000e+00> : vector<128x128xf32>
    %14 = tpu.matmul %12, %13, %cst {dimension_numbers = #tpu.dot_dimension_numbers<[1], [0], [0], [1], [0, 0, 1, 1], [], []>} : vector<128x1152xbf16>, vector<1152x128xbf16>, vector<128x128xf32> -> vector<128x128xf32>
    %c0_5 = arith.constant 0 : index
    %c0_6 = arith.constant 0 : index
    %15 = vector.load %arg3[%c0_5, %c0_6] : memref<1x128xf32, #tpu.memory_space<vmem>>, vector<1x128xf32>
    %16 = vector.broadcast %15 : vector<1x128xf32> to vector<128x128xf32>
    %17 = arith.addf %14, %16 : vector<128x128xf32>
    %c0_7 = arith.constant 0 : index
    %c0_8 = arith.constant 0 : index
    %c0_9 = arith.constant 0 : index
    %18 = vector.load %arg4[%c0_7, %c0_8, %c0_9] : memref<1x128x128xf32, #tpu.memory_space<vmem>>, vector<1x128x128xf32>
    %19 = vector.shape_cast %18 : vector<1x128x128xf32> to vector<128x128xf32>
    %20 = vector.shape_cast %17 : vector<128x128xf32> to vector<1x128x128xf32>
    tpu.vector_store %arg4[%c0_7, %c0_8, %c0_9], %20 {strides = array<i32>} : memref<1x128x128xf32, #tpu.memory_space<vmem>>, vector<1x128x128xf32>,
    %cst_10 = arith.constant dense<0.000000e+00> : vector<128xf32>
    %21 = vector.multi_reduction <add>, %17, %cst_10 [0] : vector<128x128xf32> to vector<128xf32>
    %22 = vector.shape_cast %21 : vector<128xf32> to vector<1x128xf32>
    %23 = arith.mulf %17, %17 : vector<128x128xf32>
    %cst_11 = arith.constant dense<0.000000e+00> : vector<128xf32>
    %24 = vector.multi_reduction <add>, %23, %cst_11 [0] : vector<128x128xf32> to vector<128xf32>
    %25 = vector.shape_cast %24 : vector<128xf32> to vector<1x128xf32>
    %cst_12 = arith.constant 0.000000e+00 : f32
    %26 = vector.broadcast %cst_12 : f32 to vector<6x128xf32>
    %27 = tpu.concatenate %22, %25, %26 in 0 : vector<1x128xf32>, vector<1x128xf32>, vector<6x128xf32> -> vector<8x128xf32>
    %c0_13 = arith.constant 0 : index
    %c0_14 = arith.constant 0 : index
    %c0_15 = arith.constant 0 : index
    %28 = vector.load %arg5[%c0_13, %c0_14, %c0_15] : memref<1x8x128xf32, #tpu.memory_space<vmem>>, vector<1x8x128xf32>
    %29 = vector.shape_cast %28 : vector<1x8x128xf32> to vector<8x128xf32>
    %30 = vector.shape_cast %27 : vector<8x128xf32> to vector<1x8x128xf32>
    tpu.vector_store %arg5[%c0_13, %c0_14, %c0_15], %30 {strides = array<i32>} : memref<1x8x128xf32, #tpu.memory_space<vmem>>, vector<1x8x128xf32>,
    return
  }
  func.func @transform_0(%arg0: i32) -> (i32, i32, i32, i32) {
    %c0_i32 = arith.constant 0 : i32
    %c0_i32_0 = arith.constant 0 : i32
    %c0_i32_1 = arith.constant 0 : i32
    %c0_i32_2 = arith.constant 0 : i32
    return %arg0, %c0_i32, %c0_i32_0, %c0_i32_1 : i32, i32, i32, i32
  }
  func.func @transform_1(%arg0: i32) -> (i32, i32) {
    %c0_i32 = arith.constant 0 : i32
    %c0_i32_0 = arith.constant 0 : i32
    %c0_i32_1 = arith.constant 0 : i32
    return %c0_i32, %c0_i32_0 : i32, i32
  }
  func.func @transform_2(%arg0: i32) -> (i32, i32) {
    %c0_i32 = arith.constant 0 : i32
    %c0_i32_0 = arith.constant 0 : i32
    %c0_i32_1 = arith.constant 0 : i32
    return %c0_i32, %c0_i32_0 : i32, i32
  }
  func.func @transform_3(%arg0: i32) -> (i32, i32, i32) {
    %c0_i32 = arith.constant 0 : i32
    %c0_i32_0 = arith.constant 0 : i32
    %c0_i32_1 = arith.constant 0 : i32
    return %arg0, %c0_i32, %c0_i32_0 : i32, i32, i32
  }
  func.func @transform_4(%arg0: i32) -> (i32, i32, i32) {
    %c0_i32 = arith.constant 0 : i32
    %c0_i32_0 = arith.constant 0 : i32
    %c0_i32_1 = arith.constant 0 : i32
    return %arg0, %c0_i32, %c0_i32_0 : i32, i32, i32
  }
}

module attributes {stable_mosaic.version = 11 : i64} {
  func.func @bn_lrelu_kernel(%arg0: i32, %arg1: memref<256x128xf32, #tpu.memory_space<vmem>>, %arg2: memref<1x128xf32, #tpu.memory_space<vmem>>, %arg3: memref<1x128xf32, #tpu.memory_space<vmem>>, %arg4: memref<256x128xf32, #tpu.memory_space<vmem>>) attributes {dimension_semantics = [#tpu.dimension_semantics<parallel>], iteration_bounds = array<i64: 2>, scalar_prefetch = 0 : i64, scratch_operands = 0 : i64, tpu.core_type = #tpu.core_type<tc>, window_params = [{transform_indices = @transform_0, window_bounds = array<i64: 256, 128>}, {pipeline_mode = #tpu.pipeline_mode<synchronous>, transform_indices = @transform_1, window_bounds = array<i64: 1, 128>}, {pipeline_mode = #tpu.pipeline_mode<synchronous>, transform_indices = @transform_2, window_bounds = array<i64: 1, 128>}, {transform_indices = @transform_3, window_bounds = array<i64: 256, 128>}]} {
    %c0 = arith.constant 0 : index
    %c0_0 = arith.constant 0 : index
    %0 = vector.load %arg1[%c0, %c0_0] : memref<256x128xf32, #tpu.memory_space<vmem>>, vector<256x128xf32>
    %c0_1 = arith.constant 0 : index
    %c0_2 = arith.constant 0 : index
    %1 = vector.load %arg2[%c0_1, %c0_2] : memref<1x128xf32, #tpu.memory_space<vmem>>, vector<1x128xf32>
    %2 = vector.broadcast %1 : vector<1x128xf32> to vector<256x128xf32>
    %3 = arith.mulf %0, %2 : vector<256x128xf32>
    %c0_3 = arith.constant 0 : index
    %c0_4 = arith.constant 0 : index
    %4 = vector.load %arg3[%c0_3, %c0_4] : memref<1x128xf32, #tpu.memory_space<vmem>>, vector<1x128xf32>
    %5 = vector.broadcast %4 : vector<1x128xf32> to vector<256x128xf32>
    %6 = arith.addf %3, %5 : vector<256x128xf32>
    %cst = arith.constant 0.000000e+00 : f32
    %7 = vector.broadcast %cst : f32 to vector<256x128xf32>
    %8 = arith.cmpf ogt, %6, %7 : vector<256x128xf32>
    %cst_5 = arith.constant 2.000000e-01 : f32
    %9 = vector.broadcast %cst_5 : f32 to vector<256x128xf32>
    %10 = arith.mulf %9, %6 : vector<256x128xf32>
    %11 = arith.select %8, %6, %10 : vector<256x128xi1>, vector<256x128xf32>
    %c0_6 = arith.constant 0 : index
    %c0_7 = arith.constant 0 : index
    %12 = vector.load %arg4[%c0_6, %c0_7] : memref<256x128xf32, #tpu.memory_space<vmem>>, vector<256x128xf32>
    tpu.vector_store %arg4[%c0_6, %c0_7], %11 {strides = array<i32>} : memref<256x128xf32, #tpu.memory_space<vmem>>, vector<256x128xf32>,
    return
  }
  func.func @transform_0(%arg0: i32) -> (i32, i32) {
    %c0_i32 = arith.constant 0 : i32
    %c0_i32_0 = arith.constant 0 : i32
    return %arg0, %c0_i32 : i32, i32
  }
  func.func @transform_1(%arg0: i32) -> (i32, i32) {
    %c0_i32 = arith.constant 0 : i32
    %c0_i32_0 = arith.constant 0 : i32
    %c0_i32_1 = arith.constant 0 : i32
    return %c0_i32, %c0_i32_0 : i32, i32
  }
  func.func @transform_2(%arg0: i32) -> (i32, i32) {
    %c0_i32 = arith.constant 0 : i32
    %c0_i32_0 = arith.constant 0 : i32
    %c0_i32_1 = arith.constant 0 : i32
    return %c0_i32, %c0_i32_0 : i32, i32
  }
  func.func @transform_3(%arg0: i32) -> (i32, i32) {
    %c0_i32 = arith.constant 0 : i32
    %c0_i32_0 = arith.constant 0 : i32
    return %arg0, %c0_i32 : i32, i32
  }
}

</mosaic_0001>

<llo_original>
// kernel: up_conv_forward.7
$region0: #{up_conv_forward.7}
  #allocation0 [shape = 'u32[]', space=smem, size = 0x4, offset = 0x4, fixed_abs, tag = 'smem constant byte address 0x4 - core index']
  #allocation1 [shape = 'u32[144,128]{1,0:T(1,128)}', space=vmem, size = 0x12000, scoped, tag = 'internal scratch']
  %s0 = inlined_call_operand.vmem [shape: bf16[128,128], index: 0, kind: input, shape index: {}]
  %s1 = inlined_call_operand.vmem [shape: bf16[128,128], index: 1, kind: input, shape index: {}]
  %s2 = inlined_call_operand.vmem [shape: f32[1,128], index: 2, kind: input, shape index: {}]
  %s3 = inlined_call_operand.vmem [shape: f32[128,128], index: 3, kind: output, shape index: {}]
  %s4 = sld [smem:[#allocation0]]
  $region22: #{up_conv_forward.7} parent=0
    _
  %s6 = ssub.s32 1, %s4
  %s7 = scalar_select 0, %s6, %s4
  // Predicated region
  $region2: #{up_conv_forward.7} parent=0 // pred_check
    _
  $region3: #{up_conv_forward.7} parent=0 // pred_check_branch
    %9 = sbr.rel (0) target = $region5
  $region4: #{up_conv_forward.7} parent=0 // pred_region
    _
  $region5: #{up_conv_forward.7} parent=0 // pred_fallthru
    _
  // Predicated region
  $region6: #{up_conv_forward.7} parent=0 // pred_check
    _
  $region7: #{up_conv_forward.7} parent=0 // pred_check_branch
    %11 = sbr.rel (0) target = $region9
  $region8: #{up_conv_forward.7} parent=0 // pred_region
    _
  $region9: #{up_conv_forward.7} parent=0 // pred_fallthru
    _
  // Predicated region
  $region10: #{up_conv_forward.7} parent=0 // pred_check
    _
  $region11: #{up_conv_forward.7} parent=0 // pred_check_branch
    %13 = sbr.rel (0) target = $region13
  $region12: #{up_conv_forward.7} parent=0 // pred_region
    _
  $region13: #{up_conv_forward.7} parent=0 // pred_fallthru
    _
  %v15 = vld [vmem:[%s0] sm:$0xf]
  %v16 = vld [vmem:[%s0 + $0x4] sm:$0xf]
  %v17 = vld [vmem:[%s0 + $0x8] sm:$0xf]
  %v18 = vld [vmem:[%s0 + $0xc] sm:$0xf]
  %v19 = vld [vmem:[%s0 + $0x10] sm:$0xf]
  %v20 = vld [vmem:[%s0 + $0x14] sm:$0xf]
  %v21 = vld [vmem:[%s0 + $0x18] sm:$0xf]
  %v22 = vld [vmem:[%s0 + $0x1c] sm:$0xf]
  %v23 = vld [vmem:[%s0 + $0x20] sm:$0xf]
  %v24 = vld [vmem:[%s0 + $0x24] sm:$0xf]
  %v25 = vld [vmem:[%s0 + $0x28] sm:$0xf]
  %v26 = vld [vmem:[%s0 + $0x2c] sm:$0xf]
  %v27 = vld [vmem:[%s0 + $0x30] sm:$0xf]
  %v28 = vld [vmem:[%s0 + $0x34] sm:$0xf]
  %v29 = vld [vmem:[%s0 + $0x38] sm:$0xf]
  %v30 = vld [vmem:[%s0 + $0x3c] sm:$0xf]
  %v31 = vld [vmem:[%s1] sm:$0xf]
  %v32 = vld [vmem:[%s1 + $0x4] sm:$0xf]
  %v33 = vld [vmem:[%s1 + $0x8] sm:$0xf]
  %v34 = vld [vmem:[%s1 + $0xc] sm:$0xf]
  %v35 = vld [vmem:[%s1 + $0x10] sm:$0xf]
  %v36 = vld [vmem:[%s1 + $0x14] sm:$0xf]
  %v37 = vld [vmem:[%s1 + $0x18] sm:$0xf]
  %v38 = vld [vmem:[%s1 + $0x1c] sm:$0xf]
  %v39 = vld [vmem:[%s1 + $0x20] sm:$0xf]
  %v40 = vld [vmem:[%s1 + $0x24] sm:$0xf]
  %v41 = vld [vmem:[%s1 + $0x28] sm:$0xf]
  %v42 = vld [vmem:[%s1 + $0x2c] sm:$0xf]
  %v43 = vld [vmem:[%s1 + $0x30] sm:$0xf]
  %v44 = vld [vmem:[%s1 + $0x34] sm:$0xf]
  %v45 = vld [vmem:[%s1 + $0x38] sm:$0xf]
  %v46 = vld [vmem:[%s1 + $0x3c] sm:$0xf]
  %v47 = vld [vmem:[%s2] sm:$0x1]
  %v49 = vlaneseq
  %v50 = vshrl.u32 %v49, 7
  %v51 = vsub.s32 0, %v50
  %v52 = vrot.slane %v47, %v51
  %v70 = vunpack.c.l.b16 %v15
  %v71 = vunpack.c.l.b16 %v16
  %v72 = vunpack.c.l.b16 %v17
  %v73 = vunpack.c.l.b16 %v18
  %v74 = vunpack.c.l.b16 %v19
  %v75 = vunpack.c.l.b16 %v20
  %v76 = vunpack.c.l.b16 %v21
  %v77 = vunpack.c.l.b16 %v22
  %v78 = vunpack.c.l.b16 %v23
  %v79 = vunpack.c.l.b16 %v24
  %v80 = vunpack.c.l.b16 %v25
  %v81 = vunpack.c.l.b16 %v26
  %v82 = vunpack.c.l.b16 %v27
  %v83 = vunpack.c.l.b16 %v28
  %v84 = vunpack.c.l.b16 %v29
  %v85 = vunpack.c.l.b16 %v30
  %v86 = vpack.c.b16 %v71, %v70
  %v87 = vpack.c.b16 %v73, %v72
  %v88 = vpack.c.b16 %v75, %v74
  %v89 = vpack.c.b16 %v77, %v76
  %v90 = vpack.c.b16 %v79, %v78
  %v91 = vpack.c.b16 %v81, %v80
  %v92 = vpack.c.b16 %v83, %v82
  %v93 = vpack.c.b16 %v85, %v84
  %v118 = vunpack.c.l.b16 %v31
  %v119 = vunpack.c.l.b16 %v32
  %v120 = vunpack.c.l.b16 %v33
  %v121 = vunpack.c.l.b16 %v34
  %v122 = vunpack.c.l.b16 %v35
  %v123 = vunpack.c.l.b16 %v36
  %v124 = vunpack.c.l.b16 %v37
  %v125 = vunpack.c.l.b16 %v38
  %v126 = vunpack.c.l.b16 %v39
  %v127 = vunpack.c.l.b16 %v40
  %v128 = vunpack.c.l.b16 %v41
  %v129 = vunpack.c.l.b16 %v42
  %v130 = vunpack.c.l.b16 %v43
  %v131 = vunpack.c.l.b16 %v44
  %v132 = vunpack.c.l.b16 %v45
  %v133 = vunpack.c.l.b16 %v46
  %v134 = vpack.c.b16 %v119, %v118
  %v135 = vpack.c.b16 %v121, %v120
  %v136 = vpack.c.b16 %v123, %v122
  %v137 = vpack.c.b16 %v125, %v124
  %v138 = vpack.c.b16 %v127, %v126
  %v139 = vpack.c.b16 %v129, %v128
  %v140 = vpack.c.b16 %v131, %v130
  %v141 = vpack.c.b16 %v133, %v132
  %150 = vmatprep.subr.bf16.mxu0 0
  %151 = vmatpush1.bf16.msra.mxu0 %v134
  %152 = vmatprep.subr.bf16.mxu0 0
  %153 = vmatpush1.bf16.msra.mxu0 %v135
  %154 = vmatprep.subr.bf16.mxu0 0
  %155 = vmatpush1.bf16.msra.mxu0 %v136
  %156 = vmatprep.subr.bf16.mxu0 0
  %157 = vmatpush1.bf16.msra.mxu0 %v137
  %158 = vmatprep.subr.bf16.mxu0 0
  %159 = vmatpush1.bf16.msra.mxu0 %v138
  %160 = vmatprep.subr.bf16.mxu0 0
  %161 = vmatpush1.bf16.msra.mxu0 %v139
  %162 = vmatprep.subr.bf16.mxu0 0
  %163 = vmatpush1.bf16.msra.mxu0 %v140
  %164 = vmatprep.subr.bf16.mxu0 0
  %165 = vmatpush1.bf16.msra.mxu0 %v141
  %166 = vmatprep.subr.bf16.mxu0 0
  %167 = vmatpush1.bf16.msra.mxu0 0
  %168 = vmatprep.subr.bf16.mxu0 0
  %169 = vmatpush1.bf16.msra.mxu0 0
  %170 = vmatprep.subr.bf16.mxu0 0
  %171 = vmatpush1.bf16.msra.mxu0 0
  %172 = vmatprep.subr.bf16.mxu0 0
  %173 = vmatpush1.bf16.msra.mxu0 0
  %174 = vmatprep.subr.bf16.mxu0 0
  %175 = vmatpush1.bf16.msra.mxu0 0
  %176 = vmatprep.subr.bf16.mxu0 0
  %177 = vmatpush1.bf16.msra.mxu0 0
  %178 = vmatprep.subr.bf16.mxu0 0
  %179 = vmatpush1.bf16.msra.mxu0 0
  %180 = vmatprep.subr.bf16.mxu0 0
  %181 = vmatpush1.bf16.msra.mxu0 0
  %182 = vmatprep.mubr.bf16.mxu0 0
  %183 = vmatmul.mubr.bf16.gmra.mrb[0].mxu0 %v86
  %v184 = vpop.f32.mrb[0].mxu0
  %v185 = vadd.f32 %v52, %v184
  %v186 = vpop.f32.mrb[0].mxu0
  %v187 = vpop.f32.mrb[0].mxu0
  %v188 = vadd.f32 %v52, %v187
  %v189 = vpop.f32.mrb[0].mxu0
  %190 = vmatprep.mubr.bf16.mxu0 0
  %191 = vmatmul.mubr.bf16.gmra.mrb[0].mxu0 %v87
  %v192 = vpop.f32.mrb[0].mxu0
  %v193 = vadd.f32 %v52, %v192
  %v194 = vpop.f32.mrb[0].mxu0
  %v195 = vpop.f32.mrb[0].mxu0
  %v196 = vadd.f32 %v52, %v195
  %v197 = vpop.f32.mrb[0].mxu0
  %198 = vmatprep.mubr.bf16.mxu0 0
  %199 = vmatmul.mubr.bf16.gmra.mrb[0].mxu0 %v88
  %v200 = vpop.f32.mrb[0].mxu0
  %v201 = vadd.f32 %v52, %v200
  %v202 = vpop.f32.mrb[0].mxu0
  %v203 = vpop.f32.mrb[0].mxu0
  %v204 = vadd.f32 %v52, %v203
  %v205 = vpop.f32.mrb[0].mxu0
  %206 = vmatprep.mubr.bf16.mxu0 0
  %207 = vmatmul.mubr.bf16.gmra.mrb[0].mxu0 %v89
  %v208 = vpop.f32.mrb[0].mxu0
  %v209 = vadd.f32 %v52, %v208
  %v210 = vpop.f32.mrb[0].mxu0
  %v211 = vpop.f32.mrb[0].mxu0
  %v212 = vadd.f32 %v52, %v211
  %v213 = vpop.f32.mrb[0].mxu0
  %214 = vmatprep.mubr.bf16.mxu0 0
  %215 = vmatmul.mubr.bf16.gmra.mrb[0].mxu0 %v90
  %v216 = vpop.f32.mrb[0].mxu0
  %v217 = vadd.f32 %v52, %v216
  %v218 = vpop.f32.mrb[0].mxu0
  %v219 = vpop.f32.mrb[0].mxu0
  %v220 = vadd.f32 %v52, %v219
  %v221 = vpop.f32.mrb[0].mxu0
  %222 = vmatprep.mubr.bf16.mxu0 0
  %223 = vmatmul.mubr.bf16.gmra.mrb[0].mxu0 %v91
  %v224 = vpop.f32.mrb[0].mxu0
  %v225 = vadd.f32 %v52, %v224
  %v226 = vpop.f32.mrb[0].mxu0
  %v227 = vpop.f32.mrb[0].mxu0
  %v228 = vadd.f32 %v52, %v227
  %v229 = vpop.f32.mrb[0].mxu0
  %230 = vmatprep.mubr.bf16.mxu0 0
  %231 = vmatmul.mubr.bf16.gmra.mrb[0].mxu0 %v92
  %v232 = vpop.f32.mrb[0].mxu0
  %v233 = vadd.f32 %v52, %v232
  %v234 = vpop.f32.mrb[0].mxu0
  %v235 = vpop.f32.mrb[0].mxu0
  %v236 = vadd.f32 %v52, %v235
  %v237 = vpop.f32.mrb[0].mxu0
  %238 = vmatprep.mubr.bf16.mxu0 0
  %239 = vmatmul.mubr.bf16.gmra.mrb[0].mxu0 %v93
  %v240 = vpop.f32.mrb[0].mxu0
  %v241 = vadd.f32 %v52, %v240
  %v242 = vpop.f32.mrb[0].mxu0
  %v243 = vpop.f32.mrb[0].mxu0
  %v244 = vadd.f32 %v52, %v243
  %v245 = vpop.f32.mrb[0].mxu0
  %246 = vdwg.mxu0
  %247 = vst [vmem:[%s3] sm:$0xff] %v185
  %248 = vst [vmem:[%s3 + $0x8] sm:$0xff] %v188
  %249 = vst [vmem:[%s3 + $0x10] sm:$0xff] %v193
  %250 = vst [vmem:[%s3 + $0x18] sm:$0xff] %v196
  %251 = vst [vmem:[%s3 + $0x20] sm:$0xff] %v201
  %252 = vst [vmem:[%s3 + $0x28] sm:$0xff] %v204
  %253 = vst [vmem:[%s3 + $0x30] sm:$0xff] %v209
  %254 = vst [vmem:[%s3 + $0x38] sm:$0xff] %v212
  %255 = vst [vmem:[%s3 + $0x40] sm:$0xff] %v217
  %256 = vst [vmem:[%s3 + $0x48] sm:$0xff] %v220
  %257 = vst [vmem:[%s3 + $0x50] sm:$0xff] %v225
  %258 = vst [vmem:[%s3 + $0x58] sm:$0xff] %v228
  %259 = vst [vmem:[%s3 + $0x60] sm:$0xff] %v233
  %260 = vst [vmem:[%s3 + $0x68] sm:$0xff] %v236
  %261 = vst [vmem:[%s3 + $0x70] sm:$0xff] %v241
  %262 = vst [vmem:[%s3 + $0x78] sm:$0xff] %v244
  // Predicated region
  $region14: #{up_conv_forward.7} parent=0 // pred_check
    _
  $region15: #{up_conv_forward.7} parent=0 // pred_check_branch
    %264 = sbr.rel (0) target = $region17
  $region16: #{up_conv_forward.7} parent=0 // pred_region
    _
  $region17: #{up_conv_forward.7} parent=0 // pred_fallthru
    _
  // Predicated region
  $region18: #{up_conv_forward.7} parent=0 // pred_check
    _
  $region19: #{up_conv_forward.7} parent=0 // pred_check_branch
    %266 = sbr.rel (0) target = $region21
  $region20: #{up_conv_forward.7} parent=0 // pred_region
    _
  $region21: #{up_conv_forward.7} parent=0 // pred_fallthru
    _

// kernel: up_conv_forward.8
$region0: #{up_conv_forward.8}
  #allocation0 [shape = 'u32[]', space=smem, size = 0x4, offset = 0x4, fixed_abs, tag = 'smem constant byte address 0x4 - core index']
  #allocation1 [shape = 'u32[144,128]{1,0:T(1,128)}', space=vmem, size = 0x12000, scoped, tag = 'internal scratch']
  %s0 = inlined_call_operand.vmem [shape: f32[16,8], index: 0, kind: input, shape index: {}]
  %s1 = inlined_call_operand.vmem [shape: f32[2,8,1024], index: 1, kind: input, shape index: {}]
  %s2 = inlined_call_operand.vmem [shape: f32[2,16,1024], index: 2, kind: output, shape index: {}]
  %s3 = sld [smem:[#allocation0]]
  $region41: #{up_conv_forward.8} parent=0
    _
  %s5 = ssub.s32 1, %s3
  %s6 = scalar_select 0, %s5, %s3
  loop: start=0, step=1, limit=4
  $region2: #{up_conv_forward.8} parent=0 // loop_pre_header
    _
  $region3: #{up_conv_forward.8} parent=0 // loop_header
    %s8 = sphi 0, %s12
    %p9 = scmp.ge.s32.totalorder %s8, 4
    %s16 = sphi 0, %s16
    %s18 = sphi 0, %s16
    %s19 = sphi 0, %s18
    %s33 = sphi 0, %s19
    %s39 = sphi 0, %s41
    %s42 = sphi 0, %s39
    %s43 = sphi 0, %s42
    %s59 = sphi 0, %s43
    %s65 = sphi 0, %s67
    %s68 = sphi 0, %s65
    %s69 = sphi 0, %s68
    %s85 = sphi 0, %s69
  $region4: #{up_conv_forward.8} parent=0 // loop_header_branch
    %11 = sbr.rel (%p9) target = $region8
  $region5: #{up_conv_forward.8} parent=0 // loop_body
    %s13 = ssub.s32 %s8, 1
    %s14 = ssub.s32 %s8, 2
    %s15 = sadd.s32 %s8, 1
    %s17 = sadd.s32 %s16, 1
    %p20 = scmp.eq.s32.totalorder %s8, 1
    %p21 = scmp.ne.s32.totalorder %s16, %s18
    %p22 = scmp.eq.s32.totalorder %s8, 0
    %p23 = por %p21, %p22
    %p24 = scmp.ne.s32.totalorder %s16, %s18
    %p25 = scmp.eq.s32.totalorder %s13, 1
    %p26 = por %p24, %p25
    %p27 = scmp.ne.s32.totalorder %s18, %s19
    %p28 = scmp.eq.s32.totalorder %s13, 0
    %p29 = por %p27, %p28
    %p30 = scmp.ne.s32.totalorder %s18, %s19
    %p31 = scmp.eq.s32.totalorder %s14, 1
    %p32 = por %p30, %p31
    %p34 = scmp.ne.s32.totalorder %s19, %s33
    %p35 = scmp.eq.s32.totalorder %s14, 0
    %p36 = por %p34, %p35
    %s37 = ssub.s32 %s8, %s15
    %p38 = scmp.eq.s32.totalorder %s37, 0
    %s40 = sadd.s32 %s39, 1
    %s41 = scalar_select %p38, %s39, %s40
    %p44 = pneg %p38
    %p45 = scmp.eq.s32.totalorder %s8, 1
    %p46 = por %p44, %p45
    %p47 = scmp.ne.s32.totalorder %s39, %s42
    %p48 = scmp.eq.s32.totalorder %s8, 0
    %p49 = por %p47, %p48
    %p50 = scmp.ne.s32.totalorder %s39, %s42
    %p51 = scmp.eq.s32.totalorder %s13, 1
    %p52 = por %p50, %p51
    %p53 = scmp.ne.s32.totalorder %s42, %s43
    %p54 = scmp.eq.s32.totalorder %s13, 0
    %p55 = por %p53, %p54
    %p56 = scmp.ne.s32.totalorder %s42, %s43
    %p57 = scmp.eq.s32.totalorder %s14, 1
    %p58 = por %p56, %p57
    %p60 = scmp.ne.s32.totalorder %s43, %s59
    %p61 = scmp.eq.s32.totalorder %s14, 0
    %p62 = por %p60, %p61
    %s63 = ssub.s32 %s8, %s15
    %p64 = scmp.eq.s32.totalorder %s63, 0
    %s66 = sadd.s32 %s65, 1
    %s67 = scalar_select %p64, %s65, %s66
    %p70 = pneg %p64
    %p71 = scmp.eq.s32.totalorder %s8, 1
    %p72 = por %p70, %p71
    %p73 = scmp.ne.s32.totalorder %s65, %s68
    %p74 = scmp.eq.s32.totalorder %s8, 0
    %p75 = por %p73, %p74
    %p76 = scmp.ne.s32.totalorder %s65, %s68
    %p77 = scmp.eq.s32.totalorder %s13, 1
    %p78 = por %p76, %p77
    %p79 = scmp.ne.s32.totalorder %s68, %s69
    %p80 = scmp.eq.s32.totalorder %s13, 0
    %p81 = por %p79, %p80
    %p82 = scmp.ne.s32.totalorder %s68, %s69
    %p83 = scmp.eq.s32.totalorder %s14, 1
    %p84 = por %p82, %p83
    %p86 = scmp.ne.s32.totalorder %s69, %s85
    %p87 = scmp.eq.s32.totalorder %s14, 0
    %p88 = por %p86, %p87
    %p89 = scmp.le.s32.totalorder 1, %s8
    %p90 = scmp.lt.s32.totalorder %s8, 3
    %p91 = pnand %p89, %p90
    %p92 = pneg %p91
    // Predicated region
    $region9: #{up_conv_forward.8} parent=5 // pred_check
      _
    $region10: #{up_conv_forward.8} parent=5 // pred_check_branch
      %94 = sbr.rel (%p91) target = $region12
    $region11: #{up_conv_forward.8} parent=5 // pred_region
      %s95 = ssub.s32 %s8, 1
      // Predicated region
      $region13: #{up_conv_forward.8} parent=11 // pred_check
        %p96 = pneg %p29
      $region14: #{up_conv_forward.8} parent=11 // pred_check_branch
        %98 = sbr.rel (%p96) target = $region16
      $region15: #{up_conv_forward.8} parent=11 // pred_region
        _
      $region16: #{up_conv_forward.8} parent=11 // pred_fallthru
        _
    $region12: #{up_conv_forward.8} parent=5 // pred_fallthru
      _
    %p99 = scmp.lt.s32.totalorder %s8, 2
    // Predicated region
    $region17: #{up_conv_forward.8} parent=5 // pred_check
      %p100 = pneg %p99
    $region18: #{up_conv_forward.8} parent=5 // pred_check_branch
      %102 = sbr.rel (%p100) target = $region20
    $region19: #{up_conv_forward.8} parent=5 // pred_region
      // Predicated region
      $region21: #{up_conv_forward.8} parent=19 // pred_check
        %p103 = pneg %p49
      $region22: #{up_conv_forward.8} parent=19 // pred_check_branch
        %105 = sbr.rel (%p103) target = $region24
      $region23: #{up_conv_forward.8} parent=19 // pred_region
        %p106 = scmp.lt.s32.totalorder %s8, 1
        %s107 = scalar_select %p106, %s8, 1
        %s108 = smul.addr %s107, 8
        %s109 = smul.addr %s108, 8
        %s110 = scalar_lea.vmem %s1, %s109
      $region24: #{up_conv_forward.8} parent=19 // pred_fallthru
        _
    $region20: #{up_conv_forward.8} parent=5 // pred_fallthru
      _
    %p111 = scmp.le.s32.totalorder 1, %s8
    %p112 = scmp.lt.s32.totalorder %s8, 3
    %p113 = pnand %p111, %p112
    %p114 = pneg %p113
    // Predicated region
    $region25: #{up_conv_forward.8} parent=5 // pred_check
      _
    $region26: #{up_conv_forward.8} parent=5 // pred_check_branch
      %116 = sbr.rel (%p113) target = $region28
    $region27: #{up_conv_forward.8} parent=5 // pred_region
      %s117 = ssub.s32 %s8, 1
      %p118 = pneg %p29
      %p119 = pneg %p26
      %p120 = scmp.lt.s32.totalorder %s13, 1
      %s121 = scalar_select %p120, %s13, 1
      %s122 = smul.addr %s121, 8
      %s123 = smul.addr %s122, 8
      %s124 = scalar_lea.vmem %s1, %s123
      %p125 = pneg %p55
      %p126 = pneg %p52
      %p127 = pneg %p81
      %p128 = pneg %p78
      %p129 = scmp.lt.s32.totalorder %s13, 1
      %s130 = scalar_select %p129, %s13, 1
      %s131 = smul.addr %s130, 16
      %s132 = smul.addr %s131, 8
      %s133 = scalar_lea.vmem %s2, %s132
      %p134 = scmp.lt.s32.totalorder %s13, 1
      %s135 = scalar_select %p134, %s13, 1
      %s136 = smul.addr %s135, 8
      %s137 = smul.addr %s136, 8
      %s138 = scalar_lea.vmem %s1, %s137
      %p139 = scmp.lt.s32.totalorder %s13, 1
      %s140 = scalar_select %p139, %s13, 1
      %s141 = smul.addr %s140, 16
      %s142 = smul.addr %s141, 8
      %s143 = scalar_lea.vmem %s2, %s142
      %v144 = vld [vmem:[%s0] sm:$0xff]
      %v145 = vld [vmem:[%s0 + $0x8] sm:$0xff]
      %v146 = vld [vmem:[%s138] sm:$0xff]
      %v147 = vld [vmem:[%s138 + $0x8] sm:$0xff]
      %v148 = vld [vmem:[%s138 + $0x10] sm:$0xff]
      %v149 = vld [vmem:[%s138 + $0x18] sm:$0xff]
      %v150 = vld [vmem:[%s138 + $0x20] sm:$0xff]
      %v151 = vld [vmem:[%s138 + $0x28] sm:$0xff]
      %v152 = vld [vmem:[%s138 + $0x30] sm:$0xff]
      %v153 = vld [vmem:[%s138 + $0x38] sm:$0xff]
      %vm154 = vcmask 64512
      %v156 = vsel %vm154, %v144, 0
      %v159 = vsel %vm154, %v145, 0
      %161 = vmatprep.subr.mxu0 %v147
      %162 = vmatpush1.msra.mxu0 %v146
      %163 = vmatprep.subr.mxu0 0.0
      %164 = vmatpush1.msra.mxu0 0.0
      %165 = vmatprep.subr.mxu0 0.0
      %166 = vmatpush1.msra.mxu0 0.0
      %167 = vmatprep.subr.mxu0 0.0
      %168 = vmatpush1.msra.mxu0 0.0
      %169 = vmatprep.subr.mxu0 0.0
      %170 = vmatpush1.msra.mxu0 0.0
      %171 = vmatprep.subr.mxu0 0.0
      %172 = vmatpush1.msra.mxu0 0.0
      %173 = vmatprep.subr.mxu0 0.0
      %174 = vmatpush1.msra.mxu0 0.0
      %175 = vmatprep.subr.mxu0 0.0
      %176 = vmatpush1.msra.mxu0 0.0
      %177 = vmatprep.subr.mxu0 0.0
      %178 = vmatpush1.msra.mxu0 0.0
      %179 = vmatprep.subr.mxu0 0.0
      %180 = vmatpush1.msra.mxu0 0.0
      %181 = vmatprep.subr.mxu0 0.0
      %182 = vmatpush1.msra.mxu0 0.0
      %183 = vmatprep.subr.mxu0 0.0
      %184 = vmatpush1.msra.mxu0 0.0
      %185 = vmatprep.subr.mxu0 0.0
      %186 = vmatpush1.msra.mxu0 0.0
      %187 = vmatprep.subr.mxu0 0.0
      %188 = vmatpush1.msra.mxu0 0.0
      %189 = vmatprep.subr.mxu0 0.0
      %190 = vmatpush1.msra.mxu0 0.0
      %191 = vmatprep.subr.mxu0 0.0
      %192 = vmatpush1.msra.mxu0 0.0
      %193 = vmatprep.subr.mxu0 0.0
      %194 = vmatpush1.msra.mxu0 0.0
      %195 = vmatprep.subr.mxu0 0.0
      %196 = vmatpush1.msra.mxu0 0.0
      %197 = vmatprep.subr.mxu0 0.0
      %198 = vmatpush1.msra.mxu0 0.0
      %199 = vmatprep.subr.mxu0 0.0
      %200 = vmatpush1.msra.mxu0 0.0
      %201 = vmatprep.subr.mxu0 0.0
      %202 = vmatpush1.msra.mxu0 0.0
      %203 = vmatprep.subr.mxu0 0.0
      %204 = vmatpush1.msra.mxu0 0.0
      %205 = vmatprep.subr.mxu0 0.0
      %206 = vmatpush1.msra.mxu0 0.0
      %207 = vmatprep.subr.mxu0 0.0
      %208 = vmatpush1.msra.mxu0 0.0
      %209 = vmatprep.subr.mxu0 0.0
      %210 = vmatpush1.msra.mxu0 0.0
      %211 = vmatprep.subr.mxu0 0.0
      %212 = vmatpush1.msra.mxu0 0.0
      %213 = vmatprep.subr.mxu0 0.0
      %214 = vmatpush1.msra.mxu0 0.0
      %215 = vmatprep.subr.mxu0 0.0
      %216 = vmatpush1.msra.mxu0 0.0
      %217 = vmatprep.subr.mxu0 0.0
      %218 = vmatpush1.msra.mxu0 0.0
      %219 = vmatprep.subr.mxu0 0.0
      %220 = vmatpush1.msra.mxu0 0.0
      %221 = vmatprep.subr.mxu0 0.0
      %222 = vmatpush1.msra.mxu0 0.0
      %223 = vmatprep.subr.mxu0 0.0
      %224 = vmatpush1.msra.mxu0 0.0
      %225 = vmatprep.mubr.f32.mxu0 0.0
      %226 = vmatmul.mubr.f32.gmra.mrb[0].mxu0 %v156
      %v227 = vpop.f32.mrb[0].mxu0
      %v228 = vadd.f32 0.0, %v227
      %v229 = vpop.f32.mrb[0].mxu0
      %v230 = vadd.f32 0.0, %v229
      %231 = vmatprep.mubr.f32.mxu0 0.0
      %232 = vmatmul.mubr.f32.gmra.mrb[0].mxu0 %v159
      %v233 = vpop.f32.mrb[0].mxu0
      %v234 = vadd.f32 0.0, %v233
      %v235 = vpop.f32.mrb[0].mxu0
      %v236 = vadd.f32 0.0, %v235
      %237 = vdwg.mxu0
      %238 = vmatprep.subr.mxu0 %v149
      %239 = vmatpush1.msra.mxu0 %v148
      %240 = vmatprep.subr.mxu0 0.0
      %241 = vmatpush1.msra.mxu0 0.0
      %242 = vmatprep.subr.mxu0 0.0
      %243 = vmatpush1.msra.mxu0 0.0
      %244 = vmatprep.subr.mxu0 0.0
      %245 = vmatpush1.msra.mxu0 0.0
      %246 = vmatprep.subr.mxu0 0.0
      %247 = vmatpush1.msra.mxu0 0.0
      %248 = vmatprep.subr.mxu0 0.0
      %249 = vmatpush1.msra.mxu0 0.0
      %250 = vmatprep.subr.mxu0 0.0
      %251 = vmatpush1.msra.mxu0 0.0
      %252 = vmatprep.subr.mxu0 0.0
      %253 = vmatpush1.msra.mxu0 0.0
      %254 = vmatprep.subr.mxu0 0.0
      %255 = vmatpush1.msra.mxu0 0.0
      %256 = vmatprep.subr.mxu0 0.0
      %257 = vmatpush1.msra.mxu0 0.0
      %258 = vmatprep.subr.mxu0 0.0
      %259 = vmatpush1.msra.mxu0 0.0
      %260 = vmatprep.subr.mxu0 0.0
      %261 = vmatpush1.msra.mxu0 0.0
      %262 = vmatprep.subr.mxu0 0.0
      %263 = vmatpush1.msra.mxu0 0.0
      %264 = vmatprep.subr.mxu0 0.0
      %265 = vmatpush1.msra.mxu0 0.0
      %266 = vmatprep.subr.mxu0 0.0
      %267 = vmatpush1.msra.mxu0 0.0
      %268 = vmatprep.subr.mxu0 0.0
      %269 = vmatpush1.msra.mxu0 0.0
      %270 = vmatprep.subr.mxu0 0.0
      %271 = vmatpush1.msra.mxu0 0.0
      %272 = vmatprep.subr.mxu0 0.0
      %273 = vmatpush1.msra.mxu0 0.0
      %274 = vmatprep.subr.mxu0 0.0
      %275 = vmatpush1.msra.mxu0 0.0
      %276 = vmatprep.subr.mxu0 0.0
      %277 = vmatpush1.msra.mxu0 0.0
      %278 = vmatprep.subr.mxu0 0.0
      %279 = vmatpush1.msra.mxu0 0.0
      %280 = vmatprep.subr.mxu0 0.0
      %281 = vmatpush1.msra.mxu0 0.0
      %282 = vmatprep.subr.mxu0 0.0
      %283 = vmatpush1.msra.mxu0 0.0
      %284 = vmatprep.subr.mxu0 0.0
      %285 = vmatpush1.msra.mxu0 0.0
      %286 = vmatprep.subr.mxu0 0.0
      %287 = vmatpush1.msra.mxu0 0.0
      %288 = vmatprep.subr.mxu0 0.0
      %289 = vmatpush1.msra.mxu0 0.0
      %290 = vmatprep.subr.mxu0 0.0
      %291 = vmatpush1.msra.mxu0 0.0
      %292 = vmatprep.subr.mxu0 0.0
      %293 = vmatpush1.msra.mxu0 0.0
      %294 = vmatprep.subr.mxu0 0.0
      %295 = vmatpush1.msra.mxu0 0.0
      %296 = vmatprep.subr.mxu0 0.0
      %297 = vmatpush1.msra.mxu0 0.0
      %298 = vmatprep.subr.mxu0 0.0
      %299 = vmatpush1.msra.mxu0 0.0
      %300 = vmatprep.subr.mxu0 0.0
      %301 = vmatpush1.msra.mxu0 0.0
      %302 = vmatprep.mubr.f32.mxu0 0.0
      %303 = vmatmul.mubr.f32.gmra.mrb[0].mxu0 %v156
      %v304 = vpop.f32.mrb[0].mxu0
      %v305 = vadd.f32 0.0, %v304
      %v306 = vpop.f32.mrb[0].mxu0
      %v307 = vadd.f32 0.0, %v306
      %308 = vmatprep.mubr.f32.mxu0 0.0
      %309 = vmatmul.mubr.f32.gmra.mrb[0].mxu0 %v159
      %v310 = vpop.f32.mrb[0].mxu0
      %v311 = vadd.f32 0.0, %v310
      %v312 = vpop.f32.mrb[0].mxu0
      %v313 = vadd.f32 0.0, %v312
      %314 = vdwg.mxu0
      %315 = vmatprep.subr.mxu0 %v151
      %316 = vmatpush1.msra.mxu0 %v150
      %317 = vmatprep.subr.mxu0 0.0
      %318 = vmatpush1.msra.mxu0 0.0
      %319 = vmatprep.subr.mxu0 0.0
      %320 = vmatpush1.msra.mxu0 0.0
      %321 = vmatprep.subr.mxu0 0.0
      %322 = vmatpush1.msra.mxu0 0.0
      %323 = vmatprep.subr.mxu0 0.0
      %324 = vmatpush1.msra.mxu0 0.0
      %325 = vmatprep.subr.mxu0 0.0
      %326 = vmatpush1.msra.mxu0 0.0
      %327 = vmatprep.subr.mxu0 0.0
      %328 = vmatpush1.msra.mxu0 0.0
      %329 = vmatprep.subr.mxu0 0.0
      %330 = vmatpush1.msra.mxu0 0.0
      %331 = vmatprep.subr.mxu0 0.0
      %332 = vmatpush1.msra.mxu0 0.0
      %333 = vmatprep.subr.mxu0 0.0
      %334 = vmatpush1.msra.mxu0 0.0
      %335 = vmatprep.subr.mxu0 0.0
      %336 = vmatpush1.msra.mxu0 0.0
      %337 = vmatprep.subr.mxu0 0.0
      %338 = vmatpush1.msra.mxu0 0.0
      %339 = vmatprep.subr.mxu0 0.0
      %340 = vmatpush1.msra.mxu0 0.0
      %341 = vmatprep.subr.mxu0 0.0
      %342 = vmatpush1.msra.mxu0 0.0
      %343 = vmatprep.subr.mxu0 0.0
      %344 = vmatpush1.msra.mxu0 0.0
      %345 = vmatprep.subr.mxu0 0.0
      %346 = vmatpush1.msra.mxu0 0.0
      %347 = vmatprep.subr.mxu0 0.0
      %348 = vmatpush1.msra.mxu0 0.0
      %349 = vmatprep.subr.mxu0 0.0
      %350 = vmatpush1.msra.mxu0 0.0
      %351 = vmatprep.subr.mxu0 0.0
      %352 = vmatpush1.msra.mxu0 0.0
      %353 = vmatprep.subr.mxu0 0.0
      %354 = vmatpush1.msra.mxu0 0.0
      %355 = vmatprep.subr.mxu0 0.0
      %356 = vmatpush1.msra.mxu0 0.0
      %357 = vmatprep.subr.mxu0 0.0
      %358 = vmatpush1.msra.mxu0 0.0
      %359 = vmatprep.subr.mxu0 0.0
      %360 = vmatpush1.msra.mxu0 0.0
      %361 = vmatprep.subr.mxu0 0.0
      %362 = vmatpush1.msra.mxu0 0.0
      %363 = vmatprep.subr.mxu0 0.0
      %364 = vmatpush1.msra.mxu0 0.0
      %365 = vmatprep.subr.mxu0 0.0
      %366 = vmatpush1.msra.mxu0 0.0
      %367 = vmatprep.subr.mxu0 0.0
      %368 = vmatpush1.msra.mxu0 0.0
      %369 = vmatprep.subr.mxu0 0.0
      %370 = vmatpush1.msra.mxu0 0.0
      %371 = vmatprep.subr.mxu0 0.0
      %372 = vmatpush1.msra.mxu0 0.0
      %373 = vmatprep.subr.mxu0 0.0
      %374 = vmatpush1.msra.mxu0 0.0
      %375 = vmatprep.subr.mxu0 0.0
      %376 = vmatpush1.msra.mxu0 0.0
      %377 = vmatprep.subr.mxu0 0.0
      %378 = vmatpush1.msra.mxu0 0.0
      %379 = vmatprep.mubr.f32.mxu0 0.0
      %380 = vmatmul.mubr.f32.gmra.mrb[0].mxu0 %v156
      %v381 = vpop.f32.mrb[0].mxu0
      %v382 = vadd.f32 0.0, %v381
      %v383 = vpop.f32.mrb[0].mxu0
      %v384 = vadd.f32 0.0, %v383
      %385 = vmatprep.mubr.f32.mxu0 0.0
      %386 = vmatmul.mubr.f32.gmra.mrb[0].mxu0 %v159
      %v387 = vpop.f32.mrb[0].mxu0
      %v388 = vadd.f32 0.0, %v387
      %v389 = vpop.f32.mrb[0].mxu0
      %v390 = vadd.f32 0.0, %v389
      %391 = vdwg.mxu0
      %392 = vmatprep.subr.mxu0 %v153
      %393 = vmatpush1.msra.mxu0 %v152
      %394 = vmatprep.subr.mxu0 0.0
      %395 = vmatpush1.msra.mxu0 0.0
      %396 = vmatprep.subr.mxu0 0.0
      %397 = vmatpush1.msra.mxu0 0.0
      %398 = vmatprep.subr.mxu0 0.0
      %399 = vmatpush1.msra.mxu0 0.0
      %400 = vmatprep.subr.mxu0 0.0
      %401 = vmatpush1.msra.mxu0 0.0
      %402 = vmatprep.subr.mxu0 0.0
      %403 = vmatpush1.msra.mxu0 0.0
      %404 = vmatprep.subr.mxu0 0.0
      %405 = vmatpush1.msra.mxu0 0.0
      %406 = vmatprep.subr.mxu0 0.0
      %407 = vmatpush1.msra.mxu0 0.0
      %408 = vmatprep.subr.mxu0 0.0
      %409 = vmatpush1.msra.mxu0 0.0
      %410 = vmatprep.subr.mxu0 0.0
      %411 = vmatpush1.msra.mxu0 0.0
      %412 = vmatprep.subr.mxu0 0.0
      %413 = vmatpush1.msra.mxu0 0.0
      %414 = vmatprep.subr.mxu0 0.0
      %415 = vmatpush1.msra.mxu0 0.0
      %416 = vmatprep.subr.mxu0 0.0
      %417 = vmatpush1.msra.mxu0 0.0
      %418 = vmatprep.subr.mxu0 0.0
      %419 = vmatpush1.msra.mxu0 0.0
      %420 = vmatprep.subr.mxu0 0.0
      %421 = vmatpush1.msra.mxu0 0.0
      %422 = vmatprep.subr.mxu0 0.0
      %423 = vmatpush1.msra.mxu0 0.0
      %424 = vmatprep.subr.mxu0 0.0
      %425 = vmatpush1.msra.mxu0 0.0
      %426 = vmatprep.subr.mxu0 0.0
      %427 = vmatpush1.msra.mxu0 0.0
      %428 = vmatprep.subr.mxu0 0.0
      %429 = vmatpush1.msra.mxu0 0.0
      %430 = vmatprep.subr.mxu0 0.0
      %431 = vmatpush1.msra.mxu0 0.0
      %432 = vmatprep.subr.mxu0 0.0
      %433 = vmatpush1.msra.mxu0 0.0
      %434 = vmatprep.subr.mxu0 0.0
      %435 = vmatpush1.msra.mxu0 0.0
      %436 = vmatprep.subr.mxu0 0.0
      %437 = vmatpush1.msra.mxu0 0.0
      %438 = vmatprep.subr.mxu0 0.0
      %439 = vmatpush1.msra.mxu0 0.0
      %440 = vmatprep.subr.mxu0 0.0
      %441 = vmatpush1.msra.mxu0 0.0
      %442 = vmatprep.subr.mxu0 0.0
      %443 = vmatpush1.msra.mxu0 0.0
      %444 = vmatprep.subr.mxu0 0.0
      %445 = vmatpush1.msra.mxu0 0.0
      %446 = vmatprep.subr.mxu0 0.0
      %447 = vmatpush1.msra.mxu0 0.0
      %448 = vmatprep.subr.mxu0 0.0
      %449 = vmatpush1.msra.mxu0 0.0
      %450 = vmatprep.subr.mxu0 0.0
      %451 = vmatpush1.msra.mxu0 0.0
      %452 = vmatprep.subr.mxu0 0.0
      %453 = vmatpush1.msra.mxu0 0.0
      %454 = vmatprep.subr.mxu0 0.0
      %455 = vmatpush1.msra.mxu0 0.0
      %456 = vmatprep.mubr.f32.mxu0 0.0
      %457 = vmatmul.mubr.f32.gmra.mrb[0].mxu0 %v156
      %v458 = vpop.f32.mrb[0].mxu0
      %v459 = vadd.f32 0.0, %v458
      %v460 = vpop.f32.mrb[0].mxu0
      %v461 = vadd.f32 0.0, %v460
      %462 = vmatprep.mubr.f32.mxu0 0.0
      %463 = vmatmul.mubr.f32.gmra.mrb[0].mxu0 %v159
      %v464 = vpop.f32.mrb[0].mxu0
      %v465 = vadd.f32 0.0, %v464
      %v466 = vpop.f32.mrb[0].mxu0
      %v467 = vadd.f32 0.0, %v466
      %468 = vdwg.mxu0
      %469 = vst [vmem:[%s143] sm:$0xff] %v228
      %470 = vst [vmem:[%s143 + $0x8] sm:$0xff] %v230
      %471 = vst [vmem:[%s143 + $0x10] sm:$0xff] %v305
      %472 = vst [vmem:[%s143 + $0x18] sm:$0xff] %v307
      %473 = vst [vmem:[%s143 + $0x20] sm:$0xff] %v382
      %474 = vst [vmem:[%s143 + $0x28] sm:$0xff] %v384
      %475 = vst [vmem:[%s143 + $0x30] sm:$0xff] %v459
      %476 = vst [vmem:[%s143 + $0x38] sm:$0xff] %v461
      %477 = vst [vmem:[%s143 + $0x40] sm:$0xff] %v234
      %478 = vst [vmem:[%s143 + $0x48] sm:$0xff] %v236
      %479 = vst [vmem:[%s143 + $0x50] sm:$0xff] %v311
      %480 = vst [vmem:[%s143 + $0x58] sm:$0xff] %v313
      %481 = vst [vmem:[%s143 + $0x60] sm:$0xff] %v388
      %482 = vst [vmem:[%s143 + $0x68] sm:$0xff] %v390
      %483 = vst [vmem:[%s143 + $0x70] sm:$0xff] %v465
      %484 = vst [vmem:[%s143 + $0x78] sm:$0xff] %v467
      %p485 = scmp.lt.s32.totalorder %s13, 1
      %s486 = scalar_select %p485, %s13, 1
      %s487 = smul.addr %s486, 16
      %s488 = smul.addr %s487, 8
      %s489 = scalar_lea.vmem %s2, %s488
      // Predicated region
      $region29: #{up_conv_forward.8} parent=27 // pred_check
        %p490 = pneg %p78
      $region30: #{up_conv_forward.8} parent=27 // pred_check_branch
        %492 = sbr.rel (%p490) target = $region32
      $region31: #{up_conv_forward.8} parent=27 // pred_region
        _
      $region32: #{up_conv_forward.8} parent=27 // pred_fallthru
        _
    $region28: #{up_conv_forward.8} parent=5 // pred_fallthru
      _
    %p493 = scmp.le.s32.totalorder 2, %s8
    // Predicated region
    $region33: #{up_conv_forward.8} parent=5 // pred_check
      %p494 = pneg %p493
    $region34: #{up_conv_forward.8} parent=5 // pred_check_branch
      %496 = sbr.rel (%p494) target = $region36
    $region35: #{up_conv_forward.8} parent=5 // pred_region
      %s497 = ssub.s32 %s8, 2
      // Predicated region
      $region37: #{up_conv_forward.8} parent=35 // pred_check
        %p498 = pneg %p84
      $region38: #{up_conv_forward.8} parent=35 // pred_check_branch
        %500 = sbr.rel (%p498) target = $region40
      $region39: #{up_conv_forward.8} parent=35 // pred_region
        %p501 = scmp.lt.s32.totalorder %s14, 1
        %s502 = scalar_select %p501, %s14, 1
        %s503 = smul.addr %s502, 16
        %s504 = smul.addr %s503, 8
        %s505 = scalar_lea.vmem %s2, %s504
      $region40: #{up_conv_forward.8} parent=35 // pred_fallthru
        _
    $region36: #{up_conv_forward.8} parent=5 // pred_fallthru
      _
  $region6: #{up_conv_forward.8} parent=0 // loop_footer
    %s12 = sadd.s32 1, %s8
  $region7: #{up_conv_forward.8} parent=0 // loop_footer_branch
    %7 = sbr.rel target = $region3
  $region8: #{up_conv_forward.8} parent=0 // loop_exit
    _

// kernel: up_conv_forward.9
$region0: #{up_conv_forward.9}
  #allocation0 [shape = 'u32[]', space=smem, size = 0x4, offset = 0x4, fixed_abs, tag = 'smem constant byte address 0x4 - core index']
  #allocation1 [shape = 'u32[144,128]{1,0:T(1,128)}', space=vmem, size = 0x12000, scoped, tag = 'internal scratch']
  %s0 = inlined_call_operand.vmem [shape: f32[16,8], index: 0, kind: input, shape index: {}]
  %s1 = inlined_call_operand.vmem [shape: f32[2,8,2048], index: 1, kind: input, shape index: {}]
  %s2 = inlined_call_operand.vmem [shape: f32[2,16,2048], index: 2, kind: output, shape index: {}]
  %s3 = sld [smem:[#allocation0]]
  $region41: #{up_conv_forward.9} parent=0
    _
  %s5 = ssub.s32 1, %s3
  %s6 = scalar_select 0, %s5, %s3
  loop: start=0, step=1, limit=4
  $region2: #{up_conv_forward.9} parent=0 // loop_pre_header
    _
  $region3: #{up_conv_forward.9} parent=0 // loop_header
    %s8 = sphi 0, %s12
    %p9 = scmp.ge.s32.totalorder %s8, 4
    %s16 = sphi 0, %s16
    %s18 = sphi 0, %s16
    %s19 = sphi 0, %s18
    %s33 = sphi 0, %s19
    %s39 = sphi 0, %s41
    %s42 = sphi 0, %s39
    %s43 = sphi 0, %s42
    %s59 = sphi 0, %s43
    %s65 = sphi 0, %s67
    %s68 = sphi 0, %s65
    %s69 = sphi 0, %s68
    %s85 = sphi 0, %s69
  $region4: #{up_conv_forward.9} parent=0 // loop_header_branch
    %11 = sbr.rel (%p9) target = $region8
  $region5: #{up_conv_forward.9} parent=0 // loop_body
    %s13 = ssub.s32 %s8, 1
    %s14 = ssub.s32 %s8, 2
    %s15 = sadd.s32 %s8, 1
    %s17 = sadd.s32 %s16, 1
    %p20 = scmp.eq.s32.totalorder %s8, 1
    %p21 = scmp.ne.s32.totalorder %s16, %s18
    %p22 = scmp.eq.s32.totalorder %s8, 0
    %p23 = por %p21, %p22
    %p24 = scmp.ne.s32.totalorder %s16, %s18
    %p25 = scmp.eq.s32.totalorder %s13, 1
    %p26 = por %p24, %p25
    %p27 = scmp.ne.s32.totalorder %s18, %s19
    %p28 = scmp.eq.s32.totalorder %s13, 0
    %p29 = por %p27, %p28
    %p30 = scmp.ne.s32.totalorder %s18, %s19
    %p31 = scmp.eq.s32.totalorder %s14, 1
    %p32 = por %p30, %p31
    %p34 = scmp.ne.s32.totalorder %s19, %s33
    %p35 = scmp.eq.s32.totalorder %s14, 0
    %p36 = por %p34, %p35
    %s37 = ssub.s32 %s8, %s15
    %p38 = scmp.eq.s32.totalorder %s37, 0
    %s40 = sadd.s32 %s39, 1
    %s41 = scalar_select %p38, %s39, %s40
    %p44 = pneg %p38
    %p45 = scmp.eq.s32.totalorder %s8, 1
    %p46 = por %p44, %p45
    %p47 = scmp.ne.s32.totalorder %s39, %s42
    %p48 = scmp.eq.s32.totalorder %s8, 0
    %p49 = por %p47, %p48
    %p50 = scmp.ne.s32.totalorder %s39, %s42
    %p51 = scmp.eq.s32.totalorder %s13, 1
    %p52 = por %p50, %p51
    %p53 = scmp.ne.s32.totalorder %s42, %s43
    %p54 = scmp.eq.s32.totalorder %s13, 0
    %p55 = por %p53, %p54
    %p56 = scmp.ne.s32.totalorder %s42, %s43
    %p57 = scmp.eq.s32.totalorder %s14, 1
    %p58 = por %p56, %p57
    %p60 = scmp.ne.s32.totalorder %s43, %s59
    %p61 = scmp.eq.s32.totalorder %s14, 0
    %p62 = por %p60, %p61
    %s63 = ssub.s32 %s8, %s15
    %p64 = scmp.eq.s32.totalorder %s63, 0
    %s66 = sadd.s32 %s65, 1
    %s67 = scalar_select %p64, %s65, %s66
    %p70 = pneg %p64
    %p71 = scmp.eq.s32.totalorder %s8, 1
    %p72 = por %p70, %p71
    %p73 = scmp.ne.s32.totalorder %s65, %s68
    %p74 = scmp.eq.s32.totalorder %s8, 0
    %p75 = por %p73, %p74
    %p76 = scmp.ne.s32.totalorder %s65, %s68
    %p77 = scmp.eq.s32.totalorder %s13, 1
    %p78 = por %p76, %p77
    %p79 = scmp.ne.s32.totalorder %s68, %s69
    %p80 = scmp.eq.s32.totalorder %s13, 0
    %p81 = por %p79, %p80
    %p82 = scmp.ne.s32.totalorder %s68, %s69
    %p83 = scmp.eq.s32.totalorder %s14, 1
    %p84 = por %p82, %p83
    %p86 = scmp.ne.s32.totalorder %s69, %s85
    %p87 = scmp.eq.s32.totalorder %s14, 0
    %p88 = por %p86, %p87
    %p89 = scmp.le.s32.totalorder 1, %s8
    %p90 = scmp.lt.s32.totalorder %s8, 3
    %p91 = pnand %p89, %p90
    %p92 = pneg %p91
    // Predicated region
    $region9: #{up_conv_forward.9} parent=5 // pred_check
      _
    $region10: #{up_conv_forward.9} parent=5 // pred_check_branch
      %94 = sbr.rel (%p91) target = $region12
    $region11: #{up_conv_forward.9} parent=5 // pred_region
      %s95 = ssub.s32 %s8, 1
      // Predicated region
      $region13: #{up_conv_forward.9} parent=11 // pred_check
        %p96 = pneg %p29
      $region14: #{up_conv_forward.9} parent=11 // pred_check_branch
        %98 = sbr.rel (%p96) target = $region16
      $region15: #{up_conv_forward.9} parent=11 // pred_region
        _
      $region16: #{up_conv_forward.9} parent=11 // pred_fallthru
        _
    $region12: #{up_conv_forward.9} parent=5 // pred_fallthru
      _
    %p99 = scmp.lt.s32.totalorder %s8, 2
    // Predicated region
    $region17: #{up_conv_forward.9} parent=5 // pred_check
      %p100 = pneg %p99
    $region18: #{up_conv_forward.9} parent=5 // pred_check_branch
      %102 = sbr.rel (%p100) target = $region20
    $region19: #{up_conv_forward.9} parent=5 // pred_region
      // Predicated region
      $region21: #{up_conv_forward.9} parent=19 // pred_check
        %p103 = pneg %p49
      $region22: #{up_conv_forward.9} parent=19 // pred_check_branch
        %105 = sbr.rel (%p103) target = $region24
      $region23: #{up_conv_forward.9} parent=19 // pred_region
        %p106 = scmp.lt.s32.totalorder %s8, 1
        %s107 = scalar_select %p106, %s8, 1
        %s108 = smul.addr %s107, 16
        %s109 = smul.addr %s108, 8
        %s110 = scalar_lea.vmem %s1, %s109
      $region24: #{up_conv_forward.9} parent=19 // pred_fallthru
        _
    $region20: #{up_conv_forward.9} parent=5 // pred_fallthru
      _
    %p111 = scmp.le.s32.totalorder 1, %s8
    %p112 = scmp.lt.s32.totalorder %s8, 3
    %p113 = pnand %p111, %p112
    %p114 = pneg %p113
    // Predicated region
    $region25: #{up_conv_forward.9} parent=5 // pred_check
      _
    $region26: #{up_conv_forward.9} parent=5 // pred_check_branch
      %116 = sbr.rel (%p113) target = $region28
    $region27: #{up_conv_forward.9} parent=5 // pred_region
      %s117 = ssub.s32 %s8, 1
      %p118 = pneg %p29
      %p119 = pneg %p26
      %p120 = scmp.lt.s32.totalorder %s13, 1
      %s121 = scalar_select %p120, %s13, 1
      %s122 = smul.addr %s121, 16
      %s123 = smul.addr %s122, 8
      %s124 = scalar_lea.vmem %s1, %s123
      %p125 = pneg %p55
      %p126 = pneg %p52
      %p127 = pneg %p81
      %p128 = pneg %p78
      %p129 = scmp.lt.s32.totalorder %s13, 1
      %s130 = scalar_select %p129, %s13, 1
      %s131 = smul.addr %s130, 32
      %s132 = smul.addr %s131, 8
      %s133 = scalar_lea.vmem %s2, %s132
      %p134 = scmp.lt.s32.totalorder %s13, 1
      %s135 = scalar_select %p134, %s13, 1
      %s136 = smul.addr %s135, 16
      %s137 = smul.addr %s136, 8
      %s138 = scalar_lea.vmem %s1, %s137
      %p139 = scmp.lt.s32.totalorder %s13, 1
      %s140 = scalar_select %p139, %s13, 1
      %s141 = smul.addr %s140, 32
      %s142 = smul.addr %s141, 8
      %s143 = scalar_lea.vmem %s2, %s142
      %v144 = vld [vmem:[%s0] sm:$0xff]
      %v145 = vld [vmem:[%s0 + $0x8] sm:$0xff]
      %v146 = vld [vmem:[%s138] sm:$0xff]
      %v147 = vld [vmem:[%s138 + $0x8] sm:$0xff]
      %v148 = vld [vmem:[%s138 + $0x10] sm:$0xff]
      %v149 = vld [vmem:[%s138 + $0x18] sm:$0xff]
      %v150 = vld [vmem:[%s138 + $0x20] sm:$0xff]
      %v151 = vld [vmem:[%s138 + $0x28] sm:$0xff]
      %v152 = vld [vmem:[%s138 + $0x30] sm:$0xff]
      %v153 = vld [vmem:[%s138 + $0x38] sm:$0xff]
      %v154 = vld [vmem:[%s138 + $0x40] sm:$0xff]
      %v155 = vld [vmem:[%s138 + $0x48] sm:$0xff]
      %v156 = vld [vmem:[%s138 + $0x50] sm:$0xff]
      %v157 = vld [vmem:[%s138 + $0x58] sm:$0xff]
      %v158 = vld [vmem:[%s138 + $0x60] sm:$0xff]
      %v159 = vld [vmem:[%s138 + $0x68] sm:$0xff]
      %v160 = vld [vmem:[%s138 + $0x70] sm:$0xff]
      %v161 = vld [vmem:[%s138 + $0x78] sm:$0xff]
      %vm162 = vcmask 64512
      %v164 = vsel %vm162, %v144, 0
      %v167 = vsel %vm162, %v145, 0
      %169 = vmatprep.subr.mxu0 %v147
      %170 = vmatpush1.msra.mxu0 %v146
      %171 = vmatprep.subr.mxu0 0.0
      %172 = vmatpush1.msra.mxu0 0.0
      %173 = vmatprep.subr.mxu0 0.0
      %174 = vmatpush1.msra.mxu0 0.0
      %175 = vmatprep.subr.mxu0 0.0
      %176 = vmatpush1.msra.mxu0 0.0
      %177 = vmatprep.subr.mxu0 0.0
      %178 = vmatpush1.msra.mxu0 0.0
      %179 = vmatprep.subr.mxu0 0.0
      %180 = vmatpush1.msra.mxu0 0.0
      %181 = vmatprep.subr.mxu0 0.0
      %182 = vmatpush1.msra.mxu0 0.0
      %183 = vmatprep.subr.mxu0 0.0
      %184 = vmatpush1.msra.mxu0 0.0
      %185 = vmatprep.subr.mxu0 0.0
      %186 = vmatpush1.msra.mxu0 0.0
      %187 = vmatprep.subr.mxu0 0.0
      %188 = vmatpush1.msra.mxu0 0.0
      %189 = vmatprep.subr.mxu0 0.0
      %190 = vmatpush1.msra.mxu0 0.0
      %191 = vmatprep.subr.mxu0 0.0
      %192 = vmatpush1.msra.mxu0 0.0
      %193 = vmatprep.subr.mxu0 0.0
      %194 = vmatpush1.msra.mxu0 0.0
      %195 = vmatprep.subr.mxu0 0.0
      %196 = vmatpush1.msra.mxu0 0.0
      %197 = vmatprep.subr.mxu0 0.0
      %198 = vmatpush1.msra.mxu0 0.0
      %199 = vmatprep.subr.mxu0 0.0
      %200 = vmatpush1.msra.mxu0 0.0
      %201 = vmatprep.subr.mxu0 0.0
      %202 = vmatpush1.msra.mxu0 0.0
      %203 = vmatprep.subr.mxu0 0.0
      %204 = vmatpush1.msra.mxu0 0.0
      %205 = vmatprep.subr.mxu0 0.0
      %206 = vmatpush1.msra.mxu0 0.0
      %207 = vmatprep.subr.mxu0 0.0
      %208 = vmatpush1.msra.mxu0 0.0
      %209 = vmatprep.subr.mxu0 0.0
      %210 = vmatpush1.msra.mxu0 0.0
      %211 = vmatprep.subr.mxu0 0.0
      %212 = vmatpush1.msra.mxu0 0.0
      %213 = vmatprep.subr.mxu0 0.0
      %214 = vmatpush1.msra.mxu0 0.0
      %215 = vmatprep.subr.mxu0 0.0
      %216 = vmatpush1.msra.mxu0 0.0
      %217 = vmatprep.subr.mxu0 0.0
      %218 = vmatpush1.msra.mxu0 0.0
      %219 = vmatprep.subr.mxu0 0.0
      %220 = vmatpush1.msra.mxu0 0.0
      %221 = vmatprep.subr.mxu0 0.0
      %222 = vmatpush1.msra.mxu0 0.0
      %223 = vmatprep.subr.mxu0 0.0
      %224 = vmatpush1.msra.mxu0 0.0
      %225 = vmatprep.subr.mxu0 0.0
      %226 = vmatpush1.msra.mxu0 0.0
      %227 = vmatprep.subr.mxu0 0.0
      %228 = vmatpush1.msra.mxu0 0.0
      %229 = vmatprep.subr.mxu0 0.0
      %230 = vmatpush1.msra.mxu0 0.0
      %231 = vmatprep.subr.mxu0 0.0
      %232 = vmatpush1.msra.mxu0 0.0
      %233 = vmatprep.mubr.f32.mxu0 0.0
      %234 = vmatmul.mubr.f32.gmra.mrb[0].mxu0 %v164
      %v235 = vpop.f32.mrb[0].mxu0
      %v236 = vadd.f32 0.0, %v235
      %v237 = vpop.f32.mrb[0].mxu0
      %v238 = vadd.f32 0.0, %v237
      %239 = vmatprep.mubr.f32.mxu0 0.0
      %240 = vmatmul.mubr.f32.gmra.mrb[0].mxu0 %v167
      %v241 = vpop.f32.mrb[0].mxu0
      %v242 = vadd.f32 0.0, %v241
      %v243 = vpop.f32.mrb[0].mxu0
      %v244 = vadd.f32 0.0, %v243
      %245 = vdwg.mxu0
      %246 = vmatprep.subr.mxu0 %v149
      %247 = vmatpush1.msra.mxu0 %v148
      %248 = vmatprep.subr.mxu0 0.0
      %249 = vmatpush1.msra.mxu0 0.0
      %250 = vmatprep.subr.mxu0 0.0
      %251 = vmatpush1.msra.mxu0 0.0
      %252 = vmatprep.subr.mxu0 0.0
      %253 = vmatpush1.msra.mxu0 0.0
      %254 = vmatprep.subr.mxu0 0.0
      %255 = vmatpush1.msra.mxu0 0.0
      %256 = vmatprep.subr.mxu0 0.0
      %257 = vmatpush1.msra.mxu0 0.0
      %258 = vmatprep.subr.mxu0 0.0
      %259 = vmatpush1.msra.mxu0 0.0
      %260 = vmatprep.subr.mxu0 0.0
      %261 = vmatpush1.msra.mxu0 0.0
      %262 = vmatprep.subr.mxu0 0.0
      %263 = vmatpush1.msra.mxu0 0.0
      %264 = vmatprep.subr.mxu0 0.0
      %265 = vmatpush1.msra.mxu0 0.0
      %266 = vmatprep.subr.mxu0 0.0
      %267 = vmatpush1.msra.mxu0 0.0
      %268 = vmatprep.subr.mxu0 0.0
      %269 = vmatpush1.msra.mxu0 0.0
      %270 = vmatprep.subr.mxu0 0.0
      %271 = vmatpush1.msra.mxu0 0.0
      %272 = vmatprep.subr.mxu0 0.0
      %273 = vmatpush1.msra.mxu0 0.0
      %274 = vmatprep.subr.mxu0 0.0
      %275 = vmatpush1.msra.mxu0 0.0
      %276 = vmatprep.subr.mxu0 0.0
      %277 = vmatpush1.msra.mxu0 0.0
      %278 = vmatprep.subr.mxu0 0.0
      %279 = vmatpush1.msra.mxu0 0.0
      %280 = vmatprep.subr.mxu0 0.0
      %281 = vmatpush1.msra.mxu0 0.0
      %282 = vmatprep.subr.mxu0 0.0
      %283 = vmatpush1.msra.mxu0 0.0
      %284 = vmatprep.subr.mxu0 0.0
      %285 = vmatpush1.msra.mxu0 0.0
      %286 = vmatprep.subr.mxu0 0.0
      %287 = vmatpush1.msra.mxu0 0.0
      %288 = vmatprep.subr.mxu0 0.0
      %289 = vmatpush1.msra.mxu0 0.0
      %290 = vmatprep.subr.mxu0 0.0
      %291 = vmatpush1.msra.mxu0 0.0
      %292 = vmatprep.subr.mxu0 0.0
      %293 = vmatpush1.msra.mxu0 0.0
      %294 = vmatprep.subr.mxu0 0.0
      %295 = vmatpush1.msra.mxu0 0.0
      %296 = vmatprep.subr.mxu0 0.0
      %297 = vmatpush1.msra.mxu0 0.0
      %298 = vmatprep.subr.mxu0 0.0
      %299 = vmatpush1.msra.mxu0 0.0
      %300 = vmatprep.subr.mxu0 0.0
      %301 = vmatpush1.msra.mxu0 0.0
      %302 = vmatprep.subr.mxu0 0.0
      %303 = vmatpush1.msra.mxu0 0.0
      %304 = vmatprep.subr.mxu0 0.0
      %305 = vmatpush1.msra.mxu0 0.0
      %306 = vmatprep.subr.mxu0 0.0
      %307 = vmatpush1.msra.mxu0 0.0
      %308 = vmatprep.subr.mxu0 0.0
      %309 = vmatpush1.msra.mxu0 0.0
      %310 = vmatprep.mubr.f32.mxu0 0.0
      %311 = vmatmul.mubr.f32.gmra.mrb[0].mxu0 %v164
      %v312 = vpop.f32.mrb[0].mxu0
      %v313 = vadd.f32 0.0, %v312
      %v314 = vpop.f32.mrb[0].mxu0
      %v315 = vadd.f32 0.0, %v314
      %316 = vmatprep.mubr.f32.mxu0 0.0
      %317 = vmatmul.mubr.f32.gmra.mrb[0].mxu0 %v167
      %v318 = vpop.f32.mrb[0].mxu0
      %v319 = vadd.f32 0.0, %v318
      %v320 = vpop.f32.mrb[0].mxu0
      %v321 = vadd.f32 0.0, %v320
      %322 = vdwg.mxu0
      %323 = vmatprep.subr.mxu0 %v151
      %324 = vmatpush1.msra.mxu0 %v150
      %325 = vmatprep.subr.mxu0 0.0
      %326 = vmatpush1.msra.mxu0 0.0
      %327 = vmatprep.subr.mxu0 0.0
      %328 = vmatpush1.msra.mxu0 0.0
      %329 = vmatprep.subr.mxu0 0.0
      %330 = vmatpush1.msra.mxu0 0.0
      %331 = vmatprep.subr.mxu0 0.0
      %332 = vmatpush1.msra.mxu0 0.0
      %333 = vmatprep.subr.mxu0 0.0
      %334 = vmatpush1.msra.mxu0 0.0
      %335 = vmatprep.subr.mxu0 0.0
      %336 = vmatpush1.msra.mxu0 0.0
      %337 = vmatprep.subr.mxu0 0.0
      %338 = vmatpush1.msra.mxu0 0.0
      %339 = vmatprep.subr.mxu0 0.0
      %340 = vmatpush1.msra.mxu0 0.0
      %341 = vmatprep.subr.mxu0 0.0
      %342 = vmatpush1.msra.mxu0 0.0
      %343 = vmatprep.subr.mxu0 0.0
      %344 = vmatpush1.msra.mxu0 0.0
      %345 = vmatprep.subr.mxu0 0.0
      %346 = vmatpush1.msra.mxu0 0.0
      %347 = vmatprep.subr.mxu0 0.0
      %348 = vmatpush1.msra.mxu0 0.0
      %349 = vmatprep.subr.mxu0 0.0
      %350 = vmatpush1.msra.mxu0 0.0
      %351 = vmatprep.subr.mxu0 0.0
      %352 = vmatpush1.msra.mxu0 0.0
      %353 = vmatprep.subr.mxu0 0.0
      %354 = vmatpush1.msra.mxu0 0.0
      %355 = vmatprep.subr.mxu0 0.0
      %356 = vmatpush1.msra.mxu0 0.0
      %357 = vmatprep.subr.mxu0 0.0
      %358 = vmatpush1.msra.mxu0 0.0
      %359 = vmatprep.subr.mxu0 0.0
      %360 = vmatpush1.msra.mxu0 0.0
      %361 = vmatprep.subr.mxu0 0.0
      %362 = vmatpush1.msra.mxu0 0.0
      %363 = vmatprep.subr.mxu0 0.0
      %364 = vmatpush1.msra.mxu0 0.0
      %365 = vmatprep.subr.mxu0 0.0
      %366 = vmatpush1.msra.mxu0 0.0
      %367 = vmatprep.subr.mxu0 0.0
      %368 = vmatpush1.msra.mxu0 0.0
      %369 = vmatprep.subr.mxu0 0.0
      %370 = vmatpush1.msra.mxu0 0.0
      %371 = vmatprep.subr.mxu0 0.0
      %372 = vmatpush1.msra.mxu0 0.0
      %373 = vmatprep.subr.mxu0 0.0
      %374 = vmatpush1.msra.mxu0 0.0
      %375 = vmatprep.subr.mxu0 0.0
      %376 = vmatpush1.msra.mxu0 0.0
      %377 = vmatprep.subr.mxu0 0.0
      %378 = vmatpush1.msra.mxu0 0.0
      %379 = vmatprep.subr.mxu0 0.0
      %380 = vmatpush1.msra.mxu0 0.0
      %381 = vmatprep.subr.mxu0 0.0
      %382 = vmatpush1.msra.mxu0 0.0
      %383 = vmatprep.subr.mxu0 0.0
      %384 = vmatpush1.msra.mxu0 0.0
      %385 = vmatprep.subr.mxu0 0.0
      %386 = vmatpush1.msra.mxu0 0.0
      %387 = vmatprep.mubr.f32.mxu0 0.0
      %388 = vmatmul.mubr.f32.gmra.mrb[0].mxu0 %v164
      %v389 = vpop.f32.mrb[0].mxu0
      %v390 = vadd.f32 0.0, %v389
      %v391 = vpop.f32.mrb[0].mxu0
      %v392 = vadd.f32 0.0, %v391
      %393 = vmatprep.mubr.f32.mxu0 0.0
      %394 = vmatmul.mubr.f32.gmra.mrb[0].mxu0 %v167
      %v395 = vpop.f32.mrb[0].mxu0
      %v396 = vadd.f32 0.0, %v395
      %v397 = vpop.f32.mrb[0].mxu0
      %v398 = vadd.f32 0.0, %v397
      %399 = vdwg.mxu0
      %400 = vmatprep.subr.mxu0 %v153
      %401 = vmatpush1.msra.mxu0 %v152
      %402 = vmatprep.subr.mxu0 0.0
      %403 = vmatpush1.msra.mxu0 0.0
      %404 = vmatprep.subr.mxu0 0.0
      %405 = vmatpush1.msra.mxu0 0.0
      %406 = vmatprep.subr.mxu0 0.0
      %407 = vmatpush1.msra.mxu0 0.0
      %408 = vmatprep.subr.mxu0 0.0
      %409 = vmatpush1.msra.mxu0 0.0
      %410 = vmatprep.subr.mxu0 0.0
      %411 = vmatpush1.msra.mxu0 0.0
      %412 = vmatprep.subr.mxu0 0.0
      %413 = vmatpush1.msra.mxu0 0.0
      %414 = vmatprep.subr.mxu0 0.0
      %415 = vmatpush1.msra.mxu0 0.0
      %416 = vmatprep.subr.mxu0 0.0
      %417 = vmatpush1.msra.mxu0 0.0
      %418 = vmatprep.subr.mxu0 0.0
      %419 = vmatpush1.msra.mxu0 0.0
      %420 = vmatprep.subr.mxu0 0.0
      %421 = vmatpush1.msra.mxu0 0.0
      %422 = vmatprep.subr.mxu0 0.0
      %423 = vmatpush1.msra.mxu0 0.0
      %424 = vmatprep.subr.mxu0 0.0
      %425 = vmatpush1.msra.mxu0 0.0
      %426 = vmatprep.subr.mxu0 0.0
      %427 = vmatpush1.msra.mxu0 0.0
      %428 = vmatprep.subr.mxu0 0.0
      %429 = vmatpush1.msra.mxu0 0.0
      %430 = vmatprep.subr.mxu0 0.0
      %431 = vmatpush1.msra.mxu0 0.0
      %432 = vmatprep.subr.mxu0 0.0
      %433 = vmatpush1.msra.mxu0 0.0
      %434 = vmatprep.subr.mxu0 0.0
      %435 = vmatpush1.msra.mxu0 0.0
      %436 = vmatprep.subr.mxu0 0.0
      %437 = vmatpush1.msra.mxu0 0.0
      %438 = vmatprep.subr.mxu0 0.0
      %439 = vmatpush1.msra.mxu0 0.0
      %440 = vmatprep.subr.mxu0 0.0
      %441 = vmatpush1.msra.mxu0 0.0
      %442 = vmatprep.subr.mxu0 0.0
      %443 = vmatpush1.msra.mxu0 0.0
      %444 = vmatprep.subr.mxu0 0.0
      %445 = vmatpush1.msra.mxu0 0.0
      %446 = vmatprep.subr.mxu0 0.0
      %447 = vmatpush1.msra.mxu0 0.0
      %448 = vmatprep.subr.mxu0 0.0
      %449 = vmatpush1.msra.mxu0 0.0
      %450 = vmatprep.subr.mxu0 0.0
      %451 = vmatpush1.msra.mxu0 0.0
      %452 = vmatprep.subr.mxu0 0.0
      %453 = vmatpush1.msra.mxu0 0.0
      %454 = vmatprep.subr.mxu0 0.0
      %455 = vmatpush1.msra.mxu0 0.0
      %456 = vmatprep.subr.mxu0 0.0
      %457 = vmatpush1.msra.mxu0 0.0
      %458 = vmatprep.subr.mxu0 0.0
      %459 = vmatpush1.msra.mxu0 0.0
      %460 = vmatprep.subr.mxu0 0.0
      %461 = vmatpush1.msra.mxu0 0.0
      %462 = vmatprep.subr.mxu0 0.0
      %463 = vmatpush1.msra.mxu0 0.0
      %464 = vmatprep.mubr.f32.mxu0 0.0
      %465 = vmatmul.mubr.f32.gmra.mrb[0].mxu0 %v164
      %v466 = vpop.f32.mrb[0].mxu0
      %v467 = vadd.f32 0.0, %v466
      %v468 = vpop.f32.mrb[0].mxu0
      %v469 = vadd.f32 0.0, %v468
      %470 = vmatprep.mubr.f32.mxu0 0.0
      %471 = vmatmul.mubr.f32.gmra.mrb[0].mxu0 %v167
      %v472 = vpop.f32.mrb[0].mxu0
      %v473 = vadd.f32 0.0, %v472
      %v474 = vpop.f32.mrb[0].mxu0
      %v475 = vadd.f32 0.0, %v474
      %476 = vdwg.mxu0
      %477 = vmatprep.subr.mxu0 %v155
      %478 = vmatpush1.msra.mxu0 %v154
      %479 = vmatprep.subr.mxu0 0.0
      %480 = vmatpush1.msra.mxu0 0.0
      %481 = vmatprep.subr.mxu0 0.0
      %482 = vmatpush1.msra.mxu0 0.0
      %483 = vmatprep.subr.mxu0 0.0
      %484 = vmatpush1.msra.mxu0 0.0
      %485 = vmatprep.subr.mxu0 0.0
      %486 = vmatpush1.msra.mxu0 0.0
      %487 = vmatprep.subr.mxu0 0.0
      %488 = vmatpush1.msra.mxu0 0.0
      %489 = vmatprep.subr.mxu0 0.0
      %490 = vmatpush1.msra.mxu0 0.0
      %491 = vmatprep.subr.mxu0 0.0
      %492 = vmatpush1.msra.mxu0 0.0
      %493 = vmatprep.subr.mxu0 0.0
      %494 = vmatpush1.msra.mxu0 0.0
      %495 = vmatprep.subr.mxu0 0.0
      %496 = vmatpush1.msra.mxu0 0.0
      %497 = vmatprep.subr.mxu0 0.0
      %498 = vmatpush1.msra.mxu0 0.0
      %499 = vmatprep.subr.mxu0 0.0
      %500 = vmatpush1.msra.mxu0 0.0
      %501 = vmatprep.subr.mxu0 0.0
      %502 = vmatpush1.msra.mxu0 0.0
      %503 = vmatprep.subr.mxu0 0.0
      %504 = vmatpush1.msra.mxu0 0.0
      %505 = vmatprep.subr.mxu0 0.0
      %506 = vmatpush1.msra.mxu0 0.0
      %507 = vmatprep.subr.mxu0 0.0
      %508 = vmatpush1.msra.mxu0 0.0
      %509 = vmatprep.subr.mxu0 0.0
      %510 = vmatpush1.msra.mxu0 0.0
      %511 = vmatprep.subr.mxu0 0.0
      %512 = vmatpush1.msra.mxu0 0.0
      %513 = vmatprep.subr.mxu0 0.0
      %514 = vmatpush1.msra.mxu0 0.0
      %515 = vmatprep.subr.mxu0 0.0
      %516 = vmatpush1.msra.mxu0 0.0
      %517 = vmatprep.subr.mxu0 0.0
      %518 = vmatpush1.msra.mxu0 0.0
      %519 = vmatprep.subr.mxu0 0.0
      %520 = vmatpush1.msra.mxu0 0.0
      %521 = vmatprep.subr.mxu0 0.0
      %522 = vmatpush1.msra.mxu0 0.0
      %523 = vmatprep.subr.mxu0 0.0
      %524 = vmatpush1.msra.mxu0 0.0
      %525 = vmatprep.subr.mxu0 0.0
      %526 = vmatpush1.msra.mxu0 0.0
      %527 = vmatprep.subr.mxu0 0.0
      %528 = vmatpush1.msra.mxu0 0.0
      %529 = vmatprep.subr.mxu0 0.0
      %530 = vmatpush1.msra.mxu0 0.0
      %531 = vmatprep.subr.mxu0 0.0
      %532 = vmatpush1.msra.mxu0 0.0
      %533 = vmatprep.subr.mxu0 0.0
      %534 = vmatpush1.msra.mxu0 0.0
      %535 = vmatprep.subr.mxu0 0.0
      %536 = vmatpush1.msra.mxu0 0.0
      %537 = vmatprep.subr.mxu0 0.0
      %538 = vmatpush1.msra.mxu0 0.0
      %539 = vmatprep.subr.mxu0 0.0
      %540 = vmatpush1.msra.mxu0 0.0
      %541 = vmatprep.mubr.f32.mxu0 0.0
      %542 = vmatmul.mubr.f32.gmra.mrb[0].mxu0 %v164
      %v543 = vpop.f32.mrb[0].mxu0
      %v544 = vadd.f32 0.0, %v543
      %v545 = vpop.f32.mrb[0].mxu0
      %v546 = vadd.f32 0.0, %v545
      %547 = vmatprep.mubr.f32.mxu0 0.0
      %548 = vmatmul.mubr.f32.gmra.mrb[0].mxu0 %v167
      %v549 = vpop.f32.mrb[0].mxu0
      %v550 = vadd.f32 0.0, %v549
      %v551 = vpop.f32.mrb[0].mxu0
      %v552 = vadd.f32 0.0, %v551
      %553 = vdwg.mxu0
      %554 = vmatprep.subr.mxu0 %v157
      %555 = vmatpush1.msra.mxu0 %v156
      %556 = vmatprep.subr.mxu0 0.0
      %557 = vmatpush1.msra.mxu0 0.0
      %558 = vmatprep.subr.mxu0 0.0
      %559 = vmatpush1.msra.mxu0 0.0
      %560 = vmatprep.subr.mxu0 0.0
      %561 = vmatpush1.msra.mxu0 0.0
      %562 = vmatprep.subr.mxu0 0.0
      %563 = vmatpush1.msra.mxu0 0.0
      %564 = vmatprep.subr.mxu0 0.0
      %565 = vmatpush1.msra.mxu0 0.0
      %566 = vmatprep.subr.mxu0 0.0
      %567 = vmatpush1.msra.mxu0 0.0
      %568 = vmatprep.subr.mxu0 0.0
      %569 = vmatpush1.msra.mxu0 0.0
      %570 = vmatprep.subr.mxu0 0.0
      %571 = vmatpush1.msra.mxu0 0.0
      %572 = vmatprep.subr.mxu0 0.0
      %573 = vmatpush1.msra.mxu0 0.0
      %574 = vmatprep.subr.mxu0 0.0
      %575 = vmatpush1.msra.mxu0 0.0
      %576 = vmatprep.subr.mxu0 0.0
      %577 = vmatpush1.msra.mxu0 0.0
      %578 = vmatprep.subr.mxu0 0.0
      %579 = vmatpush1.msra.mxu0 0.0
      %580 = vmatprep.subr.mxu0 0.0
      %581 = vmatpush1.msra.mxu0 0.0
      %582 = vmatprep.subr.mxu0 0.0
      %583 = vmatpush1.msra.mxu0 0.0
      %584 = vmatprep.subr.mxu0 0.0
      %585 = vmatpush1.msra.mxu0 0.0
      %586 = vmatprep.subr.mxu0 0.0
      %587 = vmatpush1.msra.mxu0 0.0
      %588 = vmatprep.subr.mxu0 0.0
      %589 = vmatpush1.msra.mxu0 0.0
      %590 = vmatprep.subr.mxu0 0.0
      %591 = vmatpush1.msra.mxu0 0.0
      %592 = vmatprep.subr.mxu0 0.0
      %593 = vmatpush1.msra.mxu0 0.0
      %594 = vmatprep.subr.mxu0 0.0
      %595 = vmatpush1.msra.mxu0 0.0
      %596 = vmatprep.subr.mxu0 0.0
      %597 = vmatpush1.msra.mxu0 0.0
      %598 = vmatprep.subr.mxu0 0.0
      %599 = vmatpush1.msra.mxu0 0.0
      %600 = vmatprep.subr.mxu0 0.0
      %601 = vmatpush1.msra.mxu0 0.0
      %602 = vmatprep.subr.mxu0 0.0
      %603 = vmatpush1.msra.mxu0 0.0
      %604 = vmatprep.subr.mxu0 0.0
      %605 = vmatpush1.msra.mxu0 0.0
      %606 = vmatprep.subr.mxu0 0.0
      %607 = vmatpush1.msra.mxu0 0.0
      %608 = vmatprep.subr.mxu0 0.0
      %609 = vmatpush1.msra.mxu0 0.0
      %610 = vmatprep.subr.mxu0 0.0
      %611 = vmatpush1.msra.mxu0 0.0
      %612 = vmatprep.subr.mxu0 0.0
      %613 = vmatpush1.msra.mxu0 0.0
      %614 = vmatprep.subr.mxu0 0.0
      %615 = vmatpush1.msra.mxu0 0.0
      %616 = vmatprep.subr.mxu0 0.0
      %617 = vmatpush1.msra.mxu0 0.0
      %618 = vmatprep.mubr.f32.mxu0 0.0
      %619 = vmatmul.mubr.f32.gmra.mrb[0].mxu0 %v164
      %v620 = vpop.f32.mrb[0].mxu0
      %v621 = vadd.f32 0.0, %v620
      %v622 = vpop.f32.mrb[0].mxu0
      %v623 = vadd.f32 0.0, %v622
      %624 = vmatprep.mubr.f32.mxu0 0.0
      %625 = vmatmul.mubr.f32.gmra.mrb[0].mxu0 %v167
      %v626 = vpop.f32.mrb[0].mxu0
      %v627 = vadd.f32 0.0, %v626
      %v628 = vpop.f32.mrb[0].mxu0
      %v629 = vadd.f32 0.0, %v628
      %630 = vdwg.mxu0
      %631 = vmatprep.subr.mxu0 %v159
      %632 = vmatpush1.msra.mxu0 %v158
      %633 = vmatprep.subr.mxu0 0.0
      %634 = vmatpush1.msra.mxu0 0.0
      %635 = vmatprep.subr.mxu0 0.0
      %636 = vmatpush1.msra.mxu0 0.0
      %637 = vmatprep.subr.mxu0 0.0
      %638 = vmatpush1.msra.mxu0 0.0
      %639 = vmatprep.subr.mxu0 0.0
      %640 = vmatpush1.msra.mxu0 0.0
      %641 = vmatprep.subr.mxu0 0.0
      %642 = vmatpush1.msra.mxu0 0.0
      %643 = vmatprep.subr.mxu0 0.0
      %644 = vmatpush1.msra.mxu0 0.0
      %645 = vmatprep.subr.mxu0 0.0
      %646 = vmatpush1.msra.mxu0 0.0
      %647 = vmatprep.subr.mxu0 0.0
      %648 = vmatpush1.msra.mxu0 0.0
      %649 = vmatprep.subr.mxu0 0.0
      %650 = vmatpush1.msra.mxu0 0.0
      %651 = vmatprep.subr.mxu0 0.0
      %652 = vmatpush1.msra.mxu0 0.0
      %653 = vmatprep.subr.mxu0 0.0
      %654 = vmatpush1.msra.mxu0 0.0
      %655 = vmatprep.subr.mxu0 0.0
      %656 = vmatpush1.msra.mxu0 0.0
      %657 = vmatprep.subr.mxu0 0.0
      %658 = vmatpush1.msra.mxu0 0.0
      %659 = vmatprep.subr.mxu0 0.0
      %660 = vmatpush1.msra.mxu0 0.0
      %661 = vmatprep.subr.mxu0 0.0
      %662 = vmatpush1.msra.mxu0 0.0
      %663 = vmatprep.subr.mxu0 0.0
      %664 = vmatpush1.msra.mxu0 0.0
      %665 = vmatprep.subr.mxu0 0.0
      %666 = vmatpush1.msra.mxu0 0.0
      %667 = vmatprep.subr.mxu0 0.0
      %668 = vmatpush1.msra.mxu0 0.0
      %669 = vmatprep.subr.mxu0 0.0
      %670 = vmatpush1.msra.mxu0 0.0
      %671 = vmatprep.subr.mxu0 0.0
      %672 = vmatpush1.msra.mxu0 0.0
      %673 = vmatprep.subr.mxu0 0.0
      %674 = vmatpush1.msra.mxu0 0.0
      %675 = vmatprep.subr.mxu0 0.0
      %676 = vmatpush1.msra.mxu0 0.0
      %677 = vmatprep.subr.mxu0 0.0
      %678 = vmatpush1.msra.mxu0 0.0
      %679 = vmatprep.subr.mxu0 0.0
      %680 = vmatpush1.msra.mxu0 0.0
      %681 = vmatprep.subr.mxu0 0.0
      %682 = vmatpush1.msra.mxu0 0.0
      %683 = vmatprep.subr.mxu0 0.0
      %684 = vmatpush1.msra.mxu0 0.0
      %685 = vmatprep.subr.mxu0 0.0
      %686 = vmatpush1.msra.mxu0 0.0
      %687 = vmatprep.subr.mxu0 0.0
      %688 = vmatpush1.msra.mxu0 0.0
      %689 = vmatprep.subr.mxu0 0.0
      %690 = vmatpush1.msra.mxu0 0.0
      %691 = vmatprep.subr.mxu0 0.0
      %692 = vmatpush1.msra.mxu0 0.0
      %693 = vmatprep.subr.mxu0 0.0
      %694 = vmatpush1.msra.mxu0 0.0
      %695 = vmatprep.mubr.f32.mxu0 0.0
      %696 = vmatmul.mubr.f32.gmra.mrb[0].mxu0 %v164
      %v697 = vpop.f32.mrb[0].mxu0
      %v698 = vadd.f32 0.0, %v697
      %v699 = vpop.f32.mrb[0].mxu0
      %v700 = vadd.f32 0.0, %v699
      %701 = vmatprep.mubr.f32.mxu0 0.0
      %702 = vmatmul.mubr.f32.gmra.mrb[0].mxu0 %v167
      %v703 = vpop.f32.mrb[0].mxu0
      %v704 = vadd.f32 0.0, %v703
      %v705 = vpop.f32.mrb[0].mxu0
      %v706 = vadd.f32 0.0, %v705
      %707 = vdwg.mxu0
      %708 = vmatprep.subr.mxu0 %v161
      %709 = vmatpush1.msra.mxu0 %v160
      %710 = vmatprep.subr.mxu0 0.0
      %711 = vmatpush1.msra.mxu0 0.0
      %712 = vmatprep.subr.mxu0 0.0
      %713 = vmatpush1.msra.mxu0 0.0
      %714 = vmatprep.subr.mxu0 0.0
      %715 = vmatpush1.msra.mxu0 0.0
      %716 = vmatprep.subr.mxu0 0.0
      %717 = vmatpush1.msra.mxu0 0.0
      %718 = vmatprep.subr.mxu0 0.0
      %719 = vmatpush1.msra.mxu0 0.0
      %720 = vmatprep.subr.mxu0 0.0
      %721 = vmatpush1.msra.mxu0 0.0
      %722 = vmatprep.subr.mxu0 0.0
      %723 = vmatpush1.msra.mxu0 0.0
      %724 = vmatprep.subr.mxu0 0.0
      %725 = vmatpush1.msra.mxu0 0.0
      %726 = vmatprep.subr.mxu0 0.0
      %727 = vmatpush1.msra.mxu0 0.0
      %728 = vmatprep.subr.mxu0 0.0
      %729 = vmatpush1.msra.mxu0 0.0
      %730 = vmatprep.subr.mxu0 0.0
      %731 = vmatpush1.msra.mxu0 0.0
      %732 = vmatprep.subr.mxu0 0.0
      %733 = vmatpush1.msra.mxu0 0.0
      %734 = vmatprep.subr.mxu0 0.0
      %735 = vmatpush1.msra.mxu0 0.0
      %736 = vmatprep.subr.mxu0 0.0
      %737 = vmatpush1.msra.mxu0 0.0
      %738 = vmatprep.subr.mxu0 0.0
      %739 = vmatpush1.msra.mxu0 0.0
      %740 = vmatprep.subr.mxu0 0.0
      %741 = vmatpush1.msra.mxu0 0.0
      %742 = vmatprep.subr.mxu0 0.0
      %743 = vmatpush1.msra.mxu0 0.0
      %744 = vmatprep.subr.mxu0 0.0
      %745 = vmatpush1.msra.mxu0 0.0
      %746 = vmatprep.subr.mxu0 0.0
      %747 = vmatpush1.msra.mxu0 0.0
      %748 = vmatprep.subr.mxu0 0.0
      %749 = vmatpush1.msra.mxu0 0.0
      %750 = vmatprep.subr.mxu0 0.0
      %751 = vmatpush1.msra.mxu0 0.0
      %752 = vmatprep.subr.mxu0 0.0
      %753 = vmatpush1.msra.mxu0 0.0
      %754 = vmatprep.subr.mxu0 0.0
      %755 = vmatpush1.msra.mxu0 0.0
      %756 = vmatprep.subr.mxu0 0.0
      %757 = vmatpush1.msra.mxu0 0.0
      %758 = vmatprep.subr.mxu0 0.0
      %759 = vmatpush1.msra.mxu0 0.0
      %760 = vmatprep.subr.mxu0 0.0
      %761 = vmatpush1.msra.mxu0 0.0
      %762 = vmatprep.subr.mxu0 0.0
      %763 = vmatpush1.msra.mxu0 0.0
      %764 = vmatprep.subr.mxu0 0.0
      %765 = vmatpush1.msra.mxu0 0.0
      %766 = vmatprep.subr.mxu0 0.0
      %767 = vmatpush1.msra.mxu0 0.0
      %768 = vmatprep.subr.mxu0 0.0
      %769 = vmatpush1.msra.mxu0 0.0
      %770 = vmatprep.subr.mxu0 0.0
      %771 = vmatpush1.msra.mxu0 0.0
      %772 = vmatprep.mubr.f32.mxu0 0.0
      %773 = vmatmul.mubr.f32.gmra.mrb[0].mxu0 %v164
      %v774 = vpop.f32.mrb[0].mxu0
      %v775 = vadd.f32 0.0, %v774
      %v776 = vpop.f32.mrb[0].mxu0
      %v777 = vadd.f32 0.0, %v776
      %778 = vmatprep.mubr.f32.mxu0 0.0
      %779 = vmatmul.mubr.f32.gmra.mrb[0].mxu0 %v167
      %v780 = vpop.f32.mrb[0].mxu0
      %v781 = vadd.f32 0.0, %v780
      %v782 = vpop.f32.mrb[0].mxu0
      %v783 = vadd.f32 0.0, %v782
      %784 = vdwg.mxu0
      %785 = vst [vmem:[%s143] sm:$0xff] %v236
      %786 = vst [vmem:[%s143 + $0x8] sm:$0xff] %v238
      %787 = vst [vmem:[%s143 + $0x10] sm:$0xff] %v313
      %788 = vst [vmem:[%s143 + $0x18] sm:$0xff] %v315
      %789 = vst [vmem:[%s143 + $0x20] sm:$0xff] %v390
      %790 = vst [vmem:[%s143 + $0x28] sm:$0xff] %v392
      %791 = vst [vmem:[%s143 + $0x30] sm:$0xff] %v467
      %792 = vst [vmem:[%s143 + $0x38] sm:$0xff] %v469
      %793 = vst [vmem:[%s143 + $0x40] sm:$0xff] %v544
      %794 = vst [vmem:[%s143 + $0x48] sm:$0xff] %v546
      %795 = vst [vmem:[%s143 + $0x50] sm:$0xff] %v621
      %796 = vst [vmem:[%s143 + $0x58] sm:$0xff] %v623
      %797 = vst [vmem:[%s143 + $0x60] sm:$0xff] %v698
      %798 = vst [vmem:[%s143 + $0x68] sm:$0xff] %v700
      %799 = vst [vmem:[%s143 + $0x70] sm:$0xff] %v775
      %800 = vst [vmem:[%s143 + $0x78] sm:$0xff] %v777
      %801 = vst [vmem:[%s143 + $0x80] sm:$0xff] %v242
      %802 = vst [vmem:[%s143 + $0x88] sm:$0xff] %v244
      %803 = vst [vmem:[%s143 + $0x90] sm:$0xff] %v319
      %804 = vst [vmem:[%s143 + $0x98] sm:$0xff] %v321
      %805 = vst [vmem:[%s143 + $0xa0] sm:$0xff] %v396
      %806 = vst [vmem:[%s143 + $0xa8] sm:$0xff] %v398
      %807 = vst [vmem:[%s143 + $0xb0] sm:$0xff] %v473
      %808 = vst [vmem:[%s143 + $0xb8] sm:$0xff] %v475
      %809 = vst [vmem:[%s143 + $0xc0] sm:$0xff] %v550
      %810 = vst [vmem:[%s143 + $0xc8] sm:$0xff] %v552
      %811 = vst [vmem:[%s143 + $0xd0] sm:$0xff] %v627
      %812 = vst [vmem:[%s143 + $0xd8] sm:$0xff] %v629
      %813 = vst [vmem:[%s143 + $0xe0] sm:$0xff] %v704
      %814 = vst [vmem:[%s143 + $0xe8] sm:$0xff] %v706
      %815 = vst [vmem:[%s143 + $0xf0] sm:$0xff] %v781
      %816 = vst [vmem:[%s143 + $0xf8] sm:$0xff] %v783
      %p817 = scmp.lt.s32.totalorder %s13, 1
      %s818 = scalar_select %p817, %s13, 1
      %s819 = smul.addr %s818, 32
      %s820 = smul.addr %s819, 8
      %s821 = scalar_lea.vmem %s2, %s820
      // Predicated region
      $region29: #{up_conv_forward.9} parent=27 // pred_check
        %p822 = pneg %p78
      $region30: #{up_conv_forward.9} parent=27 // pred_check_branch
        %824 = sbr.rel (%p822) target = $region32
      $region31: #{up_conv_forward.9} parent=27 // pred_region
        _
      $region32: #{up_conv_forward.9} parent=27 // pred_fallthru
        _
    $region28: #{up_conv_forward.9} parent=5 // pred_fallthru
      _
    %p825 = scmp.le.s32.totalorder 2, %s8
    // Predicated region
    $region33: #{up_conv_forward.9} parent=5 // pred_check
      %p826 = pneg %p825
    $region34: #{up_conv_forward.9} parent=5 // pred_check_branch
      %828 = sbr.rel (%p826) target = $region36
    $region35: #{up_conv_forward.9} parent=5 // pred_region
      %s829 = ssub.s32 %s8, 2
      // Predicated region
      $region37: #{up_conv_forward.9} parent=35 // pred_check
        %p830 = pneg %p84
      $region38: #{up_conv_forward.9} parent=35 // pred_check_branch
        %832 = sbr.rel (%p830) target = $region40
      $region39: #{up_conv_forward.9} parent=35 // pred_region
        %p833 = scmp.lt.s32.totalorder %s14, 1
        %s834 = scalar_select %p833, %s14, 1
        %s835 = smul.addr %s834, 32
        %s836 = smul.addr %s835, 8
        %s837 = scalar_lea.vmem %s2, %s836
      $region40: #{up_conv_forward.9} parent=35 // pred_fallthru
        _
    $region36: #{up_conv_forward.9} parent=5 // pred_fallthru
      _
  $region6: #{up_conv_forward.9} parent=0 // loop_footer
    %s12 = sadd.s32 1, %s8
  $region7: #{up_conv_forward.9} parent=0 // loop_footer_branch
    %7 = sbr.rel target = $region3
  $region8: #{up_conv_forward.9} parent=0 // loop_exit
    _

// kernel: up_conv_forward.11
$region0: #{up_conv_forward.11}
  #allocation0 [shape = 'u32[]', space=smem, size = 0x4, offset = 0x4, fixed_abs, tag = 'smem constant byte address 0x4 - core index']
  #allocation1 [shape = 'u32[144,128]{1,0:T(1,128)}', space=vmem, size = 0x12000, scoped, tag = 'internal scratch']
  %s0 = inlined_call_operand.vmem [shape: f32[512,128], index: 0, kind: input, shape index: {}]
  %s1 = inlined_call_operand.vmem [shape: f32[1,128], index: 1, kind: input, shape index: {}]
  %s2 = inlined_call_operand.vmem [shape: f32[1,128], index: 2, kind: input, shape index: {}]
  %s3 = inlined_call_operand.vmem [shape: f32[512,128], index: 3, kind: output, shape index: {}]
  %s4 = sld [smem:[#allocation0]]
  $region45: #{up_conv_forward.11} parent=0
    _
  %s6 = ssub.s32 1, %s4
  %s7 = scalar_select 0, %s6, %s4
  loop: start=0, step=1, limit=4
  $region2: #{up_conv_forward.11} parent=0 // loop_pre_header
    _
  $region3: #{up_conv_forward.11} parent=0 // loop_header
    %s9 = sphi 0, %s13
    %p10 = scmp.ge.s32.totalorder %s9, 4
    %s19 = sphi 0, %s21
    %s22 = sphi 0, %s19
    %s23 = sphi 0, %s22
    %s39 = sphi 0, %s23
    %s43 = sphi 0, %s43
    %s45 = sphi 0, %s43
    %s46 = sphi 0, %s45
    %s60 = sphi 0, %s46
    %s64 = sphi 0, %s64
    %s66 = sphi 0, %s64
    %s67 = sphi 0, %s66
    %s81 = sphi 0, %s67
    %s87 = sphi 0, %s89
    %s90 = sphi 0, %s87
    %s91 = sphi 0, %s90
    %s107 = sphi 0, %s91
  $region4: #{up_conv_forward.11} parent=0 // loop_header_branch
    %12 = sbr.rel (%p10) target = $region8
  $region5: #{up_conv_forward.11} parent=0 // loop_body
    %s14 = ssub.s32 %s9, 1
    %s15 = ssub.s32 %s9, 2
    %s16 = sadd.s32 %s9, 1
    %s17 = ssub.s32 %s9, %s16
    %p18 = scmp.eq.s32.totalorder %s17, 0
    %s20 = sadd.s32 %s19, 1
    %s21 = scalar_select %p18, %s19, %s20
    %p24 = pneg %p18
    %p25 = scmp.eq.s32.totalorder %s9, 1
    %p26 = por %p24, %p25
    %p27 = scmp.ne.s32.totalorder %s19, %s22
    %p28 = scmp.eq.s32.totalorder %s9, 0
    %p29 = por %p27, %p28
    %p30 = scmp.ne.s32.totalorder %s19, %s22
    %p31 = scmp.eq.s32.totalorder %s14, 1
    %p32 = por %p30, %p31
    %p33 = scmp.ne.s32.totalorder %s22, %s23
    %p34 = scmp.eq.s32.totalorder %s14, 0
    %p35 = por %p33, %p34
    %p36 = scmp.ne.s32.totalorder %s22, %s23
    %p37 = scmp.eq.s32.totalorder %s15, 1
    %p38 = por %p36, %p37
    %p40 = scmp.ne.s32.totalorder %s23, %s39
    %p41 = scmp.eq.s32.totalorder %s15, 0
    %p42 = por %p40, %p41
    %s44 = sadd.s32 %s43, 1
    %p47 = scmp.eq.s32.totalorder %s9, 1
    %p48 = scmp.ne.s32.totalorder %s43, %s45
    %p49 = scmp.eq.s32.totalorder %s9, 0
    %p50 = por %p48, %p49
    %p51 = scmp.ne.s32.totalorder %s43, %s45
    %p52 = scmp.eq.s32.totalorder %s14, 1
    %p53 = por %p51, %p52
    %p54 = scmp.ne.s32.totalorder %s45, %s46
    %p55 = scmp.eq.s32.totalorder %s14, 0
    %p56 = por %p54, %p55
    %p57 = scmp.ne.s32.totalorder %s45, %s46
    %p58 = scmp.eq.s32.totalorder %s15, 1
    %p59 = por %p57, %p58
    %p61 = scmp.ne.s32.totalorder %s46, %s60
    %p62 = scmp.eq.s32.totalorder %s15, 0
    %p63 = por %p61, %p62
    %s65 = sadd.s32 %s64, 1
    %p68 = scmp.eq.s32.totalorder %s9, 1
    %p69 = scmp.ne.s32.totalorder %s64, %s66
    %p70 = scmp.eq.s32.totalorder %s9, 0
    %p71 = por %p69, %p70
    %p72 = scmp.ne.s32.totalorder %s64, %s66
    %p73 = scmp.eq.s32.totalorder %s14, 1
    %p74 = por %p72, %p73
    %p75 = scmp.ne.s32.totalorder %s66, %s67
    %p76 = scmp.eq.s32.totalorder %s14, 0
    %p77 = por %p75, %p76
    %p78 = scmp.ne.s32.totalorder %s66, %s67
    %p79 = scmp.eq.s32.totalorder %s15, 1
    %p80 = por %p78, %p79
    %p82 = scmp.ne.s32.totalorder %s67, %s81
    %p83 = scmp.eq.s32.totalorder %s15, 0
    %p84 = por %p82, %p83
    %s85 = ssub.s32 %s9, %s16
    %p86 = scmp.eq.s32.totalorder %s85, 0
    %s88 = sadd.s32 %s87, 1
    %s89 = scalar_select %p86, %s87, %s88
    %p92 = pneg %p86
    %p93 = scmp.eq.s32.totalorder %s9, 1
    %p94 = por %p92, %p93
    %p95 = scmp.ne.s32.totalorder %s87, %s90
    %p96 = scmp.eq.s32.totalorder %s9, 0
    %p97 = por %p95, %p96
    %p98 = scmp.ne.s32.totalorder %s87, %s90
    %p99 = scmp.eq.s32.totalorder %s14, 1
    %p100 = por %p98, %p99
    %p101 = scmp.ne.s32.totalorder %s90, %s91
    %p102 = scmp.eq.s32.totalorder %s14, 0
    %p103 = por %p101, %p102
    %p104 = scmp.ne.s32.totalorder %s90, %s91
    %p105 = scmp.eq.s32.totalorder %s15, 1
    %p106 = por %p104, %p105
    %p108 = scmp.ne.s32.totalorder %s91, %s107
    %p109 = scmp.eq.s32.totalorder %s15, 0
    %p110 = por %p108, %p109
    %p111 = scmp.le.s32.totalorder 1, %s9
    %p112 = scmp.lt.s32.totalorder %s9, 3
    %p113 = pnand %p111, %p112
    %p114 = pneg %p113
    // Predicated region
    $region9: #{up_conv_forward.11} parent=5 // pred_check
      _
    $region10: #{up_conv_forward.11} parent=5 // pred_check_branch
      %116 = sbr.rel (%p113) target = $region12
    $region11: #{up_conv_forward.11} parent=5 // pred_region
      %s117 = ssub.s32 %s9, 1
      // Predicated region
      $region13: #{up_conv_forward.11} parent=11 // pred_check
        %p118 = pneg %p56
      $region14: #{up_conv_forward.11} parent=11 // pred_check_branch
        %120 = sbr.rel (%p118) target = $region16
      $region15: #{up_conv_forward.11} parent=11 // pred_region
        _
      $region16: #{up_conv_forward.11} parent=11 // pred_fallthru
        _
      // Predicated region
      $region17: #{up_conv_forward.11} parent=11 // pred_check
        %p121 = pneg %p77
      $region18: #{up_conv_forward.11} parent=11 // pred_check_branch
        %123 = sbr.rel (%p121) target = $region20
      $region19: #{up_conv_forward.11} parent=11 // pred_region
        _
      $region20: #{up_conv_forward.11} parent=11 // pred_fallthru
        _
    $region12: #{up_conv_forward.11} parent=5 // pred_fallthru
      _
    %p124 = scmp.lt.s32.totalorder %s9, 2
    // Predicated region
    $region21: #{up_conv_forward.11} parent=5 // pred_check
      %p125 = pneg %p124
    $region22: #{up_conv_forward.11} parent=5 // pred_check_branch
      %127 = sbr.rel (%p125) target = $region24
    $region23: #{up_conv_forward.11} parent=5 // pred_region
      // Predicated region
      $region25: #{up_conv_forward.11} parent=23 // pred_check
        %p128 = pneg %p29
      $region26: #{up_conv_forward.11} parent=23 // pred_check_branch
        %130 = sbr.rel (%p128) target = $region28
      $region27: #{up_conv_forward.11} parent=23 // pred_region
        %s131 = smul.u32 32, %s9
        %p132 = scmp.lt.s32.totalorder %s131, 63
        %s133 = scalar_select %p132, %s131, 63
        %s134 = smul.addr %s133, 8
        %s135 = scalar_lea.vmem %s0, %s134
        %s136 = smul.u32 32, %s9
      $region28: #{up_conv_forward.11} parent=23 // pred_fallthru
        _
    $region24: #{up_conv_forward.11} parent=5 // pred_fallthru
      _
    %p137 = scmp.le.s32.totalorder 1, %s9
    %p138 = scmp.lt.s32.totalorder %s9, 3
    %p139 = pnand %p137, %p138
    %p140 = pneg %p139
    // Predicated region
    $region29: #{up_conv_forward.11} parent=5 // pred_check
      _
    $region30: #{up_conv_forward.11} parent=5 // pred_check_branch
      %142 = sbr.rel (%p139) target = $region32
    $region31: #{up_conv_forward.11} parent=5 // pred_region
      %s143 = ssub.s32 %s9, 1
      %s144 = smul.u32 32, %s14
      %p145 = scmp.lt.s32.totalorder %s144, 63
      %s146 = scalar_select %p145, %s144, 63
      %s147 = smul.addr %s146, 8
      %s148 = scalar_lea.vmem %s0, %s147
      %p149 = pneg %p35
      %p150 = pneg %p32
      %p151 = pneg %p56
      %p152 = pneg %p53
      %p153 = pneg %p77
      %p154 = pneg %p74
      %p155 = pneg %p103
      %p156 = pneg %p100
      %s157 = smul.u32 32, %s14
      %p158 = scmp.lt.s32.totalorder %s157, 63
      %s159 = scalar_select %p158, %s157, 63
      %s160 = smul.addr %s159, 8
      %s161 = scalar_lea.vmem %s3, %s160
      %s162 = smul.u32 32, %s14
      %p163 = scmp.lt.s32.totalorder %s162, 63
      %s164 = scalar_select %p163, %s162, 63
      %s165 = smul.addr %s164, 8
      %s166 = scalar_lea.vmem %s0, %s165
      %s167 = smul.u32 32, %s14
      %s168 = smul.u32 32, %s14
      %p169 = scmp.lt.s32.totalorder %s168, 63
      %s170 = scalar_select %p169, %s168, 63
      %s171 = smul.addr %s170, 8
      %s172 = scalar_lea.vmem %s3, %s171
      %s173 = smul.u32 32, %s14
      %v174 = vld [vmem:[%s166] sm:$0xff]
      %v175 = vld [vmem:[%s166 + $0x8] sm:$0xff]
      %v176 = vld [vmem:[%s166 + $0x10] sm:$0xff]
      %v177 = vld [vmem:[%s166 + $0x18] sm:$0xff]
      %v178 = vld [vmem:[%s166 + $0x20] sm:$0xff]
      %v179 = vld [vmem:[%s166 + $0x28] sm:$0xff]
      %v180 = vld [vmem:[%s166 + $0x30] sm:$0xff]
      %v181 = vld [vmem:[%s166 + $0x38] sm:$0xff]
      %v182 = vld [vmem:[%s166 + $0x40] sm:$0xff]
      %v183 = vld [vmem:[%s166 + $0x48] sm:$0xff]
      %v184 = vld [vmem:[%s166 + $0x50] sm:$0xff]
      %v185 = vld [vmem:[%s166 + $0x58] sm:$0xff]
      %v186 = vld [vmem:[%s166 + $0x60] sm:$0xff]
      %v187 = vld [vmem:[%s166 + $0x68] sm:$0xff]
      %v188 = vld [vmem:[%s166 + $0x70] sm:$0xff]
      %v189 = vld [vmem:[%s166 + $0x78] sm:$0xff]
      %v190 = vld [vmem:[%s166 + $0x80] sm:$0xff]
      %v191 = vld [vmem:[%s166 + $0x88] sm:$0xff]
      %v192 = vld [vmem:[%s166 + $0x90] sm:$0xff]
      %v193 = vld [vmem:[%s166 + $0x98] sm:$0xff]
      %v194 = vld [vmem:[%s166 + $0xa0] sm:$0xff]
      %v195 = vld [vmem:[%s166 + $0xa8] sm:$0xff]
      %v196 = vld [vmem:[%s166 + $0xb0] sm:$0xff]
      %v197 = vld [vmem:[%s166 + $0xb8] sm:$0xff]
      %v198 = vld [vmem:[%s166 + $0xc0] sm:$0xff]
      %v199 = vld [vmem:[%s166 + $0xc8] sm:$0xff]
      %v200 = vld [vmem:[%s166 + $0xd0] sm:$0xff]
      %v201 = vld [vmem:[%s166 + $0xd8] sm:$0xff]
      %v202 = vld [vmem:[%s166 + $0xe0] sm:$0xff]
      %v203 = vld [vmem:[%s166 + $0xe8] sm:$0xff]
      %v204 = vld [vmem:[%s166 + $0xf0] sm:$0xff]
      %v205 = vld [vmem:[%s166 + $0xf8] sm:$0xff]
      %v206 = vld [vmem:[%s1] sm:$0x1]
      %v208 = vlaneseq
      %v209 = vshrl.u32 %v208, 7
      %v210 = vsub.s32 0, %v209
      %v211 = vrot.slane %v206, %v210
      %v213 = vmul.f32 %v174, %v211
      %v214 = vmul.f32 %v175, %v211
      %v215 = vmul.f32 %v176, %v211
      %v216 = vmul.f32 %v177, %v211
      %v217 = vmul.f32 %v178, %v211
      %v218 = vmul.f32 %v179, %v211
      %v219 = vmul.f32 %v180, %v211
      %v220 = vmul.f32 %v181, %v211
      %v221 = vmul.f32 %v182, %v211
      %v222 = vmul.f32 %v183, %v211
      %v223 = vmul.f32 %v184, %v211
      %v224 = vmul.f32 %v185, %v211
      %v225 = vmul.f32 %v186, %v211
      %v226 = vmul.f32 %v187, %v211
      %v227 = vmul.f32 %v188, %v211
      %v228 = vmul.f32 %v189, %v211
      %v229 = vmul.f32 %v190, %v211
      %v230 = vmul.f32 %v191, %v211
      %v231 = vmul.f32 %v192, %v211
      %v232 = vmul.f32 %v193, %v211
      %v233 = vmul.f32 %v194, %v211
      %v234 = vmul.f32 %v195, %v211
      %v235 = vmul.f32 %v196, %v211
      %v236 = vmul.f32 %v197, %v211
      %v237 = vmul.f32 %v198, %v211
      %v238 = vmul.f32 %v199, %v211
      %v239 = vmul.f32 %v200, %v211
      %v240 = vmul.f32 %v201, %v211
      %v241 = vmul.f32 %v202, %v211
      %v242 = vmul.f32 %v203, %v211
      %v243 = vmul.f32 %v204, %v211
      %v244 = vmul.f32 %v205, %v211
      %v245 = vld [vmem:[%s2] sm:$0x1]
      %v247 = vlaneseq
      %v248 = vshrl.u32 %v247, 7
      %v249 = vsub.s32 0, %v248
      %v250 = vrot.slane %v245, %v249
      %v252 = vadd.f32 %v213, %v250
      %v253 = vadd.f32 %v214, %v250
      %v254 = vadd.f32 %v215, %v250
      %v255 = vadd.f32 %v216, %v250
      %v256 = vadd.f32 %v217, %v250
      %v257 = vadd.f32 %v218, %v250
      %v258 = vadd.f32 %v219, %v250
      %v259 = vadd.f32 %v220, %v250
      %v260 = vadd.f32 %v221, %v250
      %v261 = vadd.f32 %v222, %v250
      %v262 = vadd.f32 %v223, %v250
      %v263 = vadd.f32 %v224, %v250
      %v264 = vadd.f32 %v225, %v250
      %v265 = vadd.f32 %v226, %v250
      %v266 = vadd.f32 %v227, %v250
      %v267 = vadd.f32 %v228, %v250
      %v268 = vadd.f32 %v229, %v250
      %v269 = vadd.f32 %v230, %v250
      %v270 = vadd.f32 %v231, %v250
      %v271 = vadd.f32 %v232, %v250
      %v272 = vadd.f32 %v233, %v250
      %v273 = vadd.f32 %v234, %v250
      %v274 = vadd.f32 %v235, %v250
      %v275 = vadd.f32 %v236, %v250
      %v276 = vadd.f32 %v237, %v250
      %v277 = vadd.f32 %v238, %v250
      %v278 = vadd.f32 %v239, %v250
      %v279 = vadd.f32 %v240, %v250
      %v280 = vadd.f32 %v241, %v250
      %v281 = vadd.f32 %v242, %v250
      %v282 = vadd.f32 %v243, %v250
      %v283 = vadd.f32 %v244, %v250
      %vm284 = vcmp.gt.f32.partialorder %v252, 0.0
      %vm285 = vcmp.gt.f32.partialorder %v253, 0.0
      %vm286 = vcmp.gt.f32.partialorder %v254, 0.0
      %vm287 = vcmp.gt.f32.partialorder %v255, 0.0
      %vm288 = vcmp.gt.f32.partialorder %v256, 0.0
      %vm289 = vcmp.gt.f32.partialorder %v257, 0.0
      %vm290 = vcmp.gt.f32.partialorder %v258, 0.0
      %vm291 = vcmp.gt.f32.partialorder %v259, 0.0
      %vm292 = vcmp.gt.f32.partialorder %v260, 0.0
      %vm293 = vcmp.gt.f32.partialorder %v261, 0.0
      %vm294 = vcmp.gt.f32.partialorder %v262, 0.0
      %vm295 = vcmp.gt.f32.partialorder %v263, 0.0
      %vm296 = vcmp.gt.f32.partialorder %v264, 0.0
      %vm297 = vcmp.gt.f32.partialorder %v265, 0.0
      %vm298 = vcmp.gt.f32.partialorder %v266, 0.0
      %vm299 = vcmp.gt.f32.partialorder %v267, 0.0
      %vm300 = vcmp.gt.f32.partialorder %v268, 0.0
      %vm301 = vcmp.gt.f32.partialorder %v269, 0.0
      %vm302 = vcmp.gt.f32.partialorder %v270, 0.0
      %vm303 = vcmp.gt.f32.partialorder %v271, 0.0
      %vm304 = vcmp.gt.f32.partialorder %v272, 0.0
      %vm305 = vcmp.gt.f32.partialorder %v273, 0.0
      %vm306 = vcmp.gt.f32.partialorder %v274, 0.0
      %vm307 = vcmp.gt.f32.partialorder %v275, 0.0
      %vm308 = vcmp.gt.f32.partialorder %v276, 0.0
      %vm309 = vcmp.gt.f32.partialorder %v277, 0.0
      %vm310 = vcmp.gt.f32.partialorder %v278, 0.0
      %vm311 = vcmp.gt.f32.partialorder %v279, 0.0
      %vm312 = vcmp.gt.f32.partialorder %v280, 0.0
      %vm313 = vcmp.gt.f32.partialorder %v281, 0.0
      %vm314 = vcmp.gt.f32.partialorder %v282, 0.0
      %vm315 = vcmp.gt.f32.partialorder %v283, 0.0
      %v316 = vmul.f32 %v252, 0.2
      %v317 = vmul.f32 %v253, 0.2
      %v318 = vmul.f32 %v254, 0.2
      %v319 = vmul.f32 %v255, 0.2
      %v320 = vmul.f32 %v256, 0.2
      %v321 = vmul.f32 %v257, 0.2
      %v322 = vmul.f32 %v258, 0.2
      %v323 = vmul.f32 %v259, 0.2
      %v324 = vmul.f32 %v260, 0.2
      %v325 = vmul.f32 %v261, 0.2
      %v326 = vmul.f32 %v262, 0.2
      %v327 = vmul.f32 %v263, 0.2
      %v328 = vmul.f32 %v264, 0.2
      %v329 = vmul.f32 %v265, 0.2
      %v330 = vmul.f32 %v266, 0.2
      %v331 = vmul.f32 %v267, 0.2
      %v332 = vmul.f32 %v268, 0.2
      %v333 = vmul.f32 %v269, 0.2
      %v334 = vmul.f32 %v270, 0.2
      %v335 = vmul.f32 %v271, 0.2
      %v336 = vmul.f32 %v272, 0.2
      %v337 = vmul.f32 %v273, 0.2
      %v338 = vmul.f32 %v274, 0.2
      %v339 = vmul.f32 %v275, 0.2
      %v340 = vmul.f32 %v276, 0.2
      %v341 = vmul.f32 %v277, 0.2
      %v342 = vmul.f32 %v278, 0.2
      %v343 = vmul.f32 %v279, 0.2
      %v344 = vmul.f32 %v280, 0.2
      %v345 = vmul.f32 %v281, 0.2
      %v346 = vmul.f32 %v282, 0.2
      %v347 = vmul.f32 %v283, 0.2
      %v348 = vsel %vm284, %v252, %v316
      %v349 = vsel %vm285, %v253, %v317
      %v350 = vsel %vm286, %v254, %v318
      %v351 = vsel %vm287, %v255, %v319
      %v352 = vsel %vm288, %v256, %v320
      %v353 = vsel %vm289, %v257, %v321
      %v354 = vsel %vm290, %v258, %v322
      %v355 = vsel %vm291, %v259, %v323
      %v356 = vsel %vm292, %v260, %v324
      %v357 = vsel %vm293, %v261, %v325
      %v358 = vsel %vm294, %v262, %v326
      %v359 = vsel %vm295, %v263, %v327
      %v360 = vsel %vm296, %v264, %v328
      %v361 = vsel %vm297, %v265, %v329
      %v362 = vsel %vm298, %v266, %v330
      %v363 = vsel %vm299, %v267, %v331
      %v364 = vsel %vm300, %v268, %v332
      %v365 = vsel %vm301, %v269, %v333
      %v366 = vsel %vm302, %v270, %v334
      %v367 = vsel %vm303, %v271, %v335
      %v368 = vsel %vm304, %v272, %v336
      %v369 = vsel %vm305, %v273, %v337
      %v370 = vsel %vm306, %v274, %v338
      %v371 = vsel %vm307, %v275, %v339
      %v372 = vsel %vm308, %v276, %v340
      %v373 = vsel %vm309, %v277, %v341
      %v374 = vsel %vm310, %v278, %v342
      %v375 = vsel %vm311, %v279, %v343
      %v376 = vsel %vm312, %v280, %v344
      %v377 = vsel %vm313, %v281, %v345
      %v378 = vsel %vm314, %v282, %v346
      %v379 = vsel %vm315, %v283, %v347
      %380 = vst [vmem:[%s172] sm:$0xff] %v348
      %381 = vst [vmem:[%s172 + $0x8] sm:$0xff] %v349
      %382 = vst [vmem:[%s172 + $0x10] sm:$0xff] %v350
      %383 = vst [vmem:[%s172 + $0x18] sm:$0xff] %v351
      %384 = vst [vmem:[%s172 + $0x20] sm:$0xff] %v352
      %385 = vst [vmem:[%s172 + $0x28] sm:$0xff] %v353
      %386 = vst [vmem:[%s172 + $0x30] sm:$0xff] %v354
      %387 = vst [vmem:[%s172 + $0x38] sm:$0xff] %v355
      %388 = vst [vmem:[%s172 + $0x40] sm:$0xff] %v356
      %389 = vst [vmem:[%s172 + $0x48] sm:$0xff] %v357
      %390 = vst [vmem:[%s172 + $0x50] sm:$0xff] %v358
      %391 = vst [vmem:[%s172 + $0x58] sm:$0xff] %v359
      %392 = vst [vmem:[%s172 + $0x60] sm:$0xff] %v360
      %393 = vst [vmem:[%s172 + $0x68] sm:$0xff] %v361
      %394 = vst [vmem:[%s172 + $0x70] sm:$0xff] %v362
      %395 = vst [vmem:[%s172 + $0x78] sm:$0xff] %v363
      %396 = vst [vmem:[%s172 + $0x80] sm:$0xff] %v364
      %397 = vst [vmem:[%s172 + $0x88] sm:$0xff] %v365
      %398 = vst [vmem:[%s172 + $0x90] sm:$0xff] %v366
      %399 = vst [vmem:[%s172 + $0x98] sm:$0xff] %v367
      %400 = vst [vmem:[%s172 + $0xa0] sm:$0xff] %v368
      %401 = vst [vmem:[%s172 + $0xa8] sm:$0xff] %v369
      %402 = vst [vmem:[%s172 + $0xb0] sm:$0xff] %v370
      %403 = vst [vmem:[%s172 + $0xb8] sm:$0xff] %v371
      %404 = vst [vmem:[%s172 + $0xc0] sm:$0xff] %v372
      %405 = vst [vmem:[%s172 + $0xc8] sm:$0xff] %v373
      %406 = vst [vmem:[%s172 + $0xd0] sm:$0xff] %v374
      %407 = vst [vmem:[%s172 + $0xd8] sm:$0xff] %v375
      %408 = vst [vmem:[%s172 + $0xe0] sm:$0xff] %v376
      %409 = vst [vmem:[%s172 + $0xe8] sm:$0xff] %v377
      %410 = vst [vmem:[%s172 + $0xf0] sm:$0xff] %v378
      %411 = vst [vmem:[%s172 + $0xf8] sm:$0xff] %v379
      %s412 = smul.u32 32, %s14
      %p413 = scmp.lt.s32.totalorder %s412, 63
      %s414 = scalar_select %p413, %s412, 63
      %s415 = smul.addr %s414, 8
      %s416 = scalar_lea.vmem %s3, %s415
      // Predicated region
      $region33: #{up_conv_forward.11} parent=31 // pred_check
        %p417 = pneg %p100
      $region34: #{up_conv_forward.11} parent=31 // pred_check_branch
        %419 = sbr.rel (%p417) target = $region36
      $region35: #{up_conv_forward.11} parent=31 // pred_region
        %s420 = smul.u32 32, %s14
      $region36: #{up_conv_forward.11} parent=31 // pred_fallthru
        _
    $region32: #{up_conv_forward.11} parent=5 // pred_fallthru
      _
    %p421 = scmp.le.s32.totalorder 2, %s9
    // Predicated region
    $region37: #{up_conv_forward.11} parent=5 // pred_check
      %p422 = pneg %p421
    $region38: #{up_conv_forward.11} parent=5 // pred_check_branch
      %424 = sbr.rel (%p422) target = $region40
    $region39: #{up_conv_forward.11} parent=5 // pred_region
      %s425 = ssub.s32 %s9, 2
      // Predicated region
      $region41: #{up_conv_forward.11} parent=39 // pred_check
        %p426 = pneg %p106
      $region42: #{up_conv_forward.11} parent=39 // pred_check_branch
        %428 = sbr.rel (%p426) target = $region44
      $region43: #{up_conv_forward.11} parent=39 // pred_region
        %s429 = smul.u32 32, %s15
        %p430 = scmp.lt.s32.totalorder %s429, 63
        %s431 = scalar_select %p430, %s429, 63
        %s432 = smul.addr %s431, 8
        %s433 = scalar_lea.vmem %s3, %s432
      $region44: #{up_conv_forward.11} parent=39 // pred_fallthru
        _
    $region40: #{up_conv_forward.11} parent=5 // pred_fallthru
      _
  $region6: #{up_conv_forward.11} parent=0 // loop_footer
    %s13 = sadd.s32 1, %s9
  $region7: #{up_conv_forward.11} parent=0 // loop_footer_branch
    %8 = sbr.rel target = $region3
  $region8: #{up_conv_forward.11} parent=0 // loop_exit
    _

// kernel: up_conv_forward.10
$region0: #{up_conv_forward.10}
  #allocation0 [shape = 'u32[]', space=smem, size = 0x4, offset = 0x4, fixed_abs, tag = 'smem constant byte address 0x4 - core index']
  #allocation1 [shape = 'u32[144,128]{1,0:T(1,128)}', space=vmem, size = 0x12000, scoped, tag = 'internal scratch']
  %s0 = inlined_call_operand.vmem [shape: bf16[4,10,18,128], index: 0, kind: input, shape index: {}]
  %s1 = inlined_call_operand.vmem [shape: bf16[1152,128], index: 1, kind: input, shape index: {}]
  %s2 = inlined_call_operand.vmem [shape: f32[1,128], index: 2, kind: input, shape index: {}]
  %s3 = inlined_call_operand.vmem [shape: f32[4,128,128], index: 3, kind: output, shape index: {0}]
  %s4 = inlined_call_operand.vmem [shape: f32[4,8,128], index: 4, kind: output, shape index: {1}]
  %5 = xla_tuple %s3, %s4
  %s6 = sld [smem:[#allocation0]]
  $region53: #{up_conv_forward.10} parent=0
    _
  %s8 = ssub.s32 1, %s6
  %s9 = scalar_select 0, %s8, %s6
  loop: start=0, step=1, limit=6
  $region2: #{up_conv_forward.10} parent=0 // loop_pre_header
    _
  $region3: #{up_conv_forward.10} parent=0 // loop_header
    %s11 = sphi 0, %s15
    %p12 = scmp.ge.s32.totalorder %s11, 6
    %s21 = sphi 0, %s23
    %s24 = sphi 0, %s21
    %s25 = sphi 0, %s24
    %s41 = sphi 0, %s25
    %s45 = sphi 0, %s45
    %s47 = sphi 0, %s45
    %s48 = sphi 0, %s47
    %s62 = sphi 0, %s48
    %s66 = sphi 0, %s66
    %s68 = sphi 0, %s66
    %s69 = sphi 0, %s68
    %s83 = sphi 0, %s69
    %s89 = sphi 0, %s91
    %s92 = sphi 0, %s89
    %s93 = sphi 0, %s92
    %s109 = sphi 0, %s93
    %s115 = sphi 0, %s117
    %s118 = sphi 0, %s115
    %s119 = sphi 0, %s118
    %s135 = sphi 0, %s119
  $region4: #{up_conv_forward.10} parent=0 // loop_header_branch
    %14 = sbr.rel (%p12) target = $region8
  $region5: #{up_conv_forward.10} parent=0 // loop_body
    %s16 = ssub.s32 %s11, 1
    %s17 = ssub.s32 %s11, 2
    %s18 = sadd.s32 %s11, 1
    %s19 = ssub.s32 %s11, %s18
    %p20 = scmp.eq.s32.totalorder %s19, 0
    %s22 = sadd.s32 %s21, 1
    %s23 = scalar_select %p20, %s21, %s22
    %p26 = pneg %p20
    %p27 = scmp.eq.s32.totalorder %s11, 3
    %p28 = por %p26, %p27
    %p29 = scmp.ne.s32.totalorder %s21, %s24
    %p30 = scmp.eq.s32.totalorder %s11, 0
    %p31 = por %p29, %p30
    %p32 = scmp.ne.s32.totalorder %s21, %s24
    %p33 = scmp.eq.s32.totalorder %s16, 3
    %p34 = por %p32, %p33
    %p35 = scmp.ne.s32.totalorder %s24, %s25
    %p36 = scmp.eq.s32.totalorder %s16, 0
    %p37 = por %p35, %p36
    %p38 = scmp.ne.s32.totalorder %s24, %s25
    %p39 = scmp.eq.s32.totalorder %s17, 3
    %p40 = por %p38, %p39
    %p42 = scmp.ne.s32.totalorder %s25, %s41
    %p43 = scmp.eq.s32.totalorder %s17, 0
    %p44 = por %p42, %p43
    %s46 = sadd.s32 %s45, 1
    %p49 = scmp.eq.s32.totalorder %s11, 3
    %p50 = scmp.ne.s32.totalorder %s45, %s47
    %p51 = scmp.eq.s32.totalorder %s11, 0
    %p52 = por %p50, %p51
    %p53 = scmp.ne.s32.totalorder %s45, %s47
    %p54 = scmp.eq.s32.totalorder %s16, 3
    %p55 = por %p53, %p54
    %p56 = scmp.ne.s32.totalorder %s47, %s48
    %p57 = scmp.eq.s32.totalorder %s16, 0
    %p58 = por %p56, %p57
    %p59 = scmp.ne.s32.totalorder %s47, %s48
    %p60 = scmp.eq.s32.totalorder %s17, 3
    %p61 = por %p59, %p60
    %p63 = scmp.ne.s32.totalorder %s48, %s62
    %p64 = scmp.eq.s32.totalorder %s17, 0
    %p65 = por %p63, %p64
    %s67 = sadd.s32 %s66, 1
    %p70 = scmp.eq.s32.totalorder %s11, 3
    %p71 = scmp.ne.s32.totalorder %s66, %s68
    %p72 = scmp.eq.s32.totalorder %s11, 0
    %p73 = por %p71, %p72
    %p74 = scmp.ne.s32.totalorder %s66, %s68
    %p75 = scmp.eq.s32.totalorder %s16, 3
    %p76 = por %p74, %p75
    %p77 = scmp.ne.s32.totalorder %s68, %s69
    %p78 = scmp.eq.s32.totalorder %s16, 0
    %p79 = por %p77, %p78
    %p80 = scmp.ne.s32.totalorder %s68, %s69
    %p81 = scmp.eq.s32.totalorder %s17, 3
    %p82 = por %p80, %p81
    %p84 = scmp.ne.s32.totalorder %s69, %s83
    %p85 = scmp.eq.s32.totalorder %s17, 0
    %p86 = por %p84, %p85
    %s87 = ssub.s32 %s11, %s18
    %p88 = scmp.eq.s32.totalorder %s87, 0
    %s90 = sadd.s32 %s89, 1
    %s91 = scalar_select %p88, %s89, %s90
    %p94 = pneg %p88
    %p95 = scmp.eq.s32.totalorder %s11, 3
    %p96 = por %p94, %p95
    %p97 = scmp.ne.s32.totalorder %s89, %s92
    %p98 = scmp.eq.s32.totalorder %s11, 0
    %p99 = por %p97, %p98
    %p100 = scmp.ne.s32.totalorder %s89, %s92
    %p101 = scmp.eq.s32.totalorder %s16, 3
    %p102 = por %p100, %p101
    %p103 = scmp.ne.s32.totalorder %s92, %s93
    %p104 = scmp.eq.s32.totalorder %s16, 0
    %p105 = por %p103, %p104
    %p106 = scmp.ne.s32.totalorder %s92, %s93
    %p107 = scmp.eq.s32.totalorder %s17, 3
    %p108 = por %p106, %p107
    %p110 = scmp.ne.s32.totalorder %s93, %s109
    %p111 = scmp.eq.s32.totalorder %s17, 0
    %p112 = por %p110, %p111
    %s113 = ssub.s32 %s11, %s18
    %p114 = scmp.eq.s32.totalorder %s113, 0
    %s116 = sadd.s32 %s115, 1
    %s117 = scalar_select %p114, %s115, %s116
    %p120 = pneg %p114
    %p121 = scmp.eq.s32.totalorder %s11, 3
    %p122 = por %p120, %p121
    %p123 = scmp.ne.s32.totalorder %s115, %s118
    %p124 = scmp.eq.s32.totalorder %s11, 0
    %p125 = por %p123, %p124
    %p126 = scmp.ne.s32.totalorder %s115, %s118
    %p127 = scmp.eq.s32.totalorder %s16, 3
    %p128 = por %p126, %p127
    %p129 = scmp.ne.s32.totalorder %s118, %s119
    %p130 = scmp.eq.s32.totalorder %s16, 0
    %p131 = por %p129, %p130
    %p132 = scmp.ne.s32.totalorder %s118, %s119
    %p133 = scmp.eq.s32.totalorder %s17, 3
    %p134 = por %p132, %p133
    %p136 = scmp.ne.s32.totalorder %s119, %s135
    %p137 = scmp.eq.s32.totalorder %s17, 0
    %p138 = por %p136, %p137
    %p139 = scmp.le.s32.totalorder 1, %s11
    %p140 = scmp.lt.s32.totalorder %s11, 5
    %p141 = pnand %p139, %p140
    %p142 = pneg %p141
    // Predicated region
    $region9: #{up_conv_forward.10} parent=5 // pred_check
      _
    $region10: #{up_conv_forward.10} parent=5 // pred_check_branch
      %144 = sbr.rel (%p141) target = $region12
    $region11: #{up_conv_forward.10} parent=5 // pred_region
      %s145 = ssub.s32 %s11, 1
      // Predicated region
      $region13: #{up_conv_forward.10} parent=11 // pred_check
        %p146 = pneg %p58
      $region14: #{up_conv_forward.10} parent=11 // pred_check_branch
        %148 = sbr.rel (%p146) target = $region16
      $region15: #{up_conv_forward.10} parent=11 // pred_region
        _
      $region16: #{up_conv_forward.10} parent=11 // pred_fallthru
        _
      // Predicated region
      $region17: #{up_conv_forward.10} parent=11 // pred_check
        %p149 = pneg %p79
      $region18: #{up_conv_forward.10} parent=11 // pred_check_branch
        %151 = sbr.rel (%p149) target = $region20
      $region19: #{up_conv_forward.10} parent=11 // pred_region
        _
      $region20: #{up_conv_forward.10} parent=11 // pred_fallthru
        _
    $region12: #{up_conv_forward.10} parent=5 // pred_fallthru
      _
    %p152 = scmp.lt.s32.totalorder %s11, 4
    // Predicated region
    $region21: #{up_conv_forward.10} parent=5 // pred_check
      %p153 = pneg %p152
    $region22: #{up_conv_forward.10} parent=5 // pred_check_branch
      %155 = sbr.rel (%p153) target = $region24
    $region23: #{up_conv_forward.10} parent=5 // pred_region
      // Predicated region
      $region25: #{up_conv_forward.10} parent=23 // pred_check
        %p156 = pneg %p31
      $region26: #{up_conv_forward.10} parent=23 // pred_check_branch
        %158 = sbr.rel (%p156) target = $region28
      $region27: #{up_conv_forward.10} parent=23 // pred_region
        %p159 = scmp.lt.s32.totalorder %s11, 3
        %s160 = scalar_select %p159, %s11, 3
        %s161 = smul.addr %s160, 30
        %s162 = smul.addr %s161, 4
        %s163 = scalar_lea.vmem %s0, %s162
      $region28: #{up_conv_forward.10} parent=23 // pred_fallthru
        _
    $region24: #{up_conv_forward.10} parent=5 // pred_fallthru
      _
    %p164 = scmp.le.s32.totalorder 1, %s11
    %p165 = scmp.lt.s32.totalorder %s11, 5
    %p166 = pnand %p164, %p165
    %p167 = pneg %p166
    // Predicated region
    $region29: #{up_conv_forward.10} parent=5 // pred_check
      _
    $region30: #{up_conv_forward.10} parent=5 // pred_check_branch
      %169 = sbr.rel (%p166) target = $region32
    $region31: #{up_conv_forward.10} parent=5 // pred_region
      %s170 = ssub.s32 %s11, 1
      %p171 = scmp.lt.s32.totalorder %s16, 3
      %s172 = scalar_select %p171, %s16, 3
      %s173 = smul.addr %s172, 30
      %s174 = smul.addr %s173, 4
      %s175 = scalar_lea.vmem %s0, %s174
      %p176 = pneg %p37
      %p177 = pneg %p34
      %p178 = pneg %p58
      %p179 = pneg %p55
      %p180 = pneg %p79
      %p181 = pneg %p76
      %p182 = pneg %p105
      %p183 = pneg %p102
      %p184 = scmp.lt.s32.totalorder %s16, 3
      %s185 = scalar_select %p184, %s16, 3
      %s186 = smul.addr %s185, 16
      %s187 = smul.addr %s186, 8
      %s188 = scalar_lea.vmem %s3, %s187
      %p189 = pneg %p131
      %p190 = pneg %p128
      %p191 = scmp.lt.s32.totalorder %s16, 3
      %s192 = scalar_select %p191, %s16, 3
      %s193 = smul.addr %s192, 8
      %s194 = scalar_lea.vmem %s4, %s193
      %p195 = scmp.lt.s32.totalorder %s16, 3
      %s196 = scalar_select %p195, %s16, 3
      %s197 = smul.addr %s196, 30
      %s198 = smul.addr %s197, 4
      %s199 = scalar_lea.vmem %s0, %s198
      %p200 = scmp.lt.s32.totalorder %s16, 3
      %s201 = scalar_select %p200, %s16, 3
      %s202 = smul.addr %s201, 16
      %s203 = smul.addr %s202, 8
      %s204 = scalar_lea.vmem %s3, %s203
      %p205 = scmp.lt.s32.totalorder %s16, 3
      %s206 = scalar_select %p205, %s16, 3
      %s207 = smul.addr %s206, 8
      %s208 = scalar_lea.vmem %s4, %s207
      %v210 = vld [vmem:[%s199] sm:$0xf]
      %v211 = vld [vmem:[%s199 + $0x4] sm:$0xf]
      %v212 = vld [vmem:[%s199 + $0x8] sm:$0x1]
      %v213 = vld [vmem:[%s199 + $0xc] sm:$0xf]
      %v214 = vld [vmem:[%s199 + $0x10] sm:$0xf]
      %v215 = vld [vmem:[%s199 + $0x14] sm:$0x1]
      %v216 = vld [vmem:[%s199 + $0x18] sm:$0xf]
      %v217 = vld [vmem:[%s199 + $0x1c] sm:$0xf]
      %v218 = vld [vmem:[%s199 + $0x20] sm:$0x1]
      %v219 = vld [vmem:[%s199 + $0x24] sm:$0xf]
      %v220 = vld [vmem:[%s199 + $0x28] sm:$0xf]
      %v221 = vld [vmem:[%s199 + $0x2c] sm:$0x1]
      %v222 = vld [vmem:[%s199 + $0x30] sm:$0xf]
      %v223 = vld [vmem:[%s199 + $0x34] sm:$0xf]
      %v224 = vld [vmem:[%s199 + $0x38] sm:$0x1]
      %v225 = vld [vmem:[%s199 + $0x3c] sm:$0xf]
      %v226 = vld [vmem:[%s199 + $0x40] sm:$0xf]
      %v227 = vld [vmem:[%s199 + $0x44] sm:$0x1]
      %v228 = vld [vmem:[%s199 + $0x48] sm:$0xf]
      %v229 = vld [vmem:[%s199 + $0x4c] sm:$0xf]
      %v230 = vld [vmem:[%s199 + $0x50] sm:$0x1]
      %v231 = vld [vmem:[%s199 + $0x54] sm:$0xf]
      %v232 = vld [vmem:[%s199 + $0x58] sm:$0xf]
      %v233 = vld [vmem:[%s199 + $0x5c] sm:$0x1]
      %v234 = vld [vmem:[%s199 + $0x60] sm:$0xf]
      %v235 = vld [vmem:[%s199 + $0x64] sm:$0xf]
      %v236 = vld [vmem:[%s199 + $0x68] sm:$0x1]
      %v237 = vld [vmem:[%s199 + $0x6c] sm:$0xf]
      %v238 = vld [vmem:[%s199 + $0x70] sm:$0xf]
      %v239 = vld [vmem:[%s199 + $0x74] sm:$0x1]
      %v256 = vunpack.c.l.b16 %v210
      %v257 = vunpack.c.l.b16 %v211
      %v258 = vunpack.c.l.b16 %v213
      %v259 = vunpack.c.l.b16 %v214
      %v260 = vunpack.c.l.b16 %v216
      %v261 = vunpack.c.l.b16 %v217
      %v262 = vunpack.c.l.b16 %v219
      %v263 = vunpack.c.l.b16 %v220
      %v264 = vunpack.c.l.b16 %v222
      %v265 = vunpack.c.l.b16 %v223
      %v266 = vunpack.c.l.b16 %v225
      %v267 = vunpack.c.l.b16 %v226
      %v268 = vunpack.c.l.b16 %v228
      %v269 = vunpack.c.l.b16 %v229
      %v270 = vunpack.c.l.b16 %v231
      %v271 = vunpack.c.l.b16 %v232
      %v272 = vpack.c.b16 %v257, %v256
      %v273 = vpack.c.b16 %v259, %v258
      %v274 = vpack.c.b16 %v261, %v260
      %v275 = vpack.c.b16 %v263, %v262
      %v276 = vpack.c.b16 %v265, %v264
      %v277 = vpack.c.b16 %v267, %v266
      %v278 = vpack.c.b16 %v269, %v268
      %v279 = vpack.c.b16 %v271, %v270
      %v296 = vunpack.c.l.b16 %v212
      %v297 = vunpack.c.l.b16 %v215
      %v298 = vunpack.c.l.b16 %v218
      %v299 = vunpack.c.l.b16 %v221
      %v300 = vunpack.c.l.b16 %v224
      %v301 = vunpack.c.l.b16 %v227
      %v302 = vunpack.c.l.b16 %v230
      %v303 = vunpack.c.l.b16 %v233
      %v304 = vpack.c.b16 %v296, %v296
      %v305 = vpack.c.b16 %v297, %v297
      %v306 = vpack.c.b16 %v298, %v298
      %v307 = vpack.c.b16 %v299, %v299
      %v308 = vpack.c.b16 %v300, %v300
      %v309 = vpack.c.b16 %v301, %v301
      %v310 = vpack.c.b16 %v302, %v302
      %v311 = vpack.c.b16 %v303, %v303
      %vm312 = vsmask.f32 7424
      %v314 = vshrl.u32 %v272, 16
      %v316 = vshll.u32 %v272, 16
      %v318 = vrot.slane %v316, 1
      %v319 = vor.u32 %v314, %v318
      %v321 = vshll.u32 %v304, 16
      %v323 = vrot.slane %v321, 1
      %v324 = vsel %vm312, %v319, %v323
      %v326 = vshrl.u32 %v273, 16
      %v328 = vshll.u32 %v273, 16
      %v330 = vrot.slane %v328, 1
      %v331 = vor.u32 %v326, %v330
      %v333 = vshll.u32 %v305, 16
      %v335 = vrot.slane %v333, 1
      %v336 = vsel %vm312, %v331, %v335
      %v338 = vshrl.u32 %v274, 16
      %v340 = vshll.u32 %v274, 16
      %v342 = vrot.slane %v340, 1
      %v343 = vor.u32 %v338, %v342
      %v345 = vshll.u32 %v306, 16
      %v347 = vrot.slane %v345, 1
      %v348 = vsel %vm312, %v343, %v347
      %v350 = vshrl.u32 %v275, 16
      %v352 = vshll.u32 %v275, 16
      %v354 = vrot.slane %v352, 1
      %v355 = vor.u32 %v350, %v354
      %v357 = vshll.u32 %v307, 16
      %v359 = vrot.slane %v357, 1
      %v360 = vsel %vm312, %v355, %v359
      %v362 = vshrl.u32 %v276, 16
      %v364 = vshll.u32 %v276, 16
      %v366 = vrot.slane %v364, 1
      %v367 = vor.u32 %v362, %v366
      %v369 = vshll.u32 %v308, 16
      %v371 = vrot.slane %v369, 1
      %v372 = vsel %vm312, %v367, %v371
      %v374 = vshrl.u32 %v277, 16
      %v376 = vshll.u32 %v277, 16
      %v378 = vrot.slane %v376, 1
      %v379 = vor.u32 %v374, %v378
      %v381 = vshll.u32 %v309, 16
      %v383 = vrot.slane %v381, 1
      %v384 = vsel %vm312, %v379, %v383
      %v386 = vshrl.u32 %v278, 16
      %v388 = vshll.u32 %v278, 16
      %v390 = vrot.slane %v388, 1
      %v391 = vor.u32 %v386, %v390
      %v393 = vshll.u32 %v310, 16
      %v395 = vrot.slane %v393, 1
      %v396 = vsel %vm312, %v391, %v395
      %v398 = vshrl.u32 %v279, 16
      %v400 = vshll.u32 %v279, 16
      %v402 = vrot.slane %v400, 1
      %v403 = vor.u32 %v398, %v402
      %v405 = vshll.u32 %v311, 16
      %v407 = vrot.slane %v405, 1
      %v408 = vsel %vm312, %v403, %v407
      %vm417 = vcmask 1046528
      %v418 = vrot.slane %v272, 1
      %v419 = vrot.slane %v304, 1
      %v420 = vsel %vm417, %v418, %v419
      %v421 = vrot.slane %v273, 1
      %v422 = vrot.slane %v305, 1
      %v423 = vsel %vm417, %v421, %v422
      %v424 = vrot.slane %v274, 1
      %v425 = vrot.slane %v306, 1
      %v426 = vsel %vm417, %v424, %v425
      %v427 = vrot.slane %v275, 1
      %v428 = vrot.slane %v307, 1
      %v429 = vsel %vm417, %v427, %v428
      %v430 = vrot.slane %v276, 1
      %v431 = vrot.slane %v308, 1
      %v432 = vsel %vm417, %v430, %v431
      %v433 = vrot.slane %v277, 1
      %v434 = vrot.slane %v309, 1
      %v435 = vsel %vm417, %v433, %v434
      %v436 = vrot.slane %v278, 1
      %v437 = vrot.slane %v310, 1
      %v438 = vsel %vm417, %v436, %v437
      %v439 = vrot.slane %v279, 1
      %v440 = vrot.slane %v311, 1
      %v441 = vsel %vm417, %v439, %v440
      %v452 = vunpack.c.l.b16 %v234
      %v453 = vunpack.c.l.b16 %v235
      %v454 = vpack.c.b16 %v453, %v452
      %v457 = vunpack.c.l.b16 %v236
      %v458 = vpack.c.b16 %v457, %v457
      %v460 = vshrl.u32 %v454, 16
      %v462 = vshll.u32 %v454, 16
      %v464 = vrot.slane %v462, 1
      %v465 = vor.u32 %v460, %v464
      %v467 = vshll.u32 %v458, 16
      %v469 = vrot.slane %v467, 1
      %v470 = vsel %vm312, %v465, %v469
      %v472 = vrot.slane %v454, 1
      %v473 = vrot.slane %v458, 1
      %v474 = vsel %vm417, %v472, %v473
      %v478 = vunpack.c.l.b16 %v237
      %v479 = vunpack.c.l.b16 %v238
      %v480 = vpack.c.b16 %v479, %v478
      %v483 = vunpack.c.l.b16 %v239
      %v484 = vpack.c.b16 %v483, %v483
      %v486 = vshrl.u32 %v480, 16
      %v488 = vshll.u32 %v480, 16
      %v490 = vrot.slane %v488, 1
      %v491 = vor.u32 %v486, %v490
      %v493 = vshll.u32 %v484, 16
      %v495 = vrot.slane %v493, 1
      %v496 = vsel %vm312, %v491, %v495
      %v498 = vrot.slane %v480, 1
      %v499 = vrot.slane %v484, 1
      %v500 = vsel %vm417, %v498, %v499
      %v502 = vld [vmem:[%s1] sm:$0xf]
      %v503 = vld [vmem:[%s1 + $0x4] sm:$0xf]
      %v504 = vld [vmem:[%s1 + $0x8] sm:$0xf]
      %v505 = vld [vmem:[%s1 + $0xc] sm:$0xf]
      %v506 = vld [vmem:[%s1 + $0x10] sm:$0xf]
      %v507 = vld [vmem:[%s1 + $0x14] sm:$0xf]
      %v508 = vld [vmem:[%s1 + $0x18] sm:$0xf]
      %v509 = vld [vmem:[%s1 + $0x1c] sm:$0xf]
      %v510 = vld [vmem:[%s1 + $0x20] sm:$0xf]
      %v511 = vld [vmem:[%s1 + $0x24] sm:$0xf]
      %v512 = vld [vmem:[%s1 + $0x28] sm:$0xf]
      %v513 = vld [vmem:[%s1 + $0x2c] sm:$0xf]
      %v514 = vld [vmem:[%s1 + $0x30] sm:$0xf]
      %v515 = vld [vmem:[%s1 + $0x34] sm:$0xf]
      %v516 = vld [vmem:[%s1 + $0x38] sm:$0xf]
      %v517 = vld [vmem:[%s1 + $0x3c] sm:$0xf]
      %v518 = vld [vmem:[%s1 + $0x40] sm:$0xf]
      %v519 = vld [vmem:[%s1 + $0x44] sm:$0xf]
      %v520 = vld [vmem:[%s1 + $0x48] sm:$0xf]
      %v521 = vld [vmem:[%s1 + $0x4c] sm:$0xf]
      %v522 = vld [vmem:[%s1 + $0x50] sm:$0xf]
      %v523 = vld [vmem:[%s1 + $0x54] sm:$0xf]
      %v524 = vld [vmem:[%s1 + $0x58] sm:$0xf]
      %v525 = vld [vmem:[%s1 + $0x5c] sm:$0xf]
      %v526 = vld [vmem:[%s1 + $0x60] sm:$0xf]
      %v527 = vld [vmem:[%s1 + $0x64] sm:$0xf]
      %v528 = vld [vmem:[%s1 + $0x68] sm:$0xf]
      %v529 = vld [vmem:[%s1 + $0x6c] sm:$0xf]
      %v530 = vld [vmem:[%s1 + $0x70] sm:$0xf]
      %v531 = vld [vmem:[%s1 + $0x74] sm:$0xf]
      %v532 = vld [vmem:[%s1 + $0x78] sm:$0xf]
      %v533 = vld [vmem:[%s1 + $0x7c] sm:$0xf]
      %v534 = vld [vmem:[%s1 + $0x80] sm:$0xf]
      %v535 = vld [vmem:[%s1 + $0x84] sm:$0xf]
      %v536 = vld [vmem:[%s1 + $0x88] sm:$0xf]
      %v537 = vld [vmem:[%s1 + $0x8c] sm:$0xf]
      %v538 = vld [vmem:[%s1 + $0x90] sm:$0xf]
      %v539 = vld [vmem:[%s1 + $0x94] sm:$0xf]
      %v540 = vld [vmem:[%s1 + $0x98] sm:$0xf]
      %v541 = vld [vmem:[%s1 + $0x9c] sm:$0xf]
      %v542 = vld [vmem:[%s1 + $0xa0] sm:$0xf]
      %v543 = vld [vmem:[%s1 + $0xa4] sm:$0xf]
      %v544 = vld [vmem:[%s1 + $0xa8] sm:$0xf]
      %v545 = vld [vmem:[%s1 + $0xac] sm:$0xf]
      %v546 = vld [vmem:[%s1 + $0xb0] sm:$0xf]
      %v547 = vld [vmem:[%s1 + $0xb4] sm:$0xf]
      %v548 = vld [vmem:[%s1 + $0xb8] sm:$0xf]
      %v549 = vld [vmem:[%s1 + $0xbc] sm:$0xf]
      %v550 = vld [vmem:[%s1 + $0xc0] sm:$0xf]
      %v551 = vld [vmem:[%s1 + $0xc4] sm:$0xf]
      %v552 = vld [vmem:[%s1 + $0xc8] sm:$0xf]
      %v553 = vld [vmem:[%s1 + $0xcc] sm:$0xf]
      %v554 = vld [vmem:[%s1 + $0xd0] sm:$0xf]
      %v555 = vld [vmem:[%s1 + $0xd4] sm:$0xf]
      %v556 = vld [vmem:[%s1 + $0xd8] sm:$0xf]
      %v557 = vld [vmem:[%s1 + $0xdc] sm:$0xf]
      %v558 = vld [vmem:[%s1 + $0xe0] sm:$0xf]
      %v559 = vld [vmem:[%s1 + $0xe4] sm:$0xf]
      %v560 = vld [vmem:[%s1 + $0xe8] sm:$0xf]
      %v561 = vld [vmem:[%s1 + $0xec] sm:$0xf]
      %v562 = vld [vmem:[%s1 + $0xf0] sm:$0xf]
      %v563 = vld [vmem:[%s1 + $0xf4] sm:$0xf]
      %v564 = vld [vmem:[%s1 + $0xf8] sm:$0xf]
      %v565 = vld [vmem:[%s1 + $0xfc] sm:$0xf]
      %v566 = vld [vmem:[%s1 + $0x100] sm:$0xf]
      %v567 = vld [vmem:[%s1 + $0x104] sm:$0xf]
      %v568 = vld [vmem:[%s1 + $0x108] sm:$0xf]
      %v569 = vld [vmem:[%s1 + $0x10c] sm:$0xf]
      %v570 = vld [vmem:[%s1 + $0x110] sm:$0xf]
      %v571 = vld [vmem:[%s1 + $0x114] sm:$0xf]
      %v572 = vld [vmem:[%s1 + $0x118] sm:$0xf]
      %v573 = vld [vmem:[%s1 + $0x11c] sm:$0xf]
      %v574 = vld [vmem:[%s1 + $0x120] sm:$0xf]
      %v575 = vld [vmem:[%s1 + $0x124] sm:$0xf]
      %v576 = vld [vmem:[%s1 + $0x128] sm:$0xf]
      %v577 = vld [vmem:[%s1 + $0x12c] sm:$0xf]
      %v578 = vld [vmem:[%s1 + $0x130] sm:$0xf]
      %v579 = vld [vmem:[%s1 + $0x134] sm:$0xf]
      %v580 = vld [vmem:[%s1 + $0x138] sm:$0xf]
      %v581 = vld [vmem:[%s1 + $0x13c] sm:$0xf]
      %v582 = vld [vmem:[%s1 + $0x140] sm:$0xf]
      %v583 = vld [vmem:[%s1 + $0x144] sm:$0xf]
      %v584 = vld [vmem:[%s1 + $0x148] sm:$0xf]
      %v585 = vld [vmem:[%s1 + $0x14c] sm:$0xf]
      %v586 = vld [vmem:[%s1 + $0x150] sm:$0xf]
      %v587 = vld [vmem:[%s1 + $0x154] sm:$0xf]
      %v588 = vld [vmem:[%s1 + $0x158] sm:$0xf]
      %v589 = vld [vmem:[%s1 + $0x15c] sm:$0xf]
      %v590 = vld [vmem:[%s1 + $0x160] sm:$0xf]
      %v591 = vld [vmem:[%s1 + $0x164] sm:$0xf]
      %v592 = vld [vmem:[%s1 + $0x168] sm:$0xf]
      %v593 = vld [vmem:[%s1 + $0x16c] sm:$0xf]
      %v594 = vld [vmem:[%s1 + $0x170] sm:$0xf]
      %v595 = vld [vmem:[%s1 + $0x174] sm:$0xf]
      %v596 = vld [vmem:[%s1 + $0x178] sm:$0xf]
      %v597 = vld [vmem:[%s1 + $0x17c] sm:$0xf]
      %v598 = vld [vmem:[%s1 + $0x180] sm:$0xf]
      %v599 = vld [vmem:[%s1 + $0x184] sm:$0xf]
      %v600 = vld [vmem:[%s1 + $0x188] sm:$0xf]
      %v601 = vld [vmem:[%s1 + $0x18c] sm:$0xf]
      %v602 = vld [vmem:[%s1 + $0x190] sm:$0xf]
      %v603 = vld [vmem:[%s1 + $0x194] sm:$0xf]
      %v604 = vld [vmem:[%s1 + $0x198] sm:$0xf]
      %v605 = vld [vmem:[%s1 + $0x19c] sm:$0xf]
      %v606 = vld [vmem:[%s1 + $0x1a0] sm:$0xf]
      %v607 = vld [vmem:[%s1 + $0x1a4] sm:$0xf]
      %v608 = vld [vmem:[%s1 + $0x1a8] sm:$0xf]
      %v609 = vld [vmem:[%s1 + $0x1ac] sm:$0xf]
      %v610 = vld [vmem:[%s1 + $0x1b0] sm:$0xf]
      %v611 = vld [vmem:[%s1 + $0x1b4] sm:$0xf]
      %v612 = vld [vmem:[%s1 + $0x1b8] sm:$0xf]
      %v613 = vld [vmem:[%s1 + $0x1bc] sm:$0xf]
      %v614 = vld [vmem:[%s1 + $0x1c0] sm:$0xf]
      %v615 = vld [vmem:[%s1 + $0x1c4] sm:$0xf]
      %v616 = vld [vmem:[%s1 + $0x1c8] sm:$0xf]
      %v617 = vld [vmem:[%s1 + $0x1cc] sm:$0xf]
      %v618 = vld [vmem:[%s1 + $0x1d0] sm:$0xf]
      %v619 = vld [vmem:[%s1 + $0x1d4] sm:$0xf]
      %v620 = vld [vmem:[%s1 + $0x1d8] sm:$0xf]
      %v621 = vld [vmem:[%s1 + $0x1dc] sm:$0xf]
      %v622 = vld [vmem:[%s1 + $0x1e0] sm:$0xf]
      %v623 = vld [vmem:[%s1 + $0x1e4] sm:$0xf]
      %v624 = vld [vmem:[%s1 + $0x1e8] sm:$0xf]
      %v625 = vld [vmem:[%s1 + $0x1ec] sm:$0xf]
      %v626 = vld [vmem:[%s1 + $0x1f0] sm:$0xf]
      %v627 = vld [vmem:[%s1 + $0x1f4] sm:$0xf]
      %v628 = vld [vmem:[%s1 + $0x1f8] sm:$0xf]
      %v629 = vld [vmem:[%s1 + $0x1fc] sm:$0xf]
      %v630 = vld [vmem:[%s1 + $0x200] sm:$0xf]
      %v631 = vld [vmem:[%s1 + $0x204] sm:$0xf]
      %v632 = vld [vmem:[%s1 + $0x208] sm:$0xf]
      %v633 = vld [vmem:[%s1 + $0x20c] sm:$0xf]
      %v634 = vld [vmem:[%s1 + $0x210] sm:$0xf]
      %v635 = vld [vmem:[%s1 + $0x214] sm:$0xf]
      %v636 = vld [vmem:[%s1 + $0x218] sm:$0xf]
      %v637 = vld [vmem:[%s1 + $0x21c] sm:$0xf]
      %v638 = vld [vmem:[%s1 + $0x220] sm:$0xf]
      %v639 = vld [vmem:[%s1 + $0x224] sm:$0xf]
      %v640 = vld [vmem:[%s1 + $0x228] sm:$0xf]
      %v641 = vld [vmem:[%s1 + $0x22c] sm:$0xf]
      %v642 = vld [vmem:[%s1 + $0x230] sm:$0xf]
      %v643 = vld [vmem:[%s1 + $0x234] sm:$0xf]
      %v644 = vld [vmem:[%s1 + $0x238] sm:$0xf]
      %v645 = vld [vmem:[%s1 + $0x23c] sm:$0xf]
      %v646 = vld [vmem:[%s2] sm:$0x1]
      %v648 = vlaneseq
      %v649 = vshrl.u32 %v648, 7
      %v650 = vsub.s32 0, %v649
      %v651 = vrot.slane %v646, %v650
      %v797 = vunpack.c.l.b16 %v502
      %v798 = vunpack.c.l.b16 %v503
      %v799 = vunpack.c.l.b16 %v504
      %v800 = vunpack.c.l.b16 %v505
      %v801 = vunpack.c.l.b16 %v506
      %v802 = vunpack.c.l.b16 %v507
      %v803 = vunpack.c.l.b16 %v508
      %v804 = vunpack.c.l.b16 %v509
      %v805 = vunpack.c.l.b16 %v510
      %v806 = vunpack.c.l.b16 %v511
      %v807 = vunpack.c.l.b16 %v512
      %v808 = vunpack.c.l.b16 %v513
      %v809 = vunpack.c.l.b16 %v514
      %v810 = vunpack.c.l.b16 %v515
      %v811 = vunpack.c.l.b16 %v516
      %v812 = vunpack.c.l.b16 %v517
      %v813 = vunpack.c.l.b16 %v518
      %v814 = vunpack.c.l.b16 %v519
      %v815 = vunpack.c.l.b16 %v520
      %v816 = vunpack.c.l.b16 %v521
      %v817 = vunpack.c.l.b16 %v522
      %v818 = vunpack.c.l.b16 %v523
      %v819 = vunpack.c.l.b16 %v524
      %v820 = vunpack.c.l.b16 %v525
      %v821 = vunpack.c.l.b16 %v526
      %v822 = vunpack.c.l.b16 %v527
      %v823 = vunpack.c.l.b16 %v528
      %v824 = vunpack.c.l.b16 %v529
      %v825 = vunpack.c.l.b16 %v530
      %v826 = vunpack.c.l.b16 %v531
      %v827 = vunpack.c.l.b16 %v532
      %v828 = vunpack.c.l.b16 %v533
      %v829 = vunpack.c.l.b16 %v534
      %v830 = vunpack.c.l.b16 %v535
      %v831 = vunpack.c.l.b16 %v536
      %v832 = vunpack.c.l.b16 %v537
      %v833 = vunpack.c.l.b16 %v538
      %v834 = vunpack.c.l.b16 %v539
      %v835 = vunpack.c.l.b16 %v540
      %v836 = vunpack.c.l.b16 %v541
      %v837 = vunpack.c.l.b16 %v542
      %v838 = vunpack.c.l.b16 %v543
      %v839 = vunpack.c.l.b16 %v544
      %v840 = vunpack.c.l.b16 %v545
      %v841 = vunpack.c.l.b16 %v546
      %v842 = vunpack.c.l.b16 %v547
      %v843 = vunpack.c.l.b16 %v548
      %v844 = vunpack.c.l.b16 %v549
      %v845 = vunpack.c.l.b16 %v550
      %v846 = vunpack.c.l.b16 %v551
      %v847 = vunpack.c.l.b16 %v552
      %v848 = vunpack.c.l.b16 %v553
      %v849 = vunpack.c.l.b16 %v554
      %v850 = vunpack.c.l.b16 %v555
      %v851 = vunpack.c.l.b16 %v556
      %v852 = vunpack.c.l.b16 %v557
      %v853 = vunpack.c.l.b16 %v558
      %v854 = vunpack.c.l.b16 %v559
      %v855 = vunpack.c.l.b16 %v560
      %v856 = vunpack.c.l.b16 %v561
      %v857 = vunpack.c.l.b16 %v562
      %v858 = vunpack.c.l.b16 %v563
      %v859 = vunpack.c.l.b16 %v564
      %v860 = vunpack.c.l.b16 %v565
      %v861 = vunpack.c.l.b16 %v566
      %v862 = vunpack.c.l.b16 %v567
      %v863 = vunpack.c.l.b16 %v568
      %v864 = vunpack.c.l.b16 %v569
      %v865 = vunpack.c.l.b16 %v570
      %v866 = vunpack.c.l.b16 %v571
      %v867 = vunpack.c.l.b16 %v572
      %v868 = vunpack.c.l.b16 %v573
      %v869 = vunpack.c.l.b16 %v574
      %v870 = vunpack.c.l.b16 %v575
      %v871 = vunpack.c.l.b16 %v576
      %v872 = vunpack.c.l.b16 %v577
      %v873 = vunpack.c.l.b16 %v578
      %v874 = vunpack.c.l.b16 %v579
      %v875 = vunpack.c.l.b16 %v580
      %v876 = vunpack.c.l.b16 %v581
      %v877 = vunpack.c.l.b16 %v582
      %v878 = vunpack.c.l.b16 %v583
      %v879 = vunpack.c.l.b16 %v584
      %v880 = vunpack.c.l.b16 %v585
      %v881 = vunpack.c.l.b16 %v586
      %v882 = vunpack.c.l.b16 %v587
      %v883 = vunpack.c.l.b16 %v588
      %v884 = vunpack.c.l.b16 %v589
      %v885 = vunpack.c.l.b16 %v590
      %v886 = vunpack.c.l.b16 %v591
      %v887 = vunpack.c.l.b16 %v592
      %v888 = vunpack.c.l.b16 %v593
      %v889 = vunpack.c.l.b16 %v594
      %v890 = vunpack.c.l.b16 %v595
      %v891 = vunpack.c.l.b16 %v596
      %v892 = vunpack.c.l.b16 %v597
      %v893 = vunpack.c.l.b16 %v598
      %v894 = vunpack.c.l.b16 %v599
      %v895 = vunpack.c.l.b16 %v600
      %v896 = vunpack.c.l.b16 %v601
      %v897 = vunpack.c.l.b16 %v602
      %v898 = vunpack.c.l.b16 %v603
      %v899 = vunpack.c.l.b16 %v604
      %v900 = vunpack.c.l.b16 %v605
      %v901 = vunpack.c.l.b16 %v606
      %v902 = vunpack.c.l.b16 %v607
      %v903 = vunpack.c.l.b16 %v608
      %v904 = vunpack.c.l.b16 %v609
      %v905 = vunpack.c.l.b16 %v610
      %v906 = vunpack.c.l.b16 %v611
      %v907 = vunpack.c.l.b16 %v612
      %v908 = vunpack.c.l.b16 %v613
      %v909 = vunpack.c.l.b16 %v614
      %v910 = vunpack.c.l.b16 %v615
      %v911 = vunpack.c.l.b16 %v616
      %v912 = vunpack.c.l.b16 %v617
      %v913 = vunpack.c.l.b16 %v618
      %v914 = vunpack.c.l.b16 %v619
      %v915 = vunpack.c.l.b16 %v620
      %v916 = vunpack.c.l.b16 %v621
      %v917 = vunpack.c.l.b16 %v622
      %v918 = vunpack.c.l.b16 %v623
      %v919 = vunpack.c.l.b16 %v624
      %v920 = vunpack.c.l.b16 %v625
      %v921 = vunpack.c.l.b16 %v626
      %v922 = vunpack.c.l.b16 %v627
      %v923 = vunpack.c.l.b16 %v628
      %v924 = vunpack.c.l.b16 %v629
      %v925 = vunpack.c.l.b16 %v630
      %v926 = vunpack.c.l.b16 %v631
      %v927 = vunpack.c.l.b16 %v632
      %v928 = vunpack.c.l.b16 %v633
      %v929 = vunpack.c.l.b16 %v634
      %v930 = vunpack.c.l.b16 %v635
      %v931 = vunpack.c.l.b16 %v636
      %v932 = vunpack.c.l.b16 %v637
      %v933 = vunpack.c.l.b16 %v638
      %v934 = vunpack.c.l.b16 %v639
      %v935 = vunpack.c.l.b16 %v640
      %v936 = vunpack.c.l.b16 %v641
      %v937 = vunpack.c.l.b16 %v642
      %v938 = vunpack.c.l.b16 %v643
      %v939 = vunpack.c.l.b16 %v644
      %v940 = vunpack.c.l.b16 %v645
      %v941 = vpack.c.b16 %v798, %v797
      %v942 = vpack.c.b16 %v800, %v799
      %v943 = vpack.c.b16 %v802, %v801
      %v944 = vpack.c.b16 %v804, %v803
      %v945 = vpack.c.b16 %v806, %v805
      %v946 = vpack.c.b16 %v808, %v807
      %v947 = vpack.c.b16 %v810, %v809
      %v948 = vpack.c.b16 %v812, %v811
      %v949 = vpack.c.b16 %v814, %v813
      %v950 = vpack.c.b16 %v816, %v815
      %v951 = vpack.c.b16 %v818, %v817
      %v952 = vpack.c.b16 %v820, %v819
      %v953 = vpack.c.b16 %v822, %v821
      %v954 = vpack.c.b16 %v824, %v823
      %v955 = vpack.c.b16 %v826, %v825
      %v956 = vpack.c.b16 %v828, %v827
      %v957 = vpack.c.b16 %v830, %v829
      %v958 = vpack.c.b16 %v832, %v831
      %v959 = vpack.c.b16 %v834, %v833
      %v960 = vpack.c.b16 %v836, %v835
      %v961 = vpack.c.b16 %v838, %v837
      %v962 = vpack.c.b16 %v840, %v839
      %v963 = vpack.c.b16 %v842, %v841
      %v964 = vpack.c.b16 %v844, %v843
      %v965 = vpack.c.b16 %v846, %v845
      %v966 = vpack.c.b16 %v848, %v847
      %v967 = vpack.c.b16 %v850, %v849
      %v968 = vpack.c.b16 %v852, %v851
      %v969 = vpack.c.b16 %v854, %v853
      %v970 = vpack.c.b16 %v856, %v855
      %v971 = vpack.c.b16 %v858, %v857
      %v972 = vpack.c.b16 %v860, %v859
      %v973 = vpack.c.b16 %v862, %v861
      %v974 = vpack.c.b16 %v864, %v863
      %v975 = vpack.c.b16 %v866, %v865
      %v976 = vpack.c.b16 %v868, %v867
      %v977 = vpack.c.b16 %v870, %v869
      %v978 = vpack.c.b16 %v872, %v871
      %v979 = vpack.c.b16 %v874, %v873
      %v980 = vpack.c.b16 %v876, %v875
      %v981 = vpack.c.b16 %v878, %v877
      %v982 = vpack.c.b16 %v880, %v879
      %v983 = vpack.c.b16 %v882, %v881
      %v984 = vpack.c.b16 %v884, %v883
      %v985 = vpack.c.b16 %v886, %v885
      %v986 = vpack.c.b16 %v888, %v887
      %v987 = vpack.c.b16 %v890, %v889
      %v988 = vpack.c.b16 %v892, %v891
      %v989 = vpack.c.b16 %v894, %v893
      %v990 = vpack.c.b16 %v896, %v895
      %v991 = vpack.c.b16 %v898, %v897
      %v992 = vpack.c.b16 %v900, %v899
      %v993 = vpack.c.b16 %v902, %v901
      %v994 = vpack.c.b16 %v904, %v903
      %v995 = vpack.c.b16 %v906, %v905
      %v996 = vpack.c.b16 %v908, %v907
      %v997 = vpack.c.b16 %v910, %v909
      %v998 = vpack.c.b16 %v912, %v911
      %v999 = vpack.c.b16 %v914, %v913
      %v1000 = vpack.c.b16 %v916, %v915
      %v1001 = vpack.c.b16 %v918, %v917
      %v1002 = vpack.c.b16 %v920, %v919
      %v1003 = vpack.c.b16 %v922, %v921
      %v1004 = vpack.c.b16 %v924, %v923
      %v1005 = vpack.c.b16 %v926, %v925
      %v1006 = vpack.c.b16 %v928, %v927
      %v1007 = vpack.c.b16 %v930, %v929
      %v1008 = vpack.c.b16 %v932, %v931
      %v1009 = vpack.c.b16 %v934, %v933
      %v1010 = vpack.c.b16 %v936, %v935
      %v1011 = vpack.c.b16 %v938, %v937
      %v1012 = vpack.c.b16 %v940, %v939
      %1085 = vmatprep.subr.bf16.mxu0 0
      %1086 = vmatpush1.bf16.msra.mxu0 %v941
      %1087 = vmatprep.subr.bf16.mxu0 0
      %1088 = vmatpush1.bf16.msra.mxu0 %v942
      %1089 = vmatprep.subr.bf16.mxu0 0
      %1090 = vmatpush1.bf16.msra.mxu0 %v943
      %1091 = vmatprep.subr.bf16.mxu0 0
      %1092 = vmatpush1.bf16.msra.mxu0 %v944
      %1093 = vmatprep.subr.bf16.mxu0 0
      %1094 = vmatpush1.bf16.msra.mxu0 %v945
      %1095 = vmatprep.subr.bf16.mxu0 0
      %1096 = vmatpush1.bf16.msra.mxu0 %v946
      %1097 = vmatprep.subr.bf16.mxu0 0
      %1098 = vmatpush1.bf16.msra.mxu0 %v947
      %1099 = vmatprep.subr.bf16.mxu0 0
      %1100 = vmatpush1.bf16.msra.mxu0 %v948
      %1101 = vmatprep.subr.bf16.mxu0 0
      %1102 = vmatpush1.bf16.msra.mxu0 %v949
      %1103 = vmatprep.subr.bf16.mxu0 0
      %1104 = vmatpush1.bf16.msra.mxu0 %v950
      %1105 = vmatprep.subr.bf16.mxu0 0
      %1106 = vmatpush1.bf16.msra.mxu0 %v951
      %1107 = vmatprep.subr.bf16.mxu0 0
      %1108 = vmatpush1.bf16.msra.mxu0 %v952
      %1109 = vmatprep.subr.bf16.mxu0 0
      %1110 = vmatpush1.bf16.msra.mxu0 %v953
      %1111 = vmatprep.subr.bf16.mxu0 0
      %1112 = vmatpush1.bf16.msra.mxu0 %v954
      %1113 = vmatprep.subr.bf16.mxu0 0
      %1114 = vmatpush1.bf16.msra.mxu0 %v955
      %1115 = vmatprep.subr.bf16.mxu0 0
      %1116 = vmatpush1.bf16.msra.mxu0 %v956
      %1117 = vmatprep.mubr.bf16.mxu0 %v324
      %1118 = vmatmul.mubr.bf16.gmra.mrb[0].mxu0 %v272
      %v1119 = vpop.f32.mrb[0].mxu0
      %v1120 = vadd.f32 %v651, %v1119
      %v1121 = vpop.f32.mrb[0].mxu0
      %v1122 = vpop.f32.mrb[0].mxu0
      %v1123 = vadd.f32 %v651, %v1122
      %v1124 = vpop.f32.mrb[0].mxu0
      %1125 = vmatprep.mubr.bf16.mxu0 %v336
      %1126 = vmatmul.mubr.bf16.gmra.mrb[0].mxu0 %v273
      %v1127 = vpop.f32.mrb[0].mxu0
      %v1128 = vadd.f32 %v651, %v1127
      %v1129 = vpop.f32.mrb[0].mxu0
      %v1130 = vpop.f32.mrb[0].mxu0
      %v1131 = vadd.f32 %v651, %v1130
      %v1132 = vpop.f32.mrb[0].mxu0
      %1133 = vmatprep.mubr.bf16.mxu0 %v348
      %1134 = vmatmul.mubr.bf16.gmra.mrb[0].mxu0 %v274
      %v1135 = vpop.f32.mrb[0].mxu0
      %v1136 = vadd.f32 %v651, %v1135
      %v1137 = vpop.f32.mrb[0].mxu0
      %v1138 = vpop.f32.mrb[0].mxu0
      %v1139 = vadd.f32 %v651, %v1138
      %v1140 = vpop.f32.mrb[0].mxu0
      %1141 = vmatprep.mubr.bf16.mxu0 %v360
      %1142 = vmatmul.mubr.bf16.gmra.mrb[0].mxu0 %v275
      %v1143 = vpop.f32.mrb[0].mxu0
      %v1144 = vadd.f32 %v651, %v1143
      %v1145 = vpop.f32.mrb[0].mxu0
      %v1146 = vpop.f32.mrb[0].mxu0
      %v1147 = vadd.f32 %v651, %v1146
      %v1148 = vpop.f32.mrb[0].mxu0
      %1149 = vmatprep.mubr.bf16.mxu0 %v372
      %1150 = vmatmul.mubr.bf16.gmra.mrb[0].mxu0 %v276
      %v1151 = vpop.f32.mrb[0].mxu0
      %v1152 = vadd.f32 %v651, %v1151
      %v1153 = vpop.f32.mrb[0].mxu0
      %v1154 = vpop.f32.mrb[0].mxu0
      %v1155 = vadd.f32 %v651, %v1154
      %v1156 = vpop.f32.mrb[0].mxu0
      %1157 = vmatprep.mubr.bf16.mxu0 %v384
      %1158 = vmatmul.mubr.bf16.gmra.mrb[0].mxu0 %v277
      %v1159 = vpop.f32.mrb[0].mxu0
      %v1160 = vadd.f32 %v651, %v1159
      %v1161 = vpop.f32.mrb[0].mxu0
      %v1162 = vpop.f32.mrb[0].mxu0
      %v1163 = vadd.f32 %v651, %v1162
      %v1164 = vpop.f32.mrb[0].mxu0
      %1165 = vmatprep.mubr.bf16.mxu0 %v396
      %1166 = vmatmul.mubr.bf16.gmra.mrb[0].mxu0 %v278
      %v1167 = vpop.f32.mrb[0].mxu0
      %v1168 = vadd.f32 %v651, %v1167
      %v1169 = vpop.f32.mrb[0].mxu0
      %v1170 = vpop.f32.mrb[0].mxu0
      %v1171 = vadd.f32 %v651, %v1170
      %v1172 = vpop.f32.mrb[0].mxu0
      %1173 = vmatprep.mubr.bf16.mxu0 %v408
      %1174 = vmatmul.mubr.bf16.gmra.mrb[0].mxu0 %v279
      %v1175 = vpop.f32.mrb[0].mxu0
      %v1176 = vadd.f32 %v651, %v1175
      %v1177 = vpop.f32.mrb[0].mxu0
      %v1178 = vpop.f32.mrb[0].mxu0
      %v1179 = vadd.f32 %v651, %v1178
      %v1180 = vpop.f32.mrb[0].mxu0
      %1181 = vdwg.mxu0
      %1182 = vmatprep.subr.bf16.mxu0 0
      %1183 = vmatpush1.bf16.msra.mxu0 %v957
      %1184 = vmatprep.subr.bf16.mxu0 0
      %1185 = vmatpush1.bf16.msra.mxu0 %v958
      %1186 = vmatprep.subr.bf16.mxu0 0
      %1187 = vmatpush1.bf16.msra.mxu0 %v959
      %1188 = vmatprep.subr.bf16.mxu0 0
      %1189 = vmatpush1.bf16.msra.mxu0 %v960
      %1190 = vmatprep.subr.bf16.mxu0 0
      %1191 = vmatpush1.bf16.msra.mxu0 %v961
      %1192 = vmatprep.subr.bf16.mxu0 0
      %1193 = vmatpush1.bf16.msra.mxu0 %v962
      %1194 = vmatprep.subr.bf16.mxu0 0
      %1195 = vmatpush1.bf16.msra.mxu0 %v963
      %1196 = vmatprep.subr.bf16.mxu0 0
      %1197 = vmatpush1.bf16.msra.mxu0 %v964
      %1198 = vmatprep.subr.bf16.mxu0 0
      %1199 = vmatpush1.bf16.msra.mxu0 %v965
      %1200 = vmatprep.subr.bf16.mxu0 0
      %1201 = vmatpush1.bf16.msra.mxu0 %v966
      %1202 = vmatprep.subr.bf16.mxu0 0
      %1203 = vmatpush1.bf16.msra.mxu0 %v967
      %1204 = vmatprep.subr.bf16.mxu0 0
      %1205 = vmatpush1.bf16.msra.mxu0 %v968
      %1206 = vmatprep.subr.bf16.mxu0 0
      %1207 = vmatpush1.bf16.msra.mxu0 %v969
      %1208 = vmatprep.subr.bf16.mxu0 0
      %1209 = vmatpush1.bf16.msra.mxu0 %v970
      %1210 = vmatprep.subr.bf16.mxu0 0
      %1211 = vmatpush1.bf16.msra.mxu0 %v971
      %1212 = vmatprep.subr.bf16.mxu0 0
      %1213 = vmatpush1.bf16.msra.mxu0 %v972
      %1214 = vmatprep.mubr.bf16.mxu0 %v273
      %1215 = vmatmul.mubr.bf16.gmra.mrb[0].mxu0 %v420
      %v1216 = vpop.f32.mrb[0].mxu0
      %v1217 = vadd.f32 %v1120, %v1216
      %v1218 = vpop.f32.mrb[0].mxu0
      %v1219 = vpop.f32.mrb[0].mxu0
      %v1220 = vadd.f32 %v1123, %v1219
      %v1221 = vpop.f32.mrb[0].mxu0
      %1222 = vmatprep.mubr.bf16.mxu0 %v274
      %1223 = vmatmul.mubr.bf16.gmra.mrb[0].mxu0 %v423
      %v1224 = vpop.f32.mrb[0].mxu0
      %v1225 = vadd.f32 %v1128, %v1224
      %v1226 = vpop.f32.mrb[0].mxu0
      %v1227 = vpop.f32.mrb[0].mxu0
      %v1228 = vadd.f32 %v1131, %v1227
      %v1229 = vpop.f32.mrb[0].mxu0
      %1230 = vmatprep.mubr.bf16.mxu0 %v275
      %1231 = vmatmul.mubr.bf16.gmra.mrb[0].mxu0 %v426
      %v1232 = vpop.f32.mrb[0].mxu0
      %v1233 = vadd.f32 %v1136, %v1232
      %v1234 = vpop.f32.mrb[0].mxu0
      %v1235 = vpop.f32.mrb[0].mxu0
      %v1236 = vadd.f32 %v1139, %v1235
      %v1237 = vpop.f32.mrb[0].mxu0
      %1238 = vmatprep.mubr.bf16.mxu0 %v276
      %1239 = vmatmul.mubr.bf16.gmra.mrb[0].mxu0 %v429
      %v1240 = vpop.f32.mrb[0].mxu0
      %v1241 = vadd.f32 %v1144, %v1240
      %v1242 = vpop.f32.mrb[0].mxu0
      %v1243 = vpop.f32.mrb[0].mxu0
      %v1244 = vadd.f32 %v1147, %v1243
      %v1245 = vpop.f32.mrb[0].mxu0
      %1246 = vmatprep.mubr.bf16.mxu0 %v277
      %1247 = vmatmul.mubr.bf16.gmra.mrb[0].mxu0 %v432
      %v1248 = vpop.f32.mrb[0].mxu0
      %v1249 = vadd.f32 %v1152, %v1248
      %v1250 = vpop.f32.mrb[0].mxu0
      %v1251 = vpop.f32.mrb[0].mxu0
      %v1252 = vadd.f32 %v1155, %v1251
      %v1253 = vpop.f32.mrb[0].mxu0
      %1254 = vmatprep.mubr.bf16.mxu0 %v278
      %1255 = vmatmul.mubr.bf16.gmra.mrb[0].mxu0 %v435
      %v1256 = vpop.f32.mrb[0].mxu0
      %v1257 = vadd.f32 %v1160, %v1256
      %v1258 = vpop.f32.mrb[0].mxu0
      %v1259 = vpop.f32.mrb[0].mxu0
      %v1260 = vadd.f32 %v1163, %v1259
      %v1261 = vpop.f32.mrb[0].mxu0
      %1262 = vmatprep.mubr.bf16.mxu0 %v279
      %1263 = vmatmul.mubr.bf16.gmra.mrb[0].mxu0 %v438
      %v1264 = vpop.f32.mrb[0].mxu0
      %v1265 = vadd.f32 %v1168, %v1264
      %v1266 = vpop.f32.mrb[0].mxu0
      %v1267 = vpop.f32.mrb[0].mxu0
      %v1268 = vadd.f32 %v1171, %v1267
      %v1269 = vpop.f32.mrb[0].mxu0
      %1270 = vmatprep.mubr.bf16.mxu0 %v454
      %1271 = vmatmul.mubr.bf16.gmra.mrb[0].mxu0 %v441
      %v1272 = vpop.f32.mrb[0].mxu0
      %v1273 = vadd.f32 %v1176, %v1272
      %v1274 = vpop.f32.mrb[0].mxu0
      %v1275 = vpop.f32.mrb[0].mxu0
      %v1276 = vadd.f32 %v1179, %v1275
      %v1277 = vpop.f32.mrb[0].mxu0
      %1278 = vdwg.mxu0
      %1279 = vmatprep.subr.bf16.mxu0 0
      %1280 = vmatpush1.bf16.msra.mxu0 %v973
      %1281 = vmatprep.subr.bf16.mxu0 0
      %1282 = vmatpush1.bf16.msra.mxu0 %v974
      %1283 = vmatprep.subr.bf16.mxu0 0
      %1284 = vmatpush1.bf16.msra.mxu0 %v975
      %1285 = vmatprep.subr.bf16.mxu0 0
      %1286 = vmatpush1.bf16.msra.mxu0 %v976
      %1287 = vmatprep.subr.bf16.mxu0 0
      %1288 = vmatpush1.bf16.msra.mxu0 %v977
      %1289 = vmatprep.subr.bf16.mxu0 0
      %1290 = vmatpush1.bf16.msra.mxu0 %v978
      %1291 = vmatprep.subr.bf16.mxu0 0
      %1292 = vmatpush1.bf16.msra.mxu0 %v979
      %1293 = vmatprep.subr.bf16.mxu0 0
      %1294 = vmatpush1.bf16.msra.mxu0 %v980
      %1295 = vmatprep.subr.bf16.mxu0 0
      %1296 = vmatpush1.bf16.msra.mxu0 %v981
      %1297 = vmatprep.subr.bf16.mxu0 0
      %1298 = vmatpush1.bf16.msra.mxu0 %v982
      %1299 = vmatprep.subr.bf16.mxu0 0
      %1300 = vmatpush1.bf16.msra.mxu0 %v983
      %1301 = vmatprep.subr.bf16.mxu0 0
      %1302 = vmatpush1.bf16.msra.mxu0 %v984
      %1303 = vmatprep.subr.bf16.mxu0 0
      %1304 = vmatpush1.bf16.msra.mxu0 %v985
      %1305 = vmatprep.subr.bf16.mxu0 0
      %1306 = vmatpush1.bf16.msra.mxu0 %v986
      %1307 = vmatprep.subr.bf16.mxu0 0
      %1308 = vmatpush1.bf16.msra.mxu0 %v987
      %1309 = vmatprep.subr.bf16.mxu0 0
      %1310 = vmatpush1.bf16.msra.mxu0 %v988
      %1311 = vmatprep.mubr.bf16.mxu0 %v423
      %1312 = vmatmul.mubr.bf16.gmra.mrb[0].mxu0 %v336
      %v1313 = vpop.f32.mrb[0].mxu0
      %v1314 = vadd.f32 %v1217, %v1313
      %v1315 = vpop.f32.mrb[0].mxu0
      %v1316 = vpop.f32.mrb[0].mxu0
      %v1317 = vadd.f32 %v1220, %v1316
      %v1318 = vpop.f32.mrb[0].mxu0
      %1319 = vmatprep.mubr.bf16.mxu0 %v426
      %1320 = vmatmul.mubr.bf16.gmra.mrb[0].mxu0 %v348
      %v1321 = vpop.f32.mrb[0].mxu0
      %v1322 = vadd.f32 %v1225, %v1321
      %v1323 = vpop.f32.mrb[0].mxu0
      %v1324 = vpop.f32.mrb[0].mxu0
      %v1325 = vadd.f32 %v1228, %v1324
      %v1326 = vpop.f32.mrb[0].mxu0
      %1327 = vmatprep.mubr.bf16.mxu0 %v429
      %1328 = vmatmul.mubr.bf16.gmra.mrb[0].mxu0 %v360
      %v1329 = vpop.f32.mrb[0].mxu0
      %v1330 = vadd.f32 %v1233, %v1329
      %v1331 = vpop.f32.mrb[0].mxu0
      %v1332 = vpop.f32.mrb[0].mxu0
      %v1333 = vadd.f32 %v1236, %v1332
      %v1334 = vpop.f32.mrb[0].mxu0
      %1335 = vmatprep.mubr.bf16.mxu0 %v432
      %1336 = vmatmul.mubr.bf16.gmra.mrb[0].mxu0 %v372
      %v1337 = vpop.f32.mrb[0].mxu0
      %v1338 = vadd.f32 %v1241, %v1337
      %v1339 = vpop.f32.mrb[0].mxu0
      %v1340 = vpop.f32.mrb[0].mxu0
      %v1341 = vadd.f32 %v1244, %v1340
      %v1342 = vpop.f32.mrb[0].mxu0
      %1343 = vmatprep.mubr.bf16.mxu0 %v435
      %1344 = vmatmul.mubr.bf16.gmra.mrb[0].mxu0 %v384
      %v1345 = vpop.f32.mrb[0].mxu0
      %v1346 = vadd.f32 %v1249, %v1345
      %v1347 = vpop.f32.mrb[0].mxu0
      %v1348 = vpop.f32.mrb[0].mxu0
      %v1349 = vadd.f32 %v1252, %v1348
      %v1350 = vpop.f32.mrb[0].mxu0
      %1351 = vmatprep.mubr.bf16.mxu0 %v438
      %1352 = vmatmul.mubr.bf16.gmra.mrb[0].mxu0 %v396
      %v1353 = vpop.f32.mrb[0].mxu0
      %v1354 = vadd.f32 %v1257, %v1353
      %v1355 = vpop.f32.mrb[0].mxu0
      %v1356 = vpop.f32.mrb[0].mxu0
      %v1357 = vadd.f32 %v1260, %v1356
      %v1358 = vpop.f32.mrb[0].mxu0
      %1359 = vmatprep.mubr.bf16.mxu0 %v441
      %1360 = vmatmul.mubr.bf16.gmra.mrb[0].mxu0 %v408
      %v1361 = vpop.f32.mrb[0].mxu0
      %v1362 = vadd.f32 %v1265, %v1361
      %v1363 = vpop.f32.mrb[0].mxu0
      %v1364 = vpop.f32.mrb[0].mxu0
      %v1365 = vadd.f32 %v1268, %v1364
      %v1366 = vpop.f32.mrb[0].mxu0
      %1367 = vmatprep.mubr.bf16.mxu0 %v474
      %1368 = vmatmul.mubr.bf16.gmra.mrb[0].mxu0 %v470
      %v1369 = vpop.f32.mrb[0].mxu0
      %v1370 = vadd.f32 %v1273, %v1369
      %v1371 = vpop.f32.mrb[0].mxu0
      %v1372 = vpop.f32.mrb[0].mxu0
      %v1373 = vadd.f32 %v1276, %v1372
      %v1374 = vpop.f32.mrb[0].mxu0
      %1375 = vdwg.mxu0
      %1376 = vmatprep.subr.bf16.mxu0 0
      %1377 = vmatpush1.bf16.msra.mxu0 %v989
      %1378 = vmatprep.subr.bf16.mxu0 0
      %1379 = vmatpush1.bf16.msra.mxu0 %v990
      %1380 = vmatprep.subr.bf16.mxu0 0
      %1381 = vmatpush1.bf16.msra.mxu0 %v991
      %1382 = vmatprep.subr.bf16.mxu0 0
      %1383 = vmatpush1.bf16.msra.mxu0 %v992
      %1384 = vmatprep.subr.bf16.mxu0 0
      %1385 = vmatpush1.bf16.msra.mxu0 %v993
      %1386 = vmatprep.subr.bf16.mxu0 0
      %1387 = vmatpush1.bf16.msra.mxu0 %v994
      %1388 = vmatprep.subr.bf16.mxu0 0
      %1389 = vmatpush1.bf16.msra.mxu0 %v995
      %1390 = vmatprep.subr.bf16.mxu0 0
      %1391 = vmatpush1.bf16.msra.mxu0 %v996
      %1392 = vmatprep.subr.bf16.mxu0 0
      %1393 = vmatpush1.bf16.msra.mxu0 %v997
      %1394 = vmatprep.subr.bf16.mxu0 0
      %1395 = vmatpush1.bf16.msra.mxu0 %v998
      %1396 = vmatprep.subr.bf16.mxu0 0
      %1397 = vmatpush1.bf16.msra.mxu0 %v999
      %1398 = vmatprep.subr.bf16.mxu0 0
      %1399 = vmatpush1.bf16.msra.mxu0 %v1000
      %1400 = vmatprep.subr.bf16.mxu0 0
      %1401 = vmatpush1.bf16.msra.mxu0 %v1001
      %1402 = vmatprep.subr.bf16.mxu0 0
      %1403 = vmatpush1.bf16.msra.mxu0 %v1002
      %1404 = vmatprep.subr.bf16.mxu0 0
      %1405 = vmatpush1.bf16.msra.mxu0 %v1003
      %1406 = vmatprep.subr.bf16.mxu0 0
      %1407 = vmatpush1.bf16.msra.mxu0 %v1004
      %1408 = vmatprep.mubr.bf16.mxu0 %v348
      %1409 = vmatmul.mubr.bf16.gmra.mrb[0].mxu0 %v274
      %v1410 = vpop.f32.mrb[0].mxu0
      %v1411 = vadd.f32 %v1314, %v1410
      %v1412 = vpop.f32.mrb[0].mxu0
      %v1413 = vpop.f32.mrb[0].mxu0
      %v1414 = vadd.f32 %v1317, %v1413
      %v1415 = vpop.f32.mrb[0].mxu0
      %1416 = vmatprep.mubr.bf16.mxu0 %v360
      %1417 = vmatmul.mubr.bf16.gmra.mrb[0].mxu0 %v275
      %v1418 = vpop.f32.mrb[0].mxu0
      %v1419 = vadd.f32 %v1322, %v1418
      %v1420 = vpop.f32.mrb[0].mxu0
      %v1421 = vpop.f32.mrb[0].mxu0
      %v1422 = vadd.f32 %v1325, %v1421
      %v1423 = vpop.f32.mrb[0].mxu0
      %1424 = vmatprep.mubr.bf16.mxu0 %v372
      %1425 = vmatmul.mubr.bf16.gmra.mrb[0].mxu0 %v276
      %v1426 = vpop.f32.mrb[0].mxu0
      %v1427 = vadd.f32 %v1330, %v1426
      %v1428 = vpop.f32.mrb[0].mxu0
      %v1429 = vpop.f32.mrb[0].mxu0
      %v1430 = vadd.f32 %v1333, %v1429
      %v1431 = vpop.f32.mrb[0].mxu0
      %1432 = vmatprep.mubr.bf16.mxu0 %v384
      %1433 = vmatmul.mubr.bf16.gmra.mrb[0].mxu0 %v277
      %v1434 = vpop.f32.mrb[0].mxu0
      %v1435 = vadd.f32 %v1338, %v1434
      %v1436 = vpop.f32.mrb[0].mxu0
      %v1437 = vpop.f32.mrb[0].mxu0
      %v1438 = vadd.f32 %v1341, %v1437
      %v1439 = vpop.f32.mrb[0].mxu0
      %1440 = vmatprep.mubr.bf16.mxu0 %v396
      %1441 = vmatmul.mubr.bf16.gmra.mrb[0].mxu0 %v278
      %v1442 = vpop.f32.mrb[0].mxu0
      %v1443 = vadd.f32 %v1346, %v1442
      %v1444 = vpop.f32.mrb[0].mxu0
      %v1445 = vpop.f32.mrb[0].mxu0
      %v1446 = vadd.f32 %v1349, %v1445
      %v1447 = vpop.f32.mrb[0].mxu0
      %1448 = vmatprep.mubr.bf16.mxu0 %v408
      %1449 = vmatmul.mubr.bf16.gmra.mrb[0].mxu0 %v279
      %v1450 = vpop.f32.mrb[0].mxu0
      %v1451 = vadd.f32 %v1354, %v1450
      %v1452 = vpop.f32.mrb[0].mxu0
      %v1453 = vpop.f32.mrb[0].mxu0
      %v1454 = vadd.f32 %v1357, %v1453
      %v1455 = vpop.f32.mrb[0].mxu0
      %1456 = vmatprep.mubr.bf16.mxu0 %v470
      %1457 = vmatmul.mubr.bf16.gmra.mrb[0].mxu0 %v454
      %v1458 = vpop.f32.mrb[0].mxu0
      %v1459 = vadd.f32 %v1362, %v1458
      %v1460 = vpop.f32.mrb[0].mxu0
      %v1461 = vpop.f32.mrb[0].mxu0
      %v1462 = vadd.f32 %v1365, %v1461
      %v1463 = vpop.f32.mrb[0].mxu0
      %1464 = vmatprep.mubr.bf16.mxu0 %v496
      %1465 = vmatmul.mubr.bf16.gmra.mrb[0].mxu0 %v480
      %v1466 = vpop.f32.mrb[0].mxu0
      %v1467 = vadd.f32 %v1370, %v1466
      %v1468 = vpop.f32.mrb[0].mxu0
      %v1469 = vpop.f32.mrb[0].mxu0
      %v1470 = vadd.f32 %v1373, %v1469
      %v1471 = vpop.f32.mrb[0].mxu0
      %1472 = vdwg.mxu0
      %1473 = vmatprep.subr.bf16.mxu0 0
      %1474 = vmatpush1.bf16.msra.mxu0 %v1005
      %1475 = vmatprep.subr.bf16.mxu0 0
      %1476 = vmatpush1.bf16.msra.mxu0 %v1006
      %1477 = vmatprep.subr.bf16.mxu0 0
      %1478 = vmatpush1.bf16.msra.mxu0 %v1007
      %1479 = vmatprep.subr.bf16.mxu0 0
      %1480 = vmatpush1.bf16.msra.mxu0 %v1008
      %1481 = vmatprep.subr.bf16.mxu0 0
      %1482 = vmatpush1.bf16.msra.mxu0 %v1009
      %1483 = vmatprep.subr.bf16.mxu0 0
      %1484 = vmatpush1.bf16.msra.mxu0 %v1010
      %1485 = vmatprep.subr.bf16.mxu0 0
      %1486 = vmatpush1.bf16.msra.mxu0 %v1011
      %1487 = vmatprep.subr.bf16.mxu0 0
      %1488 = vmatpush1.bf16.msra.mxu0 %v1012
      %1489 = vmatprep.subr.bf16.mxu0 0
      %1490 = vmatpush1.bf16.msra.mxu0 0
      %1491 = vmatprep.subr.bf16.mxu0 0
      %1492 = vmatpush1.bf16.msra.mxu0 0
      %1493 = vmatprep.subr.bf16.mxu0 0
      %1494 = vmatpush1.bf16.msra.mxu0 0
      %1495 = vmatprep.subr.bf16.mxu0 0
      %1496 = vmatpush1.bf16.msra.mxu0 0
      %1497 = vmatprep.subr.bf16.mxu0 0
      %1498 = vmatpush1.bf16.msra.mxu0 0
      %1499 = vmatprep.subr.bf16.mxu0 0
      %1500 = vmatpush1.bf16.msra.mxu0 0
      %1501 = vmatprep.subr.bf16.mxu0 0
      %1502 = vmatpush1.bf16.msra.mxu0 0
      %1503 = vmatprep.subr.bf16.mxu0 0
      %1504 = vmatpush1.bf16.msra.mxu0 0
      %1505 = vmatprep.mubr.bf16.mxu0 0
      %1506 = vmatmul.mubr.bf16.gmra.mrb[0].mxu0 %v426
      %v1507 = vpop.f32.mrb[0].mxu0
      %v1508 = vadd.f32 %v1411, %v1507
      %v1509 = vpop.f32.mrb[0].mxu0
      %v1510 = vpop.f32.mrb[0].mxu0
      %v1511 = vadd.f32 %v1414, %v1510
      %v1512 = vpop.f32.mrb[0].mxu0
      %1513 = vmatprep.mubr.bf16.mxu0 0
      %1514 = vmatmul.mubr.bf16.gmra.mrb[0].mxu0 %v429
      %v1515 = vpop.f32.mrb[0].mxu0
      %v1516 = vadd.f32 %v1419, %v1515
      %v1517 = vpop.f32.mrb[0].mxu0
      %v1518 = vpop.f32.mrb[0].mxu0
      %v1519 = vadd.f32 %v1422, %v1518
      %v1520 = vpop.f32.mrb[0].mxu0
      %1521 = vmatprep.mubr.bf16.mxu0 0
      %1522 = vmatmul.mubr.bf16.gmra.mrb[0].mxu0 %v432
      %v1523 = vpop.f32.mrb[0].mxu0
      %v1524 = vadd.f32 %v1427, %v1523
      %v1525 = vpop.f32.mrb[0].mxu0
      %v1526 = vpop.f32.mrb[0].mxu0
      %v1527 = vadd.f32 %v1430, %v1526
      %v1528 = vpop.f32.mrb[0].mxu0
      %1529 = vmatprep.mubr.bf16.mxu0 0
      %1530 = vmatmul.mubr.bf16.gmra.mrb[0].mxu0 %v435
      %v1531 = vpop.f32.mrb[0].mxu0
      %v1532 = vadd.f32 %v1435, %v1531
      %v1533 = vpop.f32.mrb[0].mxu0
      %v1534 = vpop.f32.mrb[0].mxu0
      %v1535 = vadd.f32 %v1438, %v1534
      %v1536 = vpop.f32.mrb[0].mxu0
      %1537 = vmatprep.mubr.bf16.mxu0 0
      %1538 = vmatmul.mubr.bf16.gmra.mrb[0].mxu0 %v438
      %v1539 = vpop.f32.mrb[0].mxu0
      %v1540 = vadd.f32 %v1443, %v1539
      %v1541 = vpop.f32.mrb[0].mxu0
      %v1542 = vpop.f32.mrb[0].mxu0
      %v1543 = vadd.f32 %v1446, %v1542
      %v1544 = vpop.f32.mrb[0].mxu0
      %1545 = vmatprep.mubr.bf16.mxu0 0
      %1546 = vmatmul.mubr.bf16.gmra.mrb[0].mxu0 %v441
      %v1547 = vpop.f32.mrb[0].mxu0
      %v1548 = vadd.f32 %v1451, %v1547
      %v1549 = vpop.f32.mrb[0].mxu0
      %v1550 = vpop.f32.mrb[0].mxu0
      %v1551 = vadd.f32 %v1454, %v1550
      %v1552 = vpop.f32.mrb[0].mxu0
      %1553 = vmatprep.mubr.bf16.mxu0 0
      %1554 = vmatmul.mubr.bf16.gmra.mrb[0].mxu0 %v474
      %v1555 = vpop.f32.mrb[0].mxu0
      %v1556 = vadd.f32 %v1459, %v1555
      %v1557 = vpop.f32.mrb[0].mxu0
      %v1558 = vpop.f32.mrb[0].mxu0
      %v1559 = vadd.f32 %v1462, %v1558
      %v1560 = vpop.f32.mrb[0].mxu0
      %1561 = vmatprep.mubr.bf16.mxu0 0
      %1562 = vmatmul.mubr.bf16.gmra.mrb[0].mxu0 %v500
      %v1563 = vpop.f32.mrb[0].mxu0
      %v1564 = vadd.f32 %v1467, %v1563
      %v1565 = vpop.f32.mrb[0].mxu0
      %v1566 = vpop.f32.mrb[0].mxu0
      %v1567 = vadd.f32 %v1470, %v1566
      %v1568 = vpop.f32.mrb[0].mxu0
      %1569 = vdwg.mxu0
      %1570 = vst [vmem:[%s204] sm:$0xff] %v1508
      %1571 = vst [vmem:[%s204 + $0x8] sm:$0xff] %v1511
      %1572 = vst [vmem:[%s204 + $0x10] sm:$0xff] %v1516
      %1573 = vst [vmem:[%s204 + $0x18] sm:$0xff] %v1519
      %1574 = vst [vmem:[%s204 + $0x20] sm:$0xff] %v1524
      %1575 = vst [vmem:[%s204 + $0x28] sm:$0xff] %v1527
      %1576 = vst [vmem:[%s204 + $0x30] sm:$0xff] %v1532
      %1577 = vst [vmem:[%s204 + $0x38] sm:$0xff] %v1535
      %1578 = vst [vmem:[%s204 + $0x40] sm:$0xff] %v1540
      %1579 = vst [vmem:[%s204 + $0x48] sm:$0xff] %v1543
      %1580 = vst [vmem:[%s204 + $0x50] sm:$0xff] %v1548
      %1581 = vst [vmem:[%s204 + $0x58] sm:$0xff] %v1551
      %1582 = vst [vmem:[%s204 + $0x60] sm:$0xff] %v1556
      %1583 = vst [vmem:[%s204 + $0x68] sm:$0xff] %v1559
      %1584 = vst [vmem:[%s204 + $0x70] sm:$0xff] %v1564
      %1585 = vst [vmem:[%s204 + $0x78] sm:$0xff] %v1567
      %v1586 = vadd.f32 %v1508, %v1511
      %v1587 = vadd.f32 %v1586, %v1516
      %v1588 = vadd.f32 %v1587, %v1519
      %v1589 = vadd.f32 %v1588, %v1524
      %v1590 = vadd.f32 %v1589, %v1527
      %v1591 = vadd.f32 %v1590, %v1532
      %v1592 = vadd.f32 %v1591, %v1535
      %v1593 = vadd.f32 %v1592, %v1540
      %v1594 = vadd.f32 %v1593, %v1543
      %v1595 = vadd.f32 %v1594, %v1548
      %v1596 = vadd.f32 %v1595, %v1551
      %v1597 = vadd.f32 %v1596, %v1556
      %v1598 = vadd.f32 %v1597, %v1559
      %v1599 = vadd.f32 %v1598, %v1564
      %v1600 = vadd.f32 %v1599, %v1567
      %v1601 = vrot.slane %v1600, 4
      %v1602 = vadd.f32 %v1600, %v1601
      %v1603 = vrot.slane %v1602, 2
      %v1604 = vadd.f32 %v1602, %v1603
      %v1605 = vrot.slane %v1604, 1
      %v1606 = vadd.f32 %v1604, %v1605
      %v1607 = vmul.f32 %v1508, %v1508
      %v1608 = vmul.f32 %v1511, %v1511
      %v1609 = vmul.f32 %v1516, %v1516
      %v1610 = vmul.f32 %v1519, %v1519
      %v1611 = vmul.f32 %v1524, %v1524
      %v1612 = vmul.f32 %v1527, %v1527
      %v1613 = vmul.f32 %v1532, %v1532
      %v1614 = vmul.f32 %v1535, %v1535
      %v1615 = vmul.f32 %v1540, %v1540
      %v1616 = vmul.f32 %v1543, %v1543
      %v1617 = vmul.f32 %v1548, %v1548
      %v1618 = vmul.f32 %v1551, %v1551
      %v1619 = vmul.f32 %v1556, %v1556
      %v1620 = vmul.f32 %v1559, %v1559
      %v1621 = vmul.f32 %v1564, %v1564
      %v1622 = vmul.f32 %v1567, %v1567
      %v1623 = vadd.f32 %v1607, %v1608
      %v1624 = vadd.f32 %v1623, %v1609
      %v1625 = vadd.f32 %v1624, %v1610
      %v1626 = vadd.f32 %v1625, %v1611
      %v1627 = vadd.f32 %v1626, %v1612
      %v1628 = vadd.f32 %v1627, %v1613
      %v1629 = vadd.f32 %v1628, %v1614
      %v1630 = vadd.f32 %v1629, %v1615
      %v1631 = vadd.f32 %v1630, %v1616
      %v1632 = vadd.f32 %v1631, %v1617
      %v1633 = vadd.f32 %v1632, %v1618
      %v1634 = vadd.f32 %v1633, %v1619
      %v1635 = vadd.f32 %v1634, %v1620
      %v1636 = vadd.f32 %v1635, %v1621
      %v1637 = vadd.f32 %v1636, %v1622
      %v1638 = vrot.slane %v1637, 4
      %v1639 = vadd.f32 %v1637, %v1638
      %v1640 = vrot.slane %v1639, 2
      %v1641 = vadd.f32 %v1639, %v1640
      %v1642 = vrot.slane %v1641, 1
      %v1643 = vadd.f32 %v1641, %v1642
      %vm1644 = vcmask 1040384
      %v1645 = vsel %vm1644, %v1606, %v1643
      %vm1646 = vcmask 1041408
      %v1647 = vsel %vm1646, %v1645, 0.0
      %1648 = vst [vmem:[%s208] sm:$0xff] %v1647
      %p1649 = scmp.lt.s32.totalorder %s16, 3
      %s1650 = scalar_select %p1649, %s16, 3
      %s1651 = smul.addr %s1650, 16
      %s1652 = smul.addr %s1651, 8
      %s1653 = scalar_lea.vmem %s3, %s1652
      %p1654 = scmp.lt.s32.totalorder %s16, 3
      %s1655 = scalar_select %p1654, %s16, 3
      %s1656 = smul.addr %s1655, 8
      %s1657 = scalar_lea.vmem %s4, %s1656
      // Predicated region
      $region33: #{up_conv_forward.10} parent=31 // pred_check
        %p1658 = pneg %p102
      $region34: #{up_conv_forward.10} parent=31 // pred_check_branch
        %1660 = sbr.rel (%p1658) target = $region36
      $region35: #{up_conv_forward.10} parent=31 // pred_region
        _
      $region36: #{up_conv_forward.10} parent=31 // pred_fallthru
        _
      // Predicated region
      $region37: #{up_conv_forward.10} parent=31 // pred_check
        %p1661 = pneg %p128
      $region38: #{up_conv_forward.10} parent=31 // pred_check_branch
        %1663 = sbr.rel (%p1661) target = $region40
      $region39: #{up_conv_forward.10} parent=31 // pred_region
        _
      $region40: #{up_conv_forward.10} parent=31 // pred_fallthru
        _
    $region32: #{up_conv_forward.10} parent=5 // pred_fallthru
      _
    %p1664 = scmp.le.s32.totalorder 2, %s11
    // Predicated region
    $region41: #{up_conv_forward.10} parent=5 // pred_check
      %p1665 = pneg %p1664
    $region42: #{up_conv_forward.10} parent=5 // pred_check_branch
      %1667 = sbr.rel (%p1665) target = $region44
    $region43: #{up_conv_forward.10} parent=5 // pred_region
      %s1668 = ssub.s32 %s11, 2
      // Predicated region
      $region45: #{up_conv_forward.10} parent=43 // pred_check
        %p1669 = pneg %p108
      $region46: #{up_conv_forward.10} parent=43 // pred_check_branch
        %1671 = sbr.rel (%p1669) target = $region48
      $region47: #{up_conv_forward.10} parent=43 // pred_region
        %p1672 = scmp.lt.s32.totalorder %s17, 3
        %s1673 = scalar_select %p1672, %s17, 3
        %s1674 = smul.addr %s1673, 16
        %s1675 = smul.addr %s1674, 8
        %s1676 = scalar_lea.vmem %s3, %s1675
      $region48: #{up_conv_forward.10} parent=43 // pred_fallthru
        _
      // Predicated region
      $region49: #{up_conv_forward.10} parent=43 // pred_check
        %p1677 = pneg %p134
      $region50: #{up_conv_forward.10} parent=43 // pred_check_branch
        %1679 = sbr.rel (%p1677) target = $region52
      $region51: #{up_conv_forward.10} parent=43 // pred_region
        %p1680 = scmp.lt.s32.totalorder %s17, 3
        %s1681 = scalar_select %p1680, %s17, 3
        %s1682 = smul.addr %s1681, 8
        %s1683 = scalar_lea.vmem %s4, %s1682
      $region52: #{up_conv_forward.10} parent=43 // pred_fallthru
        _
    $region44: #{up_conv_forward.10} parent=5 // pred_fallthru
      _
  $region6: #{up_conv_forward.10} parent=0 // loop_footer
    %s15 = sadd.s32 1, %s11
  $region7: #{up_conv_forward.10} parent=0 // loop_footer_branch
    %10 = sbr.rel target = $region3
  $region8: #{up_conv_forward.10} parent=0 // loop_exit
    _

</llo_original>
